<compile_context>
chip_gen: v7x
topology: tpu7x:2x2x1
jax: 0.10.0
libtpu: 0.0.40
codegen_flags: <defaults>
</compile_context>

<pallas_src>
import jax
import jax.numpy as jnp
import numpy as np
from jax.experimental import pallas as pl
from jax.experimental.pallas import tpu as pltpu

LRELU_SLOPE = 0.2
BN_EPS = 0.8  # nn.BatchNorm1d(out_feat, 0.8) -> eps = 0.8


def _leaky_relu(x, slope=LRELU_SLOPE):
    return jnp.where(x > 0, x, slope * x)


def generator_kernel(z_ref,
                     w1_ref, b1_ref,
                     w2_ref, s2_ref, t2_ref,
                     w3_ref, s3_ref, t3_ref,
                     w4_ref, s4_ref, t4_ref,
                     w5_ref, b5_ref,
                     o_ref):
    # One (TB, latent) batch tile per grid step; weights/affines VMEM-resident.
    # Matmul operands are bf16 (MXU native); accumulation + elementwise are f32.
    z = z_ref[...]                                                      # (TB, latent) bf16

    h = jnp.dot(z, w1_ref[...], preferred_element_type=jnp.float32) + b1_ref[...]
    h = _leaky_relu(h)                                                  # (TB, 128) f32

    h = jnp.dot(h.astype(jnp.bfloat16), w2_ref[...],
                preferred_element_type=jnp.float32)
    h = _leaky_relu(h * s2_ref[...] + t2_ref[...])                      # (TB, 256)

    h = jnp.dot(h.astype(jnp.bfloat16), w3_ref[...],
                preferred_element_type=jnp.float32)
    h = _leaky_relu(h * s3_ref[...] + t3_ref[...])                      # (TB, 512)

    h = jnp.dot(h.astype(jnp.bfloat16), w4_ref[...],
                preferred_element_type=jnp.float32)
    h = _leaky_relu(h * s4_ref[...] + t4_ref[...])                      # (TB, 1024)

    h = jnp.dot(h.astype(jnp.bfloat16), w5_ref[...],
                preferred_element_type=jnp.float32) + b5_ref[...]
    o_ref[...] = jnp.tanh(h).astype(o_ref.dtype)                        # (TB, Dout_pad)


def generator_forward(z, params, img_shape, *, batch_tile=256):
    """z: (B, latent_dim) f32. Returns img: (B, *img_shape) f32."""
    (w1, b1), l2, l3, l4, (w5, b5) = params
    B, latent_dim = z.shape
    d_out = int(np.prod(img_shape))

    # Fold eval-mode BatchNorm AND the preceding linear bias into per-feature
    # (scale, shift):  BN(x@W + b) = (x@W)*scale + (shift),  shift = beta - (m-b)*scale.
    def fold_bn(b, g, be, m, v):
        scale = g / jnp.sqrt(v + BN_EPS)
        shift = be + (b - m) * scale
        return scale, shift

    w2, b2, g2, be2, m2, v2 = l2
    w3, b3, g3, be3, m3, v3 = l3
    w4, b4, g4, be4, m4, v4 = l4
    s2, t2 = fold_bn(b2, g2, be2, m2, v2)
    s3, t3 = fold_bn(b3, g3, be3, m3, v3)
    s4, t4 = fold_bn(b4, g4, be4, m4, v4)

    # Lane-dense output: pad d_out to a multiple of 128, slice after the call.
    d_out_pad = int(pl.cdiv(d_out, 128)) * 128
    if d_out_pad != d_out:
        w5 = jnp.pad(w5, ((0, 0), (0, d_out_pad - d_out)))
        b5 = jnp.pad(b5, ((0, d_out_pad - d_out),))

    # Batch tile: large (default 256) to fill the MXU M-dimension, clamped to
    # the (8-rounded) batch so tiny batches don't pad 16x.  Pad B to a tile
    # multiple only if needed (padded rows sliced off).
    b_round8 = ((B + 7) // 8) * 8
    tb = min(batch_tile, b_round8)
    n_tiles = int(pl.cdiv(B, tb))
    b_pad = n_tiles * tb
    if b_pad != B:
        z = jnp.pad(z, ((0, b_pad - B), (0, 0)))

    # bf16 matmul operands; f32 accumulation / elementwise.
    z_bf = z.astype(jnp.bfloat16)
    w1b, w2b, w3b, w4b, w5b = (w.astype(jnp.bfloat16) for w in (w1, w2, w3, w4, w5))

    def row(v):  # (N,) -> (1, N): broadcast along sublanes inside the kernel
        return v.astype(jnp.float32).reshape(1, -1)

    operands = (z_bf,
                w1b, row(b1),
                w2b, row(s2), row(t2),
                w3b, row(s3), row(t3),
                w4b, row(s4), row(t4),
                w5b, row(b5))

    def resident(a):
        # Full-array block with a constant index_map: same block index every
        # grid step -> stays in VMEM across iterations (no re-DMA).
        return pl.BlockSpec(a.shape, lambda i: (0, 0))

    in_specs = [pl.BlockSpec((tb, latent_dim), lambda i: (i, 0))] + \
               [resident(a) for a in operands[1:]]

    out = pl.pallas_call(
        generator_kernel,
        out_shape=jax.ShapeDtypeStruct((b_pad, d_out_pad), jnp.float32),
        grid=(n_tiles,),
        in_specs=in_specs,
        out_specs=pl.BlockSpec((tb, d_out_pad), lambda i: (i, 0)),
        compiler_params=pltpu.CompilerParams(
            dimension_semantics=("parallel",),   # megacore shard on v7x
            vmem_limit_bytes=32 * 1024 * 1024),
    )(*operands)

    return out[:B, :d_out].reshape(B, *img_shape)


def init_params(key, latent_dim, img_shape):
    """Deterministic synthetic params. Weights stored as (in, out) so the
    kernel computes x @ W + b (equivalent to torch's x @ W.T + b)."""
    d_out = int(np.prod(img_shape))
    dims = [latent_dim, 128, 256, 512, 1024, d_out]
    k = jax.random.split(key, 22)

    def linear(kw, kb, d_in, d_o):
        s = 1.0 / np.sqrt(d_in)
        w = jax.random.uniform(kw, (d_in, d_o), jnp.float32, -s, s)
        b = jax.random.uniform(kb, (d_o,), jnp.float32, -s, s)
        return w, b

    def bn(kg, kb_, km, kv, n):
        gamma = 1.0 + 0.1 * jax.random.normal(kg, (n,), jnp.float32)
        beta = 0.1 * jax.random.normal(kb_, (n,), jnp.float32)
        mean = 0.1 * jax.random.normal(km, (n,), jnp.float32)
        var = jax.random.uniform(kv, (n,), jnp.float32, 0.5, 1.5)
        return gamma, beta, mean, var

    w1, b1 = linear(k[0], k[1], dims[0], dims[1])
    w2, b2 = linear(k[2], k[3], dims[1], dims[2])
    g2, be2, m2, v2 = bn(k[4], k[5], k[6], k[7], dims[2])
    w3, b3 = linear(k[8], k[9], dims[2], dims[3])
    g3, be3, m3, v3 = bn(k[10], k[11], k[12], k[13], dims[3])
    w4, b4 = linear(k[14], k[15], dims[3], dims[4])
    g4, be4, m4, v4 = bn(k[16], k[17], k[18], k[19], dims[4])
    w5, b5 = linear(k[20], k[21], dims[4], dims[5])
    return ((w1, b1),
            (w2, b2, g2, be2, m2, v2),
            (w3, b3, g3, be3, m3, v3),
            (w4, b4, g4, be4, m4, v4),
            (w5, b5))


def reference_forward(z, params, img_shape):
    (w1, b1), (w2, b2, g2, be2, m2, v2), (w3, b3, g3, be3, m3, v3), \
        (w4, b4, g4, be4, m4, v4), (w5, b5) = params

    def bn(x, g, be, m, v):
        return g * (x - m) / jnp.sqrt(v + BN_EPS) + be

    h = _leaky_relu(z @ w1 + b1)
    h = _leaky_relu(bn(h @ w2 + b2, g2, be2, m2, v2))
    h = _leaky_relu(bn(h @ w3 + b3, g3, be3, m3, v3))
    h = _leaky_relu(bn(h @ w4 + b4, g4, be4, m4, v4))
    out = jnp.tanh(h @ w5 + b5)
    return out.reshape(z.shape[0], *img_shape)


if __name__ == "__main__":
    # Small shapes consistent with the module: latent_dim=32, img_size=(1,16,16).
    B, latent_dim = 16, 32
    img_shape = (1, 16, 16)

    key = jax.random.PRNGKey(0)
    k_z, k_p = jax.random.split(key)
    z = jax.random.normal(k_z, (B, latent_dim), dtype=jnp.float32)
    params = init_params(k_p, latent_dim, img_shape)

    out = generator_forward(z, params, img_shape)
    out = jax.block_until_ready(out)

    ref = reference_forward(z, params, img_shape)
    assert out.shape == (B,) + tuple(img_shape), out.shape
    # bf16 matmul operands (f32 accumulation) -> loosened tolerance vs f32 ref.
    np.testing.assert_allclose(np.asarray(out), np.asarray(ref),
                               rtol=3e-2, atol=3e-2)
    print("KERNEL_OK")
</pallas_src>

<mosaic_0001>
module attributes {stable_mosaic.version = 11 : i64} {
  func.func @generator_kernel(%arg0: i32, %arg1: memref<16x32xbf16, #tpu.memory_space<vmem>>, %arg2: memref<32x128xbf16, #tpu.memory_space<vmem>>, %arg3: memref<1x128xf32, #tpu.memory_space<vmem>>, %arg4: memref<128x256xbf16, #tpu.memory_space<vmem>>, %arg5: memref<1x256xf32, #tpu.memory_space<vmem>>, %arg6: memref<1x256xf32, #tpu.memory_space<vmem>>, %arg7: memref<256x512xbf16, #tpu.memory_space<vmem>>, %arg8: memref<1x512xf32, #tpu.memory_space<vmem>>, %arg9: memref<1x512xf32, #tpu.memory_space<vmem>>, %arg10: memref<512x1024xbf16, #tpu.memory_space<vmem>>, %arg11: memref<1x1024xf32, #tpu.memory_space<vmem>>, %arg12: memref<1x1024xf32, #tpu.memory_space<vmem>>, %arg13: memref<1024x256xbf16, #tpu.memory_space<vmem>>, %arg14: memref<1x256xf32, #tpu.memory_space<vmem>>, %arg15: memref<16x256xf32, #tpu.memory_space<vmem>>) attributes {dimension_semantics = [#tpu.dimension_semantics<parallel>], iteration_bounds = array<i64: 1>, scalar_prefetch = 0 : i64, scratch_operands = 0 : i64, tpu.core_type = #tpu.core_type<tc>, window_params = [{transform_indices = @transform_0, window_bounds = array<i64: 16, 32>}, {pipeline_mode = #tpu.pipeline_mode<synchronous>, transform_indices = @transform_1, window_bounds = array<i64: 32, 128>}, {pipeline_mode = #tpu.pipeline_mode<synchronous>, transform_indices = @transform_2, window_bounds = array<i64: 1, 128>}, {pipeline_mode = #tpu.pipeline_mode<synchronous>, transform_indices = @transform_3, window_bounds = array<i64: 128, 256>}, {pipeline_mode = #tpu.pipeline_mode<synchronous>, transform_indices = @transform_4, window_bounds = array<i64: 1, 256>}, {pipeline_mode = #tpu.pipeline_mode<synchronous>, transform_indices = @transform_5, window_bounds = array<i64: 1, 256>}, {pipeline_mode = #tpu.pipeline_mode<synchronous>, transform_indices = @transform_6, window_bounds = array<i64: 256, 512>}, {pipeline_mode = #tpu.pipeline_mode<synchronous>, transform_indices = @transform_7, window_bounds = array<i64: 1, 512>}, {pipeline_mode = #tpu.pipeline_mode<synchronous>, transform_indices = @transform_8, window_bounds = array<i64: 1, 512>}, {pipeline_mode = #tpu.pipeline_mode<synchronous>, transform_indices = @transform_9, window_bounds = array<i64: 512, 1024>}, {pipeline_mode = #tpu.pipeline_mode<synchronous>, transform_indices = @transform_10, window_bounds = array<i64: 1, 1024>}, {pipeline_mode = #tpu.pipeline_mode<synchronous>, transform_indices = @transform_11, window_bounds = array<i64: 1, 1024>}, {pipeline_mode = #tpu.pipeline_mode<synchronous>, transform_indices = @transform_12, window_bounds = array<i64: 1024, 256>}, {pipeline_mode = #tpu.pipeline_mode<synchronous>, transform_indices = @transform_13, window_bounds = array<i64: 1, 256>}, {transform_indices = @transform_14, window_bounds = array<i64: 16, 256>}]} {
    %c0 = arith.constant 0 : index
    %c0_0 = arith.constant 0 : index
    %0 = vector.load %arg1[%c0, %c0_0] : memref<16x32xbf16, #tpu.memory_space<vmem>>, vector<16x32xbf16>
    %c0_1 = arith.constant 0 : index
    %c0_2 = arith.constant 0 : index
    %1 = vector.load %arg2[%c0_1, %c0_2] : memref<32x128xbf16, #tpu.memory_space<vmem>>, vector<32x128xbf16>
    %cst = arith.constant dense<0.000000e+00> : vector<16x128xf32>
    %2 = tpu.matmul %0, %1, %cst {dimension_numbers = #tpu.dot_dimension_numbers<[1], [0], [0], [1], [0, 0, 1, 1], [], []>} : vector<16x32xbf16>, vector<32x128xbf16>, vector<16x128xf32> -> vector<16x128xf32>
    %c0_3 = arith.constant 0 : index
    %c0_4 = arith.constant 0 : index
    %3 = vector.load %arg3[%c0_3, %c0_4] : memref<1x128xf32, #tpu.memory_space<vmem>>, vector<1x128xf32>
    %4 = vector.broadcast %3 : vector<1x128xf32> to vector<16x128xf32>
    %5 = arith.addf %2, %4 : vector<16x128xf32>
    %cst_5 = arith.constant 0.000000e+00 : f32
    %6 = vector.broadcast %cst_5 : f32 to vector<16x128xf32>
    %7 = arith.cmpf ogt, %5, %6 : vector<16x128xf32>
    %cst_6 = arith.constant 2.000000e-01 : f32
    %8 = vector.broadcast %cst_6 : f32 to vector<16x128xf32>
    %9 = arith.mulf %8, %5 : vector<16x128xf32>
    %10 = arith.select %7, %5, %9 : vector<16x128xi1>, vector<16x128xf32>
    %11 = arith.truncf %10 : vector<16x128xf32> to vector<16x128xbf16>
    %c0_7 = arith.constant 0 : index
    %c0_8 = arith.constant 0 : index
    %12 = vector.load %arg4[%c0_7, %c0_8] : memref<128x256xbf16, #tpu.memory_space<vmem>>, vector<128x256xbf16>
    %cst_9 = arith.constant dense<0.000000e+00> : vector<16x256xf32>
    %13 = tpu.matmul %11, %12, %cst_9 {dimension_numbers = #tpu.dot_dimension_numbers<[1], [0], [0], [1], [0, 0, 1, 1], [], []>} : vector<16x128xbf16>, vector<128x256xbf16>, vector<16x256xf32> -> vector<16x256xf32>
    %c0_10 = arith.constant 0 : index
    %c0_11 = arith.constant 0 : index
    %14 = vector.load %arg5[%c0_10, %c0_11] : memref<1x256xf32, #tpu.memory_space<vmem>>, vector<1x256xf32>
    %15 = vector.broadcast %14 : vector<1x256xf32> to vector<16x256xf32>
    %16 = arith.mulf %13, %15 : vector<16x256xf32>
    %c0_12 = arith.constant 0 : index
    %c0_13 = arith.constant 0 : index
    %17 = vector.load %arg6[%c0_12, %c0_13] : memref<1x256xf32, #tpu.memory_space<vmem>>, vector<1x256xf32>
    %18 = vector.broadcast %17 : vector<1x256xf32> to vector<16x256xf32>
    %19 = arith.addf %16, %18 : vector<16x256xf32>
    %cst_14 = arith.constant 0.000000e+00 : f32
    %20 = vector.broadcast %cst_14 : f32 to vector<16x256xf32>
    %21 = arith.cmpf ogt, %19, %20 : vector<16x256xf32>
    %cst_15 = arith.constant 2.000000e-01 : f32
    %22 = vector.broadcast %cst_15 : f32 to vector<16x256xf32>
    %23 = arith.mulf %22, %19 : vector<16x256xf32>
    %24 = arith.select %21, %19, %23 : vector<16x256xi1>, vector<16x256xf32>
    %25 = arith.truncf %24 : vector<16x256xf32> to vector<16x256xbf16>
    %c0_16 = arith.constant 0 : index
    %c0_17 = arith.constant 0 : index
    %26 = vector.load %arg7[%c0_16, %c0_17] : memref<256x512xbf16, #tpu.memory_space<vmem>>, vector<256x512xbf16>
    %cst_18 = arith.constant dense<0.000000e+00> : vector<16x512xf32>
    %27 = tpu.matmul %25, %26, %cst_18 {dimension_numbers = #tpu.dot_dimension_numbers<[1], [0], [0], [1], [0, 0, 1, 1], [], []>} : vector<16x256xbf16>, vector<256x512xbf16>, vector<16x512xf32> -> vector<16x512xf32>
    %c0_19 = arith.constant 0 : index
    %c0_20 = arith.constant 0 : index
    %28 = vector.load %arg8[%c0_19, %c0_20] : memref<1x512xf32, #tpu.memory_space<vmem>>, vector<1x512xf32>
    %29 = vector.broadcast %28 : vector<1x512xf32> to vector<16x512xf32>
    %30 = arith.mulf %27, %29 : vector<16x512xf32>
    %c0_21 = arith.constant 0 : index
    %c0_22 = arith.constant 0 : index
    %31 = vector.load %arg9[%c0_21, %c0_22] : memref<1x512xf32, #tpu.memory_space<vmem>>, vector<1x512xf32>
    %32 = vector.broadcast %31 : vector<1x512xf32> to vector<16x512xf32>
    %33 = arith.addf %30, %32 : vector<16x512xf32>
    %cst_23 = arith.constant 0.000000e+00 : f32
    %34 = vector.broadcast %cst_23 : f32 to vector<16x512xf32>
    %35 = arith.cmpf ogt, %33, %34 : vector<16x512xf32>
    %cst_24 = arith.constant 2.000000e-01 : f32
    %36 = vector.broadcast %cst_24 : f32 to vector<16x512xf32>
    %37 = arith.mulf %36, %33 : vector<16x512xf32>
    %38 = arith.select %35, %33, %37 : vector<16x512xi1>, vector<16x512xf32>
    %39 = arith.truncf %38 : vector<16x512xf32> to vector<16x512xbf16>
    %c0_25 = arith.constant 0 : index
    %c0_26 = arith.constant 0 : index
    %40 = vector.load %arg10[%c0_25, %c0_26] : memref<512x1024xbf16, #tpu.memory_space<vmem>>, vector<512x1024xbf16>
    %cst_27 = arith.constant dense<0.000000e+00> : vector<16x1024xf32>
    %41 = tpu.matmul %39, %40, %cst_27 {dimension_numbers = #tpu.dot_dimension_numbers<[1], [0], [0], [1], [0, 0, 1, 1], [], []>} : vector<16x512xbf16>, vector<512x1024xbf16>, vector<16x1024xf32> -> vector<16x1024xf32>
    %c0_28 = arith.constant 0 : index
    %c0_29 = arith.constant 0 : index
    %42 = vector.load %arg11[%c0_28, %c0_29] : memref<1x1024xf32, #tpu.memory_space<vmem>>, vector<1x1024xf32>
    %43 = vector.broadcast %42 : vector<1x1024xf32> to vector<16x1024xf32>
    %44 = arith.mulf %41, %43 : vector<16x1024xf32>
    %c0_30 = arith.constant 0 : index
    %c0_31 = arith.constant 0 : index
    %45 = vector.load %arg12[%c0_30, %c0_31] : memref<1x1024xf32, #tpu.memory_space<vmem>>, vector<1x1024xf32>
    %46 = vector.broadcast %45 : vector<1x1024xf32> to vector<16x1024xf32>
    %47 = arith.addf %44, %46 : vector<16x1024xf32>
    %cst_32 = arith.constant 0.000000e+00 : f32
    %48 = vector.broadcast %cst_32 : f32 to vector<16x1024xf32>
    %49 = arith.cmpf ogt, %47, %48 : vector<16x1024xf32>
    %cst_33 = arith.constant 2.000000e-01 : f32
    %50 = vector.broadcast %cst_33 : f32 to vector<16x1024xf32>
    %51 = arith.mulf %50, %47 : vector<16x1024xf32>
    %52 = arith.select %49, %47, %51 : vector<16x1024xi1>, vector<16x1024xf32>
    %53 = arith.truncf %52 : vector<16x1024xf32> to vector<16x1024xbf16>
    %c0_34 = arith.constant 0 : index
    %c0_35 = arith.constant 0 : index
    %54 = vector.load %arg13[%c0_34, %c0_35] : memref<1024x256xbf16, #tpu.memory_space<vmem>>, vector<1024x256xbf16>
    %cst_36 = arith.constant dense<0.000000e+00> : vector<16x256xf32>
    %55 = tpu.matmul %53, %54, %cst_36 {dimension_numbers = #tpu.dot_dimension_numbers<[1], [0], [0], [1], [0, 0, 1, 1], [], []>} : vector<16x1024xbf16>, vector<1024x256xbf16>, vector<16x256xf32> -> vector<16x256xf32>
    %c0_37 = arith.constant 0 : index
    %c0_38 = arith.constant 0 : index
    %56 = vector.load %arg14[%c0_37, %c0_38] : memref<1x256xf32, #tpu.memory_space<vmem>>, vector<1x256xf32>
    %57 = vector.broadcast %56 : vector<1x256xf32> to vector<16x256xf32>
    %58 = arith.addf %55, %57 : vector<16x256xf32>
    %59 = math.tanh %58 : vector<16x256xf32>
    %c0_39 = arith.constant 0 : index
    %c0_40 = arith.constant 0 : index
    %60 = vector.load %arg15[%c0_39, %c0_40] : memref<16x256xf32, #tpu.memory_space<vmem>>, vector<16x256xf32>
    tpu.vector_store %arg15[%c0_39, %c0_40], %59 {strides = array<i32>} : memref<16x256xf32, #tpu.memory_space<vmem>>, vector<16x256xf32>,
    return
  }
  func.func @transform_0(%arg0: i32) -> (i32, i32) {
    %c0_i32 = arith.constant 0 : i32
    %c0_i32_0 = arith.constant 0 : i32
    return %arg0, %c0_i32 : i32, i32
  }
  func.func @transform_1(%arg0: i32) -> (i32, i32) {
    %c0_i32 = arith.constant 0 : i32
    %c0_i32_0 = arith.constant 0 : i32
    %c0_i32_1 = arith.constant 0 : i32
    return %c0_i32, %c0_i32_0 : i32, i32
  }
  func.func @transform_2(%arg0: i32) -> (i32, i32) {
    %c0_i32 = arith.constant 0 : i32
    %c0_i32_0 = arith.constant 0 : i32
    %c0_i32_1 = arith.constant 0 : i32
    return %c0_i32, %c0_i32_0 : i32, i32
  }
  func.func @transform_3(%arg0: i32) -> (i32, i32) {
    %c0_i32 = arith.constant 0 : i32
    %c0_i32_0 = arith.constant 0 : i32
    %c0_i32_1 = arith.constant 0 : i32
    return %c0_i32, %c0_i32_0 : i32, i32
  }
  func.func @transform_4(%arg0: i32) -> (i32, i32) {
    %c0_i32 = arith.constant 0 : i32
    %c0_i32_0 = arith.constant 0 : i32
    %c0_i32_1 = arith.constant 0 : i32
    return %c0_i32, %c0_i32_0 : i32, i32
  }
  func.func @transform_5(%arg0: i32) -> (i32, i32) {
    %c0_i32 = arith.constant 0 : i32
    %c0_i32_0 = arith.constant 0 : i32
    %c0_i32_1 = arith.constant 0 : i32
    return %c0_i32, %c0_i32_0 : i32, i32
  }
  func.func @transform_6(%arg0: i32) -> (i32, i32) {
    %c0_i32 = arith.constant 0 : i32
    %c0_i32_0 = arith.constant 0 : i32
    %c0_i32_1 = arith.constant 0 : i32
    return %c0_i32, %c0_i32_0 : i32, i32
  }
  func.func @transform_7(%arg0: i32) -> (i32, i32) {
    %c0_i32 = arith.constant 0 : i32
    %c0_i32_0 = arith.constant 0 : i32
    %c0_i32_1 = arith.constant 0 : i32
    return %c0_i32, %c0_i32_0 : i32, i32
  }
  func.func @transform_8(%arg0: i32) -> (i32, i32) {
    %c0_i32 = arith.constant 0 : i32
    %c0_i32_0 = arith.constant 0 : i32
    %c0_i32_1 = arith.constant 0 : i32
    return %c0_i32, %c0_i32_0 : i32, i32
  }
  func.func @transform_9(%arg0: i32) -> (i32, i32) {
    %c0_i32 = arith.constant 0 : i32
    %c0_i32_0 = arith.constant 0 : i32
    %c0_i32_1 = arith.constant 0 : i32
    return %c0_i32, %c0_i32_0 : i32, i32
  }
  func.func @transform_10(%arg0: i32) -> (i32, i32) {
    %c0_i32 = arith.constant 0 : i32
    %c0_i32_0 = arith.constant 0 : i32
    %c0_i32_1 = arith.constant 0 : i32
    return %c0_i32, %c0_i32_0 : i32, i32
  }
  func.func @transform_11(%arg0: i32) -> (i32, i32) {
    %c0_i32 = arith.constant 0 : i32
    %c0_i32_0 = arith.constant 0 : i32
    %c0_i32_1 = arith.constant 0 : i32
    return %c0_i32, %c0_i32_0 : i32, i32
  }
  func.func @transform_12(%arg0: i32) -> (i32, i32) {
    %c0_i32 = arith.constant 0 : i32
    %c0_i32_0 = arith.constant 0 : i32
    %c0_i32_1 = arith.constant 0 : i32
    return %c0_i32, %c0_i32_0 : i32, i32
  }
  func.func @transform_13(%arg0: i32) -> (i32, i32) {
    %c0_i32 = arith.constant 0 : i32
    %c0_i32_0 = arith.constant 0 : i32
    %c0_i32_1 = arith.constant 0 : i32
    return %c0_i32, %c0_i32_0 : i32, i32
  }
  func.func @transform_14(%arg0: i32) -> (i32, i32) {
    %c0_i32 = arith.constant 0 : i32
    %c0_i32_0 = arith.constant 0 : i32
    return %arg0, %c0_i32 : i32, i32
  }
}

</mosaic_0001>

<llo_original>
// kernel: tpu_custom_call.1
$region0: #{tpu_custom_call.1}
  #allocation0 [shape = 'u32[]', space=smem, size = 0x4, offset = 0x4, fixed_abs, tag = 'smem constant byte address 0x4 - core index']
  #allocation1 [shape = 'u32[144,128]{1,0:T(1,128)}', space=vmem, size = 0x12000, scoped, tag = 'internal scratch']
  %s0 = inlined_call_operand.hbm [shape: bf16[16,32], index: 0, kind: input, shape index: {}]
  %s1 = inlined_call_operand.hbm [shape: bf16[32,128], index: 1, kind: input, shape index: {}]
  %s2 = inlined_call_operand.hbm [shape: f32[1,128], index: 2, kind: input, shape index: {}]
  %s3 = inlined_call_operand.hbm [shape: bf16[128,256], index: 3, kind: input, shape index: {}]
  %s4 = inlined_call_operand.vmem [shape: f32[1,256], index: 4, kind: input, shape index: {}]
  %s5 = inlined_call_operand.hbm [shape: f32[1,256], index: 5, kind: input, shape index: {}]
  %s6 = inlined_call_operand.hbm [shape: bf16[256,512], index: 6, kind: input, shape index: {}]
  %s7 = inlined_call_operand.vmem [shape: f32[1,512], index: 7, kind: input, shape index: {}]
  %s8 = inlined_call_operand.vmem [shape: f32[1,512], index: 8, kind: input, shape index: {}]
  %s9 = inlined_call_operand.hbm [shape: bf16[512,1024], index: 9, kind: input, shape index: {}]
  %s10 = inlined_call_operand.vmem [shape: f32[1,1024], index: 10, kind: input, shape index: {}]
  %s11 = inlined_call_operand.vmem [shape: f32[1,1024], index: 11, kind: input, shape index: {}]
  %s12 = inlined_call_operand.hbm [shape: bf16[1024,256], index: 12, kind: input, shape index: {}]
  %s13 = inlined_call_operand.vmem [shape: f32[1,256], index: 13, kind: input, shape index: {}]
  %s14 = inlined_call_operand.hbm [shape: f32[16,256], index: 14, kind: output, shape index: {}]
  %s15 = sld [smem:[#allocation0]]
  $region98: #{tpu_custom_call.1} parent=0
    _
  %s17 = ssub.s32 1, %s15
  %s18 = scalar_select 0, %s17, %s15
  $region1: #{tpu_custom_call.1} parent=0
    #allocation2 [shape = 'u8[4096]{0}', space=vmem, size = 0x1000, scoped, tag = 'input window, operand 0, single buffered']
    #allocation3 [shape = 's32[1]{0}', space=sflag, size = 0x4, scoped, tag = 'scoped memory for tpu_custom_call.1']
    #allocation4 [shape = 's32[1]{0}', space=sflag, size = 0x4, scoped, tag = 'scoped memory for tpu_custom_call.1']
    #allocation5 [shape = 'u8[8192]{0}', space=vmem, size = 0x2000, scoped, tag = 'input window, operand 1, single buffered']
    #allocation6 [shape = 's32[1]{0}', space=sflag, size = 0x4, scoped, tag = 'scoped memory for tpu_custom_call.1']
    #allocation7 [shape = 'u8[512]{0}', space=vmem, size = 0x400, scoped, tag = 'input window, operand 2, single buffered']
    #allocation8 [shape = 'u8[65536]{0}', space=vmem, size = 0x10000, scoped, tag = 'input window, operand 3, single buffered']
    #allocation9 [shape = 's32[1]{0}', space=sflag, size = 0x4, scoped, tag = 'scoped memory for tpu_custom_call.1']
    #allocation10 [shape = 'u8[1024]{0}', space=vmem, size = 0x400, scoped, tag = 'input window, operand 5, single buffered']
    #allocation11 [shape = 'u8[262144]{0}', space=vmem, size = 0x40000, scoped, tag = 'input window, operand 6, single buffered']
    #allocation12 [shape = 's32[1]{0}', space=sflag, size = 0x4, scoped, tag = 'scoped memory for tpu_custom_call.1']
    #allocation13 [shape = 'u8[1048576]{0}', space=vmem, size = 0x100000, scoped, tag = 'input window, operand 9, single buffered']
    #allocation14 [shape = 'u8[524288]{0}', space=vmem, size = 0x80000, scoped, tag = 'input window, operand 12, single buffered']
    #allocation15 [shape = 's32[1]{0}', space=sflag, size = 0x4, scoped, tag = 'scoped memory for tpu_custom_call.1']
    #allocation16 [shape = 'u8[16384]{0}', space=vmem, size = 0x4000, scoped, tag = 'output window, operand 0, single buffered']
    %19 = vsyncpa [#allocation3], 0
    %20 = vsyncpa [#allocation6], 0
    %21 = vsyncpa [#allocation9], 0
    %22 = vsyncpa [#allocation12], 0
    %23 = vsyncpa [#allocation15], 0
    %24 = vsyncpa [#allocation4], 0
    // Predicated region
    $region2: #{tpu_custom_call.1} parent=1 // pred_check
      _
    $region3: #{tpu_custom_call.1} parent=1 // pred_check_branch
      %26 = sbr.rel (0) target = $region5
    $region4: #{tpu_custom_call.1} parent=1 // pred_region
      %s28 = ssub.s32 128, 128
      %29 = vsyncadd [#allocation3], %s28
      %s30 = sshll.u32 [#allocation2], 4
      %s31 = int_to_ptr.vmem [resolvable:$true] %s30
      %36 = dma.hbm_to_vmem [thread:$0]  %s0, 128, %s31, [#allocation3], 64, 64, 4
    $region5: #{tpu_custom_call.1} parent=1 // pred_fallthru
      _
    // Predicated region
    $region6: #{tpu_custom_call.1} parent=1 // pred_check
      _
    $region7: #{tpu_custom_call.1} parent=1 // pred_check_branch
      %38 = sbr.rel (0) target = $region9
    $region8: #{tpu_custom_call.1} parent=1 // pred_region
      %s40 = ssub.s32 256, 256
      %41 = vsyncadd [#allocation6], %s40
      %s42 = sshll.u32 [#allocation5], 4
      %s43 = int_to_ptr.vmem [resolvable:$true] %s42
      %48 = dma.hbm_to_vmem [thread:$0]  %s1, 256, %s43, [#allocation6], 64, 64, 4
    $region9: #{tpu_custom_call.1} parent=1 // pred_fallthru
      _
    // Predicated region
    $region10: #{tpu_custom_call.1} parent=1 // pred_check
      _
    $region11: #{tpu_custom_call.1} parent=1 // pred_check_branch
      %50 = sbr.rel (0) target = $region13
    $region12: #{tpu_custom_call.1} parent=1 // pred_region
      %s52 = ssub.s32 16, 16
      %53 = vsyncadd [#allocation6], %s52
      %s55 = sshll.u32 [#allocation7], 4
      %s56 = int_to_ptr.vmem [resolvable:$true] %s55
      %58 = dma.hbm_to_vmem [thread:$0]  %s2, 16, %s56, [#allocation6]
    $region13: #{tpu_custom_call.1} parent=1 // pred_fallthru
      _
    // Predicated region
    $region14: #{tpu_custom_call.1} parent=1 // pred_check
      _
    $region15: #{tpu_custom_call.1} parent=1 // pred_check_branch
      %60 = sbr.rel (0) target = $region17
    $region16: #{tpu_custom_call.1} parent=1 // pred_region
      %s62 = ssub.s32 2048, 2048
      %63 = vsyncadd [#allocation9], %s62
      %s64 = sshll.u32 [#allocation8], 4
      %s65 = int_to_ptr.vmem [resolvable:$true] %s64
      %70 = dma.hbm_to_vmem [thread:$0]  %s3, 2048, %s65, [#allocation9], 128, 128, 8
    $region17: #{tpu_custom_call.1} parent=1 // pred_fallthru
      _
    // Predicated region
    $region18: #{tpu_custom_call.1} parent=1 // pred_check
      _
    $region19: #{tpu_custom_call.1} parent=1 // pred_check_branch
      %72 = sbr.rel (0) target = $region21
    $region20: #{tpu_custom_call.1} parent=1 // pred_region
      _
    $region21: #{tpu_custom_call.1} parent=1 // pred_fallthru
      _
    // Predicated region
    $region22: #{tpu_custom_call.1} parent=1 // pred_check
      _
    $region23: #{tpu_custom_call.1} parent=1 // pred_check_branch
      %74 = sbr.rel (0) target = $region25
    $region24: #{tpu_custom_call.1} parent=1 // pred_region
      %s76 = ssub.s32 32, 32
      %77 = vsyncadd [#allocation9], %s76
      %s79 = sshll.u32 [#allocation10], 4
      %s80 = int_to_ptr.vmem [resolvable:$true] %s79
      %82 = dma.hbm_to_vmem [thread:$0]  %s5, 32, %s80, [#allocation9]
    $region25: #{tpu_custom_call.1} parent=1 // pred_fallthru
      _
    // Predicated region
    $region26: #{tpu_custom_call.1} parent=1 // pred_check
      _
    $region27: #{tpu_custom_call.1} parent=1 // pred_check_branch
      %84 = sbr.rel (0) target = $region29
    $region28: #{tpu_custom_call.1} parent=1 // pred_region
      %s86 = ssub.s32 8192, 8192
      %87 = vsyncadd [#allocation12], %s86
      %s88 = sshll.u32 [#allocation11], 4
      %s89 = int_to_ptr.vmem [resolvable:$true] %s88
      %94 = dma.hbm_to_vmem [thread:$0]  %s6, 8192, %s89, [#allocation12], 256, 256, 16
    $region29: #{tpu_custom_call.1} parent=1 // pred_fallthru
      _
    // Predicated region
    $region30: #{tpu_custom_call.1} parent=1 // pred_check
      _
    $region31: #{tpu_custom_call.1} parent=1 // pred_check_branch
      %96 = sbr.rel (0) target = $region33
    $region32: #{tpu_custom_call.1} parent=1 // pred_region
      _
    $region33: #{tpu_custom_call.1} parent=1 // pred_fallthru
      _
    // Predicated region
    $region34: #{tpu_custom_call.1} parent=1 // pred_check
      _
    $region35: #{tpu_custom_call.1} parent=1 // pred_check_branch
      %98 = sbr.rel (0) target = $region37
    $region36: #{tpu_custom_call.1} parent=1 // pred_region
      _
    $region37: #{tpu_custom_call.1} parent=1 // pred_fallthru
      _
    // Predicated region
    $region38: #{tpu_custom_call.1} parent=1 // pred_check
      _
    $region39: #{tpu_custom_call.1} parent=1 // pred_check_branch
      %100 = sbr.rel (0) target = $region41
    $region40: #{tpu_custom_call.1} parent=1 // pred_region
      %s102 = ssub.s32 32768, 32768
      %103 = vsyncadd [#allocation12], %s102
      %s104 = sshll.u32 [#allocation13], 4
      %s105 = int_to_ptr.vmem [resolvable:$true] %s104
      %110 = dma.hbm_to_vmem [thread:$0]  %s9, 32768, %s105, [#allocation12], 512, 512, 32
    $region41: #{tpu_custom_call.1} parent=1 // pred_fallthru
      _
    // Predicated region
    $region42: #{tpu_custom_call.1} parent=1 // pred_check
      _
    $region43: #{tpu_custom_call.1} parent=1 // pred_check_branch
      %112 = sbr.rel (0) target = $region45
    $region44: #{tpu_custom_call.1} parent=1 // pred_region
      _
    $region45: #{tpu_custom_call.1} parent=1 // pred_fallthru
      _
    // Predicated region
    $region46: #{tpu_custom_call.1} parent=1 // pred_check
      _
    $region47: #{tpu_custom_call.1} parent=1 // pred_check_branch
      %114 = sbr.rel (0) target = $region49
    $region48: #{tpu_custom_call.1} parent=1 // pred_region
      _
    $region49: #{tpu_custom_call.1} parent=1 // pred_fallthru
      _
    // Predicated region
    $region50: #{tpu_custom_call.1} parent=1 // pred_check
      _
    $region51: #{tpu_custom_call.1} parent=1 // pred_check_branch
      %116 = sbr.rel (0) target = $region53
    $region52: #{tpu_custom_call.1} parent=1 // pred_region
      %s118 = ssub.s32 16384, 16384
      %119 = vsyncadd [#allocation15], %s118
      %s120 = sshll.u32 [#allocation14], 4
      %s121 = int_to_ptr.vmem [resolvable:$true] %s120
      %126 = dma.hbm_to_vmem [thread:$0]  %s12, 16384, %s121, [#allocation15], 128, 128, 8
    $region53: #{tpu_custom_call.1} parent=1 // pred_fallthru
      _
    // Predicated region
    $region54: #{tpu_custom_call.1} parent=1 // pred_check
      _
    $region55: #{tpu_custom_call.1} parent=1 // pred_check_branch
      %128 = sbr.rel (0) target = $region57
    $region56: #{tpu_custom_call.1} parent=1 // pred_region
      _
    $region57: #{tpu_custom_call.1} parent=1 // pred_fallthru
      _
    // Predicated region
    $region58: #{tpu_custom_call.1} parent=1 // pred_check
      _
    $region59: #{tpu_custom_call.1} parent=1 // pred_check_branch
      %130 = sbr.rel (0) target = $region61
    $region60: #{tpu_custom_call.1} parent=1 // pred_region
      %131 = dma.done [#allocation3], 128
    $region61: #{tpu_custom_call.1} parent=1 // pred_fallthru
      _
    // Predicated region
    $region62: #{tpu_custom_call.1} parent=1 // pred_check
      _
    $region63: #{tpu_custom_call.1} parent=1 // pred_check_branch
      %133 = sbr.rel (0) target = $region65
    $region64: #{tpu_custom_call.1} parent=1 // pred_region
      %134 = dma.done [#allocation6], 256
    $region65: #{tpu_custom_call.1} parent=1 // pred_fallthru
      _
    // Predicated region
    $region66: #{tpu_custom_call.1} parent=1 // pred_check
      _
    $region67: #{tpu_custom_call.1} parent=1 // pred_check_branch
      %136 = sbr.rel (0) target = $region69
    $region68: #{tpu_custom_call.1} parent=1 // pred_region
      %137 = dma.done [#allocation6], 16
    $region69: #{tpu_custom_call.1} parent=1 // pred_fallthru
      _
    // Predicated region
    $region70: #{tpu_custom_call.1} parent=1 // pred_check
      _
    $region71: #{tpu_custom_call.1} parent=1 // pred_check_branch
      %139 = sbr.rel (0) target = $region73
    $region72: #{tpu_custom_call.1} parent=1 // pred_region
      %140 = dma.done [#allocation9], 2048
    $region73: #{tpu_custom_call.1} parent=1 // pred_fallthru
      _
    // Predicated region
    $region74: #{tpu_custom_call.1} parent=1 // pred_check
      _
    $region75: #{tpu_custom_call.1} parent=1 // pred_check_branch
      %142 = sbr.rel (0) target = $region77
    $region76: #{tpu_custom_call.1} parent=1 // pred_region
      %143 = dma.done [#allocation9], 32
    $region77: #{tpu_custom_call.1} parent=1 // pred_fallthru
      _
    // Predicated region
    $region78: #{tpu_custom_call.1} parent=1 // pred_check
      _
    $region79: #{tpu_custom_call.1} parent=1 // pred_check_branch
      %145 = sbr.rel (0) target = $region81
    $region80: #{tpu_custom_call.1} parent=1 // pred_region
      %146 = dma.done [#allocation12], 8192
    $region81: #{tpu_custom_call.1} parent=1 // pred_fallthru
      _
    // Predicated region
    $region82: #{tpu_custom_call.1} parent=1 // pred_check
      _
    $region83: #{tpu_custom_call.1} parent=1 // pred_check_branch
      %148 = sbr.rel (0) target = $region85
    $region84: #{tpu_custom_call.1} parent=1 // pred_region
      %149 = dma.done [#allocation12], 32768
    $region85: #{tpu_custom_call.1} parent=1 // pred_fallthru
      _
    // Predicated region
    $region86: #{tpu_custom_call.1} parent=1 // pred_check
      _
    $region87: #{tpu_custom_call.1} parent=1 // pred_check_branch
      %151 = sbr.rel (0) target = $region89
    $region88: #{tpu_custom_call.1} parent=1 // pred_region
      %152 = dma.done [#allocation15], 16384
    $region89: #{tpu_custom_call.1} parent=1 // pred_fallthru
      _
    %v154 = vld [vmem:[#allocation2] sm:$0xf]
    %v155 = vld [vmem:[#allocation2 + $0x4] sm:$0xf]
    %v156 = vld [vmem:[#allocation5] sm:$0xf]
    %v157 = vld [vmem:[#allocation5 + $0x4] sm:$0xf]
    %v158 = vld [vmem:[#allocation5 + $0x8] sm:$0xf]
    %v159 = vld [vmem:[#allocation5 + $0xc] sm:$0xf]
    %v160 = vld [vmem:[#allocation7] sm:$0x1]
    %v162 = vlaneseq
    %v163 = vshrl.u32 %v162, 7
    %v164 = vsub.s32 0, %v163
    %v165 = vrot.slane %v160, %v164
    %v169 = vunpack.c.l.b16 %v154
    %v170 = vunpack.c.l.b16 %v155
    %v171 = vpack.c.b16 %v170, %v169
    %v176 = vunpack.c.l.b16 %v156
    %v177 = vunpack.c.l.b16 %v157
    %v178 = vunpack.c.l.b16 %v158
    %v179 = vunpack.c.l.b16 %v159
    %v180 = vpack.c.b16 %v177, %v176
    %v181 = vpack.c.b16 %v179, %v178
    %vm184 = vcmask 261120
    %v186 = vsel %vm184, %v171, 0
    %188 = vmatprep.subr.bf16.mxu0 0
    %189 = vmatpush1.bf16.msra.mxu0 %v180
    %190 = vmatprep.subr.bf16.mxu0 0
    %191 = vmatpush1.bf16.msra.mxu0 %v181
    %192 = vmatprep.subr.bf16.mxu0 0
    %193 = vmatpush1.bf16.msra.mxu0 0
    %194 = vmatprep.subr.bf16.mxu0 0
    %195 = vmatpush1.bf16.msra.mxu0 0
    %196 = vmatprep.subr.bf16.mxu0 0
    %197 = vmatpush1.bf16.msra.mxu0 0
    %198 = vmatprep.subr.bf16.mxu0 0
    %199 = vmatpush1.bf16.msra.mxu0 0
    %200 = vmatprep.subr.bf16.mxu0 0
    %201 = vmatpush1.bf16.msra.mxu0 0
    %202 = vmatprep.subr.bf16.mxu0 0
    %203 = vmatpush1.bf16.msra.mxu0 0
    %204 = vmatprep.subr.bf16.mxu0 0
    %205 = vmatpush1.bf16.msra.mxu0 0
    %206 = vmatprep.subr.bf16.mxu0 0
    %207 = vmatpush1.bf16.msra.mxu0 0
    %208 = vmatprep.subr.bf16.mxu0 0
    %209 = vmatpush1.bf16.msra.mxu0 0
    %210 = vmatprep.subr.bf16.mxu0 0
    %211 = vmatpush1.bf16.msra.mxu0 0
    %212 = vmatprep.subr.bf16.mxu0 0
    %213 = vmatpush1.bf16.msra.mxu0 0
    %214 = vmatprep.subr.bf16.mxu0 0
    %215 = vmatpush1.bf16.msra.mxu0 0
    %216 = vmatprep.subr.bf16.mxu0 0
    %217 = vmatpush1.bf16.msra.mxu0 0
    %218 = vmatprep.subr.bf16.mxu0 0
    %219 = vmatpush1.bf16.msra.mxu0 0
    %220 = vmatprep.mubr.bf16.mxu0 0
    %221 = vmatmul.mubr.bf16.gmra.mrb[0].mxu0 %v186
    %v222 = vpop.f32.mrb[0].mxu0
    %v223 = vadd.f32 %v165, %v222
    %v224 = vpop.f32.mrb[0].mxu0
    %v225 = vpop.f32.mrb[0].mxu0
    %v226 = vadd.f32 %v165, %v225
    %v227 = vpop.f32.mrb[0].mxu0
    %228 = vdwg.mxu0
    %vm229 = vcmp.gt.f32.partialorder %v223, 0.0
    %vm230 = vcmp.gt.f32.partialorder %v226, 0.0
    %v231 = vmul.f32 %v223, 0.2
    %v232 = vmul.f32 %v226, 0.2
    %v233 = vsel %vm229, %v223, %v231
    %v234 = vsel %vm230, %v226, %v232
    %v235 = vpack.c.bf16 %v234, %v233
    %v236 = vld [vmem:[#allocation8] sm:$0xff]
    %v237 = vld [vmem:[#allocation8 + $0x8] sm:$0xff]
    %v238 = vld [vmem:[#allocation8 + $0x10] sm:$0xff]
    %v239 = vld [vmem:[#allocation8 + $0x18] sm:$0xff]
    %v240 = vld [vmem:[#allocation8 + $0x20] sm:$0xff]
    %v241 = vld [vmem:[#allocation8 + $0x28] sm:$0xff]
    %v242 = vld [vmem:[#allocation8 + $0x30] sm:$0xff]
    %v243 = vld [vmem:[#allocation8 + $0x38] sm:$0xff]
    %v244 = vld [vmem:[#allocation8 + $0x40] sm:$0xff]
    %v245 = vld [vmem:[#allocation8 + $0x48] sm:$0xff]
    %v246 = vld [vmem:[#allocation8 + $0x50] sm:$0xff]
    %v247 = vld [vmem:[#allocation8 + $0x58] sm:$0xff]
    %v248 = vld [vmem:[#allocation8 + $0x60] sm:$0xff]
    %v249 = vld [vmem:[#allocation8 + $0x68] sm:$0xff]
    %v250 = vld [vmem:[#allocation8 + $0x70] sm:$0xff]
    %v251 = vld [vmem:[#allocation8 + $0x78] sm:$0xff]
    %v268 = vunpack.c.l.b16 %v236
    %v269 = vunpack.c.h.b16 %v236
    %v270 = vunpack.c.l.b16 %v237
    %v271 = vunpack.c.h.b16 %v237
    %v272 = vunpack.c.l.b16 %v238
    %v273 = vunpack.c.h.b16 %v238
    %v274 = vunpack.c.l.b16 %v239
    %v275 = vunpack.c.h.b16 %v239
    %v276 = vunpack.c.l.b16 %v240
    %v277 = vunpack.c.h.b16 %v240
    %v278 = vunpack.c.l.b16 %v241
    %v279 = vunpack.c.h.b16 %v241
    %v280 = vunpack.c.l.b16 %v242
    %v281 = vunpack.c.h.b16 %v242
    %v282 = vunpack.c.l.b16 %v243
    %v283 = vunpack.c.h.b16 %v243
    %v284 = vunpack.c.l.b16 %v244
    %v285 = vunpack.c.h.b16 %v244
    %v286 = vunpack.c.l.b16 %v245
    %v287 = vunpack.c.h.b16 %v245
    %v288 = vunpack.c.l.b16 %v246
    %v289 = vunpack.c.h.b16 %v246
    %v290 = vunpack.c.l.b16 %v247
    %v291 = vunpack.c.h.b16 %v247
    %v292 = vunpack.c.l.b16 %v248
    %v293 = vunpack.c.h.b16 %v248
    %v294 = vunpack.c.l.b16 %v249
    %v295 = vunpack.c.h.b16 %v249
    %v296 = vunpack.c.l.b16 %v250
    %v297 = vunpack.c.h.b16 %v250
    %v298 = vunpack.c.l.b16 %v251
    %v299 = vunpack.c.h.b16 %v251
    %v300 = vpack.c.b16 %v270, %v268
    %v301 = vpack.c.b16 %v271, %v269
    %v302 = vpack.c.b16 %v274, %v272
    %v303 = vpack.c.b16 %v275, %v273
    %v304 = vpack.c.b16 %v278, %v276
    %v305 = vpack.c.b16 %v279, %v277
    %v306 = vpack.c.b16 %v282, %v280
    %v307 = vpack.c.b16 %v283, %v281
    %v308 = vpack.c.b16 %v286, %v284
    %v309 = vpack.c.b16 %v287, %v285
    %v310 = vpack.c.b16 %v290, %v288
    %v311 = vpack.c.b16 %v291, %v289
    %v312 = vpack.c.b16 %v294, %v292
    %v313 = vpack.c.b16 %v295, %v293
    %v314 = vpack.c.b16 %v298, %v296
    %v315 = vpack.c.b16 %v299, %v297
    %332 = vmatprep.subr.bf16.mxu0 %v301
    %333 = vmatpush1.bf16.msra.mxu0 %v300
    %334 = vmatprep.subr.bf16.mxu0 %v303
    %335 = vmatpush1.bf16.msra.mxu0 %v302
    %336 = vmatprep.subr.bf16.mxu0 %v305
    %337 = vmatpush1.bf16.msra.mxu0 %v304
    %338 = vmatprep.subr.bf16.mxu0 %v307
    %339 = vmatpush1.bf16.msra.mxu0 %v306
    %340 = vmatprep.subr.bf16.mxu0 %v309
    %341 = vmatpush1.bf16.msra.mxu0 %v308
    %342 = vmatprep.subr.bf16.mxu0 %v311
    %343 = vmatpush1.bf16.msra.mxu0 %v310
    %344 = vmatprep.subr.bf16.mxu0 %v313
    %345 = vmatpush1.bf16.msra.mxu0 %v312
    %346 = vmatprep.subr.bf16.mxu0 %v315
    %347 = vmatpush1.bf16.msra.mxu0 %v314
    %348 = vmatprep.subr.bf16.mxu0 0
    %349 = vmatpush1.bf16.msra.mxu0 0
    %350 = vmatprep.subr.bf16.mxu0 0
    %351 = vmatpush1.bf16.msra.mxu0 0
    %352 = vmatprep.subr.bf16.mxu0 0
    %353 = vmatpush1.bf16.msra.mxu0 0
    %354 = vmatprep.subr.bf16.mxu0 0
    %355 = vmatpush1.bf16.msra.mxu0 0
    %356 = vmatprep.subr.bf16.mxu0 0
    %357 = vmatpush1.bf16.msra.mxu0 0
    %358 = vmatprep.subr.bf16.mxu0 0
    %359 = vmatpush1.bf16.msra.mxu0 0
    %360 = vmatprep.subr.bf16.mxu0 0
    %361 = vmatpush1.bf16.msra.mxu0 0
    %362 = vmatprep.subr.bf16.mxu0 0
    %363 = vmatpush1.bf16.msra.mxu0 0
    %364 = vmatprep.mubr.bf16.mxu0 0
    %365 = vmatmul.mubr.bf16.gmra.mrb[0].mxu0 %v235
    %v366 = vpop.f32.mrb[0].mxu0
    %v367 = vadd.f32 0.0, %v366
    %v368 = vpop.f32.mrb[0].mxu0
    %v369 = vadd.f32 0.0, %v368
    %v370 = vpop.f32.mrb[0].mxu0
    %v371 = vadd.f32 0.0, %v370
    %v372 = vpop.f32.mrb[0].mxu0
    %v373 = vadd.f32 0.0, %v372
    %374 = vdwg.mxu0
    %v375 = vld [vmem:[%s4] sm:$0x3]
    %v377 = vlaneseq
    %v378 = vshrl.u32 %v377, 7
    %v379 = vsub.s32 0, %v378
    %v380 = vrot.slane %v375, %v379
    %v381 = vlaneseq
    %v382 = vshrl.u32 %v381, 7
    %v383 = vsub.s32 1, %v382
    %v384 = vrot.slane %v375, %v383
    %v387 = vmul.f32 %v367, %v380
    %v388 = vmul.f32 %v369, %v384
    %v389 = vmul.f32 %v371, %v380
    %v390 = vmul.f32 %v373, %v384
    %v391 = vld [vmem:[#allocation10] sm:$0x3]
    %v393 = vlaneseq
    %v394 = vshrl.u32 %v393, 7
    %v395 = vsub.s32 0, %v394
    %v396 = vrot.slane %v391, %v395
    %v397 = vlaneseq
    %v398 = vshrl.u32 %v397, 7
    %v399 = vsub.s32 1, %v398
    %v400 = vrot.slane %v391, %v399
    %v403 = vadd.f32 %v387, %v396
    %v404 = vadd.f32 %v388, %v400
    %v405 = vadd.f32 %v389, %v396
    %v406 = vadd.f32 %v390, %v400
    %vm407 = vcmp.gt.f32.partialorder %v403, 0.0
    %vm408 = vcmp.gt.f32.partialorder %v404, 0.0
    %vm409 = vcmp.gt.f32.partialorder %v405, 0.0
    %vm410 = vcmp.gt.f32.partialorder %v406, 0.0
    %v411 = vmul.f32 %v403, 0.2
    %v412 = vmul.f32 %v404, 0.2
    %v413 = vmul.f32 %v405, 0.2
    %v414 = vmul.f32 %v406, 0.2
    %v415 = vsel %vm407, %v403, %v411
    %v416 = vsel %vm408, %v404, %v412
    %v417 = vsel %vm409, %v405, %v413
    %v418 = vsel %vm410, %v406, %v414
    %v419 = vpack.c.bf16 %v417, %v415
    %v420 = vpack.c.bf16 %v418, %v416
    %v421 = vld [vmem:[#allocation11] sm:$0xff]
    %v422 = vld [vmem:[#allocation11 + $0x8] sm:$0xff]
    %v423 = vld [vmem:[#allocation11 + $0x10] sm:$0xff]
    %v424 = vld [vmem:[#allocation11 + $0x18] sm:$0xff]
    %v425 = vld [vmem:[#allocation11 + $0x20] sm:$0xff]
    %v426 = vld [vmem:[#allocation11 + $0x28] sm:$0xff]
    %v427 = vld [vmem:[#allocation11 + $0x30] sm:$0xff]
    %v428 = vld [vmem:[#allocation11 + $0x38] sm:$0xff]
    %v429 = vld [vmem:[#allocation11 + $0x40] sm:$0xff]
    %v430 = vld [vmem:[#allocation11 + $0x48] sm:$0xff]
    %v431 = vld [vmem:[#allocation11 + $0x50] sm:$0xff]
    %v432 = vld [vmem:[#allocation11 + $0x58] sm:$0xff]
    %v433 = vld [vmem:[#allocation11 + $0x60] sm:$0xff]
    %v434 = vld [vmem:[#allocation11 + $0x68] sm:$0xff]
    %v435 = vld [vmem:[#allocation11 + $0x70] sm:$0xff]
    %v436 = vld [vmem:[#allocation11 + $0x78] sm:$0xff]
    %v437 = vld [vmem:[#allocation11 + $0x80] sm:$0xff]
    %v438 = vld [vmem:[#allocation11 + $0x88] sm:$0xff]
    %v439 = vld [vmem:[#allocation11 + $0x90] sm:$0xff]
    %v440 = vld [vmem:[#allocation11 + $0x98] sm:$0xff]
    %v441 = vld [vmem:[#allocation11 + $0xa0] sm:$0xff]
    %v442 = vld [vmem:[#allocation11 + $0xa8] sm:$0xff]
    %v443 = vld [vmem:[#allocation11 + $0xb0] sm:$0xff]
    %v444 = vld [vmem:[#allocation11 + $0xb8] sm:$0xff]
    %v445 = vld [vmem:[#allocation11 + $0xc0] sm:$0xff]
    %v446 = vld [vmem:[#allocation11 + $0xc8] sm:$0xff]
    %v447 = vld [vmem:[#allocation11 + $0xd0] sm:$0xff]
    %v448 = vld [vmem:[#allocation11 + $0xd8] sm:$0xff]
    %v449 = vld [vmem:[#allocation11 + $0xe0] sm:$0xff]
    %v450 = vld [vmem:[#allocation11 + $0xe8] sm:$0xff]
    %v451 = vld [vmem:[#allocation11 + $0xf0] sm:$0xff]
    %v452 = vld [vmem:[#allocation11 + $0xf8] sm:$0xff]
    %v453 = vld [vmem:[#allocation11 + $0x100] sm:$0xff]
    %v454 = vld [vmem:[#allocation11 + $0x108] sm:$0xff]
    %v455 = vld [vmem:[#allocation11 + $0x110] sm:$0xff]
    %v456 = vld [vmem:[#allocation11 + $0x118] sm:$0xff]
    %v457 = vld [vmem:[#allocation11 + $0x120] sm:$0xff]
    %v458 = vld [vmem:[#allocation11 + $0x128] sm:$0xff]
    %v459 = vld [vmem:[#allocation11 + $0x130] sm:$0xff]
    %v460 = vld [vmem:[#allocation11 + $0x138] sm:$0xff]
    %v461 = vld [vmem:[#allocation11 + $0x140] sm:$0xff]
    %v462 = vld [vmem:[#allocation11 + $0x148] sm:$0xff]
    %v463 = vld [vmem:[#allocation11 + $0x150] sm:$0xff]
    %v464 = vld [vmem:[#allocation11 + $0x158] sm:$0xff]
    %v465 = vld [vmem:[#allocation11 + $0x160] sm:$0xff]
    %v466 = vld [vmem:[#allocation11 + $0x168] sm:$0xff]
    %v467 = vld [vmem:[#allocation11 + $0x170] sm:$0xff]
    %v468 = vld [vmem:[#allocation11 + $0x178] sm:$0xff]
    %v469 = vld [vmem:[#allocation11 + $0x180] sm:$0xff]
    %v470 = vld [vmem:[#allocation11 + $0x188] sm:$0xff]
    %v471 = vld [vmem:[#allocation11 + $0x190] sm:$0xff]
    %v472 = vld [vmem:[#allocation11 + $0x198] sm:$0xff]
    %v473 = vld [vmem:[#allocation11 + $0x1a0] sm:$0xff]
    %v474 = vld [vmem:[#allocation11 + $0x1a8] sm:$0xff]
    %v475 = vld [vmem:[#allocation11 + $0x1b0] sm:$0xff]
    %v476 = vld [vmem:[#allocation11 + $0x1b8] sm:$0xff]
    %v477 = vld [vmem:[#allocation11 + $0x1c0] sm:$0xff]
    %v478 = vld [vmem:[#allocation11 + $0x1c8] sm:$0xff]
    %v479 = vld [vmem:[#allocation11 + $0x1d0] sm:$0xff]
    %v480 = vld [vmem:[#allocation11 + $0x1d8] sm:$0xff]
    %v481 = vld [vmem:[#allocation11 + $0x1e0] sm:$0xff]
    %v482 = vld [vmem:[#allocation11 + $0x1e8] sm:$0xff]
    %v483 = vld [vmem:[#allocation11 + $0x1f0] sm:$0xff]
    %v484 = vld [vmem:[#allocation11 + $0x1f8] sm:$0xff]
    %v549 = vunpack.c.l.b16 %v421
    %v550 = vunpack.c.h.b16 %v421
    %v551 = vunpack.c.l.b16 %v422
    %v552 = vunpack.c.h.b16 %v422
    %v553 = vunpack.c.l.b16 %v423
    %v554 = vunpack.c.h.b16 %v423
    %v555 = vunpack.c.l.b16 %v424
    %v556 = vunpack.c.h.b16 %v424
    %v557 = vunpack.c.l.b16 %v425
    %v558 = vunpack.c.h.b16 %v425
    %v559 = vunpack.c.l.b16 %v426
    %v560 = vunpack.c.h.b16 %v426
    %v561 = vunpack.c.l.b16 %v427
    %v562 = vunpack.c.h.b16 %v427
    %v563 = vunpack.c.l.b16 %v428
    %v564 = vunpack.c.h.b16 %v428
    %v565 = vunpack.c.l.b16 %v429
    %v566 = vunpack.c.h.b16 %v429
    %v567 = vunpack.c.l.b16 %v430
    %v568 = vunpack.c.h.b16 %v430
    %v569 = vunpack.c.l.b16 %v431
    %v570 = vunpack.c.h.b16 %v431
    %v571 = vunpack.c.l.b16 %v432
    %v572 = vunpack.c.h.b16 %v432
    %v573 = vunpack.c.l.b16 %v433
    %v574 = vunpack.c.h.b16 %v433
    %v575 = vunpack.c.l.b16 %v434
    %v576 = vunpack.c.h.b16 %v434
    %v577 = vunpack.c.l.b16 %v435
    %v578 = vunpack.c.h.b16 %v435
    %v579 = vunpack.c.l.b16 %v436
    %v580 = vunpack.c.h.b16 %v436
    %v581 = vunpack.c.l.b16 %v437
    %v582 = vunpack.c.h.b16 %v437
    %v583 = vunpack.c.l.b16 %v438
    %v584 = vunpack.c.h.b16 %v438
    %v585 = vunpack.c.l.b16 %v439
    %v586 = vunpack.c.h.b16 %v439
    %v587 = vunpack.c.l.b16 %v440
    %v588 = vunpack.c.h.b16 %v440
    %v589 = vunpack.c.l.b16 %v441
    %v590 = vunpack.c.h.b16 %v441
    %v591 = vunpack.c.l.b16 %v442
    %v592 = vunpack.c.h.b16 %v442
    %v593 = vunpack.c.l.b16 %v443
    %v594 = vunpack.c.h.b16 %v443
    %v595 = vunpack.c.l.b16 %v444
    %v596 = vunpack.c.h.b16 %v444
    %v597 = vunpack.c.l.b16 %v445
    %v598 = vunpack.c.h.b16 %v445
    %v599 = vunpack.c.l.b16 %v446
    %v600 = vunpack.c.h.b16 %v446
    %v601 = vunpack.c.l.b16 %v447
    %v602 = vunpack.c.h.b16 %v447
    %v603 = vunpack.c.l.b16 %v448
    %v604 = vunpack.c.h.b16 %v448
    %v605 = vunpack.c.l.b16 %v449
    %v606 = vunpack.c.h.b16 %v449
    %v607 = vunpack.c.l.b16 %v450
    %v608 = vunpack.c.h.b16 %v450
    %v609 = vunpack.c.l.b16 %v451
    %v610 = vunpack.c.h.b16 %v451
    %v611 = vunpack.c.l.b16 %v452
    %v612 = vunpack.c.h.b16 %v452
    %v613 = vunpack.c.l.b16 %v453
    %v614 = vunpack.c.h.b16 %v453
    %v615 = vunpack.c.l.b16 %v454
    %v616 = vunpack.c.h.b16 %v454
    %v617 = vunpack.c.l.b16 %v455
    %v618 = vunpack.c.h.b16 %v455
    %v619 = vunpack.c.l.b16 %v456
    %v620 = vunpack.c.h.b16 %v456
    %v621 = vunpack.c.l.b16 %v457
    %v622 = vunpack.c.h.b16 %v457
    %v623 = vunpack.c.l.b16 %v458
    %v624 = vunpack.c.h.b16 %v458
    %v625 = vunpack.c.l.b16 %v459
    %v626 = vunpack.c.h.b16 %v459
    %v627 = vunpack.c.l.b16 %v460
    %v628 = vunpack.c.h.b16 %v460
    %v629 = vunpack.c.l.b16 %v461
    %v630 = vunpack.c.h.b16 %v461
    %v631 = vunpack.c.l.b16 %v462
    %v632 = vunpack.c.h.b16 %v462
    %v633 = vunpack.c.l.b16 %v463
    %v634 = vunpack.c.h.b16 %v463
    %v635 = vunpack.c.l.b16 %v464
    %v636 = vunpack.c.h.b16 %v464
    %v637 = vunpack.c.l.b16 %v465
    %v638 = vunpack.c.h.b16 %v465
    %v639 = vunpack.c.l.b16 %v466
    %v640 = vunpack.c.h.b16 %v466
    %v641 = vunpack.c.l.b16 %v467
    %v642 = vunpack.c.h.b16 %v467
    %v643 = vunpack.c.l.b16 %v468
    %v644 = vunpack.c.h.b16 %v468
    %v645 = vunpack.c.l.b16 %v469
    %v646 = vunpack.c.h.b16 %v469
    %v647 = vunpack.c.l.b16 %v470
    %v648 = vunpack.c.h.b16 %v470
    %v649 = vunpack.c.l.b16 %v471
    %v650 = vunpack.c.h.b16 %v471
    %v651 = vunpack.c.l.b16 %v472
    %v652 = vunpack.c.h.b16 %v472
    %v653 = vunpack.c.l.b16 %v473
    %v654 = vunpack.c.h.b16 %v473
    %v655 = vunpack.c.l.b16 %v474
    %v656 = vunpack.c.h.b16 %v474
    %v657 = vunpack.c.l.b16 %v475
    %v658 = vunpack.c.h.b16 %v475
    %v659 = vunpack.c.l.b16 %v476
    %v660 = vunpack.c.h.b16 %v476
    %v661 = vunpack.c.l.b16 %v477
    %v662 = vunpack.c.h.b16 %v477
    %v663 = vunpack.c.l.b16 %v478
    %v664 = vunpack.c.h.b16 %v478
    %v665 = vunpack.c.l.b16 %v479
    %v666 = vunpack.c.h.b16 %v479
    %v667 = vunpack.c.l.b16 %v480
    %v668 = vunpack.c.h.b16 %v480
    %v669 = vunpack.c.l.b16 %v481
    %v670 = vunpack.c.h.b16 %v481
    %v671 = vunpack.c.l.b16 %v482
    %v672 = vunpack.c.h.b16 %v482
    %v673 = vunpack.c.l.b16 %v483
    %v674 = vunpack.c.h.b16 %v483
    %v675 = vunpack.c.l.b16 %v484
    %v676 = vunpack.c.h.b16 %v484
    %v677 = vpack.c.b16 %v553, %v549
    %v678 = vpack.c.b16 %v554, %v550
    %v679 = vpack.c.b16 %v555, %v551
    %v680 = vpack.c.b16 %v556, %v552
    %v681 = vpack.c.b16 %v561, %v557
    %v682 = vpack.c.b16 %v562, %v558
    %v683 = vpack.c.b16 %v563, %v559
    %v684 = vpack.c.b16 %v564, %v560
    %v685 = vpack.c.b16 %v569, %v565
    %v686 = vpack.c.b16 %v570, %v566
    %v687 = vpack.c.b16 %v571, %v567
    %v688 = vpack.c.b16 %v572, %v568
    %v689 = vpack.c.b16 %v577, %v573
    %v690 = vpack.c.b16 %v578, %v574
    %v691 = vpack.c.b16 %v579, %v575
    %v692 = vpack.c.b16 %v580, %v576
    %v693 = vpack.c.b16 %v585, %v581
    %v694 = vpack.c.b16 %v586, %v582
    %v695 = vpack.c.b16 %v587, %v583
    %v696 = vpack.c.b16 %v588, %v584
    %v697 = vpack.c.b16 %v593, %v589
    %v698 = vpack.c.b16 %v594, %v590
    %v699 = vpack.c.b16 %v595, %v591
    %v700 = vpack.c.b16 %v596, %v592
    %v701 = vpack.c.b16 %v601, %v597
    %v702 = vpack.c.b16 %v602, %v598
    %v703 = vpack.c.b16 %v603, %v599
    %v704 = vpack.c.b16 %v604, %v600
    %v705 = vpack.c.b16 %v609, %v605
    %v706 = vpack.c.b16 %v610, %v606
    %v707 = vpack.c.b16 %v611, %v607
    %v708 = vpack.c.b16 %v612, %v608
    %v709 = vpack.c.b16 %v617, %v613
    %v710 = vpack.c.b16 %v618, %v614
    %v711 = vpack.c.b16 %v619, %v615
    %v712 = vpack.c.b16 %v620, %v616
    %v713 = vpack.c.b16 %v625, %v621
    %v714 = vpack.c.b16 %v626, %v622
    %v715 = vpack.c.b16 %v627, %v623
    %v716 = vpack.c.b16 %v628, %v624
    %v717 = vpack.c.b16 %v633, %v629
    %v718 = vpack.c.b16 %v634, %v630
    %v719 = vpack.c.b16 %v635, %v631
    %v720 = vpack.c.b16 %v636, %v632
    %v721 = vpack.c.b16 %v641, %v637
    %v722 = vpack.c.b16 %v642, %v638
    %v723 = vpack.c.b16 %v643, %v639
    %v724 = vpack.c.b16 %v644, %v640
    %v725 = vpack.c.b16 %v649, %v645
    %v726 = vpack.c.b16 %v650, %v646
    %v727 = vpack.c.b16 %v651, %v647
    %v728 = vpack.c.b16 %v652, %v648
    %v729 = vpack.c.b16 %v657, %v653
    %v730 = vpack.c.b16 %v658, %v654
    %v731 = vpack.c.b16 %v659, %v655
    %v732 = vpack.c.b16 %v660, %v656
    %v733 = vpack.c.b16 %v665, %v661
    %v734 = vpack.c.b16 %v666, %v662
    %v735 = vpack.c.b16 %v667, %v663
    %v736 = vpack.c.b16 %v668, %v664
    %v737 = vpack.c.b16 %v673, %v669
    %v738 = vpack.c.b16 %v674, %v670
    %v739 = vpack.c.b16 %v675, %v671
    %v740 = vpack.c.b16 %v676, %v672
    %805 = vmatprep.subr.bf16.mxu0 %v678
    %806 = vmatpush1.bf16.msra.mxu0 %v677
    %807 = vmatprep.subr.bf16.mxu0 %v682
    %808 = vmatpush1.bf16.msra.mxu0 %v681
    %809 = vmatprep.subr.bf16.mxu0 %v686
    %810 = vmatpush1.bf16.msra.mxu0 %v685
    %811 = vmatprep.subr.bf16.mxu0 %v690
    %812 = vmatpush1.bf16.msra.mxu0 %v689
    %813 = vmatprep.subr.bf16.mxu0 %v694
    %814 = vmatpush1.bf16.msra.mxu0 %v693
    %815 = vmatprep.subr.bf16.mxu0 %v698
    %816 = vmatpush1.bf16.msra.mxu0 %v697
    %817 = vmatprep.subr.bf16.mxu0 %v702
    %818 = vmatpush1.bf16.msra.mxu0 %v701
    %819 = vmatprep.subr.bf16.mxu0 %v706
    %820 = vmatpush1.bf16.msra.mxu0 %v705
    %821 = vmatprep.subr.bf16.mxu0 %v710
    %822 = vmatpush1.bf16.msra.mxu0 %v709
    %823 = vmatprep.subr.bf16.mxu0 %v714
    %824 = vmatpush1.bf16.msra.mxu0 %v713
    %825 = vmatprep.subr.bf16.mxu0 %v718
    %826 = vmatpush1.bf16.msra.mxu0 %v717
    %827 = vmatprep.subr.bf16.mxu0 %v722
    %828 = vmatpush1.bf16.msra.mxu0 %v721
    %829 = vmatprep.subr.bf16.mxu0 %v726
    %830 = vmatpush1.bf16.msra.mxu0 %v725
    %831 = vmatprep.subr.bf16.mxu0 %v730
    %832 = vmatpush1.bf16.msra.mxu0 %v729
    %833 = vmatprep.subr.bf16.mxu0 %v734
    %834 = vmatpush1.bf16.msra.mxu0 %v733
    %835 = vmatprep.subr.bf16.mxu0 %v738
    %836 = vmatpush1.bf16.msra.mxu0 %v737
    %837 = vmatprep.mubr.bf16.mxu0 %v420
    %838 = vmatmul.mubr.bf16.gmra.mrb[0].mxu0 %v419
    %v839 = vpop.f32.mrb[0].mxu0
    %v840 = vadd.f32 0.0, %v839
    %v841 = vpop.f32.mrb[0].mxu0
    %v842 = vadd.f32 0.0, %v841
    %v843 = vpop.f32.mrb[0].mxu0
    %v844 = vadd.f32 0.0, %v843
    %v845 = vpop.f32.mrb[0].mxu0
    %v846 = vadd.f32 0.0, %v845
    %847 = vdwg.mxu0
    %848 = vmatprep.subr.bf16.mxu0 %v680
    %849 = vmatpush1.bf16.msra.mxu0 %v679
    %850 = vmatprep.subr.bf16.mxu0 %v684
    %851 = vmatpush1.bf16.msra.mxu0 %v683
    %852 = vmatprep.subr.bf16.mxu0 %v688
    %853 = vmatpush1.bf16.msra.mxu0 %v687
    %854 = vmatprep.subr.bf16.mxu0 %v692
    %855 = vmatpush1.bf16.msra.mxu0 %v691
    %856 = vmatprep.subr.bf16.mxu0 %v696
    %857 = vmatpush1.bf16.msra.mxu0 %v695
    %858 = vmatprep.subr.bf16.mxu0 %v700
    %859 = vmatpush1.bf16.msra.mxu0 %v699
    %860 = vmatprep.subr.bf16.mxu0 %v704
    %861 = vmatpush1.bf16.msra.mxu0 %v703
    %862 = vmatprep.subr.bf16.mxu0 %v708
    %863 = vmatpush1.bf16.msra.mxu0 %v707
    %864 = vmatprep.subr.bf16.mxu0 %v712
    %865 = vmatpush1.bf16.msra.mxu0 %v711
    %866 = vmatprep.subr.bf16.mxu0 %v716
    %867 = vmatpush1.bf16.msra.mxu0 %v715
    %868 = vmatprep.subr.bf16.mxu0 %v720
    %869 = vmatpush1.bf16.msra.mxu0 %v719
    %870 = vmatprep.subr.bf16.mxu0 %v724
    %871 = vmatpush1.bf16.msra.mxu0 %v723
    %872 = vmatprep.subr.bf16.mxu0 %v728
    %873 = vmatpush1.bf16.msra.mxu0 %v727
    %874 = vmatprep.subr.bf16.mxu0 %v732
    %875 = vmatpush1.bf16.msra.mxu0 %v731
    %876 = vmatprep.subr.bf16.mxu0 %v736
    %877 = vmatpush1.bf16.msra.mxu0 %v735
    %878 = vmatprep.subr.bf16.mxu0 %v740
    %879 = vmatpush1.bf16.msra.mxu0 %v739
    %880 = vmatprep.mubr.bf16.mxu0 %v420
    %881 = vmatmul.mubr.bf16.gmra.mrb[0].mxu0 %v419
    %v882 = vpop.f32.mrb[0].mxu0
    %v883 = vadd.f32 0.0, %v882
    %v884 = vpop.f32.mrb[0].mxu0
    %v885 = vadd.f32 0.0, %v884
    %v886 = vpop.f32.mrb[0].mxu0
    %v887 = vadd.f32 0.0, %v886
    %v888 = vpop.f32.mrb[0].mxu0
    %v889 = vadd.f32 0.0, %v888
    %890 = vdwg.mxu0
    %v891 = vld [vmem:[%s7] sm:$0xf]
    %v893 = vlaneseq
    %v894 = vshrl.u32 %v893, 7
    %v895 = vsub.s32 0, %v894
    %v896 = vrot.slane %v891, %v895
    %v897 = vlaneseq
    %v898 = vshrl.u32 %v897, 7
    %v899 = vsub.s32 1, %v898
    %v900 = vrot.slane %v891, %v899
    %v901 = vlaneseq
    %v902 = vshrl.u32 %v901, 7
    %v903 = vsub.s32 2, %v902
    %v904 = vrot.slane %v891, %v903
    %v905 = vlaneseq
    %v906 = vshrl.u32 %v905, 7
    %v907 = vsub.s32 3, %v906
    %v908 = vrot.slane %v891, %v907
    %v913 = vmul.f32 %v840, %v896
    %v914 = vmul.f32 %v842, %v900
    %v915 = vmul.f32 %v883, %v904
    %v916 = vmul.f32 %v885, %v908
    %v917 = vmul.f32 %v844, %v896
    %v918 = vmul.f32 %v846, %v900
    %v919 = vmul.f32 %v887, %v904
    %v920 = vmul.f32 %v889, %v908
    %v921 = vld [vmem:[%s8] sm:$0xf]
    %v923 = vlaneseq
    %v924 = vshrl.u32 %v923, 7
    %v925 = vsub.s32 0, %v924
    %v926 = vrot.slane %v921, %v925
    %v927 = vlaneseq
    %v928 = vshrl.u32 %v927, 7
    %v929 = vsub.s32 1, %v928
    %v930 = vrot.slane %v921, %v929
    %v931 = vlaneseq
    %v932 = vshrl.u32 %v931, 7
    %v933 = vsub.s32 2, %v932
    %v934 = vrot.slane %v921, %v933
    %v935 = vlaneseq
    %v936 = vshrl.u32 %v935, 7
    %v937 = vsub.s32 3, %v936
    %v938 = vrot.slane %v921, %v937
    %v943 = vadd.f32 %v913, %v926
    %v944 = vadd.f32 %v914, %v930
    %v945 = vadd.f32 %v915, %v934
    %v946 = vadd.f32 %v916, %v938
    %v947 = vadd.f32 %v917, %v926
    %v948 = vadd.f32 %v918, %v930
    %v949 = vadd.f32 %v919, %v934
    %v950 = vadd.f32 %v920, %v938
    %vm951 = vcmp.gt.f32.partialorder %v943, 0.0
    %vm952 = vcmp.gt.f32.partialorder %v944, 0.0
    %vm953 = vcmp.gt.f32.partialorder %v945, 0.0
    %vm954 = vcmp.gt.f32.partialorder %v946, 0.0
    %vm955 = vcmp.gt.f32.partialorder %v947, 0.0
    %vm956 = vcmp.gt.f32.partialorder %v948, 0.0
    %vm957 = vcmp.gt.f32.partialorder %v949, 0.0
    %vm958 = vcmp.gt.f32.partialorder %v950, 0.0
    %v959 = vmul.f32 %v943, 0.2
    %v960 = vmul.f32 %v944, 0.2
    %v961 = vmul.f32 %v945, 0.2
    %v962 = vmul.f32 %v946, 0.2
    %v963 = vmul.f32 %v947, 0.2
    %v964 = vmul.f32 %v948, 0.2
    %v965 = vmul.f32 %v949, 0.2
    %v966 = vmul.f32 %v950, 0.2
    %v967 = vsel %vm951, %v943, %v959
    %v968 = vsel %vm952, %v944, %v960
    %v969 = vsel %vm953, %v945, %v961
    %v970 = vsel %vm954, %v946, %v962
    %v971 = vsel %vm955, %v947, %v963
    %v972 = vsel %vm956, %v948, %v964
    %v973 = vsel %vm957, %v949, %v965
    %v974 = vsel %vm958, %v950, %v966
    %v975 = vpack.c.bf16 %v971, %v967
    %v976 = vpack.c.bf16 %v972, %v968
    %v977 = vpack.c.bf16 %v973, %v969
    %v978 = vpack.c.bf16 %v974, %v970
    %v979 = vld [vmem:[#allocation13] sm:$0xff]
    %v980 = vld [vmem:[#allocation13 + $0x8] sm:$0xff]
    %v981 = vld [vmem:[#allocation13 + $0x10] sm:$0xff]
    %v982 = vld [vmem:[#allocation13 + $0x18] sm:$0xff]
    %v983 = vld [vmem:[#allocation13 + $0x20] sm:$0xff]
    %v984 = vld [vmem:[#allocation13 + $0x28] sm:$0xff]
    %v985 = vld [vmem:[#allocation13 + $0x30] sm:$0xff]
    %v986 = vld [vmem:[#allocation13 + $0x38] sm:$0xff]
    %v987 = vld [vmem:[#allocation13 + $0x40] sm:$0xff]
    %v988 = vld [vmem:[#allocation13 + $0x48] sm:$0xff]
    %v989 = vld [vmem:[#allocation13 + $0x50] sm:$0xff]
    %v990 = vld [vmem:[#allocation13 + $0x58] sm:$0xff]
    %v991 = vld [vmem:[#allocation13 + $0x60] sm:$0xff]
    %v992 = vld [vmem:[#allocation13 + $0x68] sm:$0xff]
    %v993 = vld [vmem:[#allocation13 + $0x70] sm:$0xff]
    %v994 = vld [vmem:[#allocation13 + $0x78] sm:$0xff]
    %v995 = vld [vmem:[#allocation13 + $0x80] sm:$0xff]
    %v996 = vld [vmem:[#allocation13 + $0x88] sm:$0xff]
    %v997 = vld [vmem:[#allocation13 + $0x90] sm:$0xff]
    %v998 = vld [vmem:[#allocation13 + $0x98] sm:$0xff]
    %v999 = vld [vmem:[#allocation13 + $0xa0] sm:$0xff]
    %v1000 = vld [vmem:[#allocation13 + $0xa8] sm:$0xff]
    %v1001 = vld [vmem:[#allocation13 + $0xb0] sm:$0xff]
    %v1002 = vld [vmem:[#allocation13 + $0xb8] sm:$0xff]
    %v1003 = vld [vmem:[#allocation13 + $0xc0] sm:$0xff]
    %v1004 = vld [vmem:[#allocation13 + $0xc8] sm:$0xff]
    %v1005 = vld [vmem:[#allocation13 + $0xd0] sm:$0xff]
    %v1006 = vld [vmem:[#allocation13 + $0xd8] sm:$0xff]
    %v1007 = vld [vmem:[#allocation13 + $0xe0] sm:$0xff]
    %v1008 = vld [vmem:[#allocation13 + $0xe8] sm:$0xff]
    %v1009 = vld [vmem:[#allocation13 + $0xf0] sm:$0xff]
    %v1010 = vld [vmem:[#allocation13 + $0xf8] sm:$0xff]
    %v1011 = vld [vmem:[#allocation13 + $0x100] sm:$0xff]
    %v1012 = vld [vmem:[#allocation13 + $0x108] sm:$0xff]
    %v1013 = vld [vmem:[#allocation13 + $0x110] sm:$0xff]
    %v1014 = vld [vmem:[#allocation13 + $0x118] sm:$0xff]
    %v1015 = vld [vmem:[#allocation13 + $0x120] sm:$0xff]
    %v1016 = vld [vmem:[#allocation13 + $0x128] sm:$0xff]
    %v1017 = vld [vmem:[#allocation13 + $0x130] sm:$0xff]
    %v1018 = vld [vmem:[#allocation13 + $0x138] sm:$0xff]
    %v1019 = vld [vmem:[#allocation13 + $0x140] sm:$0xff]
    %v1020 = vld [vmem:[#allocation13 + $0x148] sm:$0xff]
    %v1021 = vld [vmem:[#allocation13 + $0x150] sm:$0xff]
    %v1022 = vld [vmem:[#allocation13 + $0x158] sm:$0xff]
    %v1023 = vld [vmem:[#allocation13 + $0x160] sm:$0xff]
    %v1024 = vld [vmem:[#allocation13 + $0x168] sm:$0xff]
    %v1025 = vld [vmem:[#allocation13 + $0x170] sm:$0xff]
    %v1026 = vld [vmem:[#allocation13 + $0x178] sm:$0xff]
    %v1027 = vld [vmem:[#allocation13 + $0x180] sm:$0xff]
    %v1028 = vld [vmem:[#allocation13 + $0x188] sm:$0xff]
    %v1029 = vld [vmem:[#allocation13 + $0x190] sm:$0xff]
    %v1030 = vld [vmem:[#allocation13 + $0x198] sm:$0xff]
    %v1031 = vld [vmem:[#allocation13 + $0x1a0] sm:$0xff]
    %v1032 = vld [vmem:[#allocation13 + $0x1a8] sm:$0xff]
    %v1033 = vld [vmem:[#allocation13 + $0x1b0] sm:$0xff]
    %v1034 = vld [vmem:[#allocation13 + $0x1b8] sm:$0xff]
    %v1035 = vld [vmem:[#allocation13 + $0x1c0] sm:$0xff]
    %v1036 = vld [vmem:[#allocation13 + $0x1c8] sm:$0xff]
    %v1037 = vld [vmem:[#allocation13 + $0x1d0] sm:$0xff]
    %v1038 = vld [vmem:[#allocation13 + $0x1d8] sm:$0xff]
    %v1039 = vld [vmem:[#allocation13 + $0x1e0] sm:$0xff]
    %v1040 = vld [vmem:[#allocation13 + $0x1e8] sm:$0xff]
    %v1041 = vld [vmem:[#allocation13 + $0x1f0] sm:$0xff]
    %v1042 = vld [vmem:[#allocation13 + $0x1f8] sm:$0xff]
    %v1043 = vld [vmem:[#allocation13 + $0x200] sm:$0xff]
    %v1044 = vld [vmem:[#allocation13 + $0x208] sm:$0xff]
    %v1045 = vld [vmem:[#allocation13 + $0x210] sm:$0xff]
    %v1046 = vld [vmem:[#allocation13 + $0x218] sm:$0xff]
    %v1047 = vld [vmem:[#allocation13 + $0x220] sm:$0xff]
    %v1048 = vld [vmem:[#allocation13 + $0x228] sm:$0xff]
    %v1049 = vld [vmem:[#allocation13 + $0x230] sm:$0xff]
    %v1050 = vld [vmem:[#allocation13 + $0x238] sm:$0xff]
    %v1051 = vld [vmem:[#allocation13 + $0x240] sm:$0xff]
    %v1052 = vld [vmem:[#allocation13 + $0x248] sm:$0xff]
    %v1053 = vld [vmem:[#allocation13 + $0x250] sm:$0xff]
    %v1054 = vld [vmem:[#allocation13 + $0x258] sm:$0xff]
    %v1055 = vld [vmem:[#allocation13 + $0x260] sm:$0xff]
    %v1056 = vld [vmem:[#allocation13 + $0x268] sm:$0xff]
    %v1057 = vld [vmem:[#allocation13 + $0x270] sm:$0xff]
    %v1058 = vld [vmem:[#allocation13 + $0x278] sm:$0xff]
    %v1059 = vld [vmem:[#allocation13 + $0x280] sm:$0xff]
    %v1060 = vld [vmem:[#allocation13 + $0x288] sm:$0xff]
    %v1061 = vld [vmem:[#allocation13 + $0x290] sm:$0xff]
    %v1062 = vld [vmem:[#allocation13 + $0x298] sm:$0xff]
    %v1063 = vld [vmem:[#allocation13 + $0x2a0] sm:$0xff]
    %v1064 = vld [vmem:[#allocation13 + $0x2a8] sm:$0xff]
    %v1065 = vld [vmem:[#allocation13 + $0x2b0] sm:$0xff]
    %v1066 = vld [vmem:[#allocation13 + $0x2b8] sm:$0xff]
    %v1067 = vld [vmem:[#allocation13 + $0x2c0] sm:$0xff]
    %v1068 = vld [vmem:[#allocation13 + $0x2c8] sm:$0xff]
    %v1069 = vld [vmem:[#allocation13 + $0x2d0] sm:$0xff]
    %v1070 = vld [vmem:[#allocation13 + $0x2d8] sm:$0xff]
    %v1071 = vld [vmem:[#allocation13 + $0x2e0] sm:$0xff]
    %v1072 = vld [vmem:[#allocation13 + $0x2e8] sm:$0xff]
    %v1073 = vld [vmem:[#allocation13 + $0x2f0] sm:$0xff]
    %v1074 = vld [vmem:[#allocation13 + $0x2f8] sm:$0xff]
    %v1075 = vld [vmem:[#allocation13 + $0x300] sm:$0xff]
    %v1076 = vld [vmem:[#allocation13 + $0x308] sm:$0xff]
    %v1077 = vld [vmem:[#allocation13 + $0x310] sm:$0xff]
    %v1078 = vld [vmem:[#allocation13 + $0x318] sm:$0xff]
    %v1079 = vld [vmem:[#allocation13 + $0x320] sm:$0xff]
    %v1080 = vld [vmem:[#allocation13 + $0x328] sm:$0xff]
    %v1081 = vld [vmem:[#allocation13 + $0x330] sm:$0xff]
    %v1082 = vld [vmem:[#allocation13 + $0x338] sm:$0xff]
    %v1083 = vld [vmem:[#allocation13 + $0x340] sm:$0xff]
    %v1084 = vld [vmem:[#allocation13 + $0x348] sm:$0xff]
    %v1085 = vld [vmem:[#allocation13 + $0x350] sm:$0xff]
    %v1086 = vld [vmem:[#allocation13 + $0x358] sm:$0xff]
    %v1087 = vld [vmem:[#allocation13 + $0x360] sm:$0xff]
    %v1088 = vld [vmem:[#allocation13 + $0x368] sm:$0xff]
    %v1089 = vld [vmem:[#allocation13 + $0x370] sm:$0xff]
    %v1090 = vld [vmem:[#allocation13 + $0x378] sm:$0xff]
    %v1091 = vld [vmem:[#allocation13 + $0x380] sm:$0xff]
    %v1092 = vld [vmem:[#allocation13 + $0x388] sm:$0xff]
    %v1093 = vld [vmem:[#allocation13 + $0x390] sm:$0xff]
    %v1094 = vld [vmem:[#allocation13 + $0x398] sm:$0xff]
    %v1095 = vld [vmem:[#allocation13 + $0x3a0] sm:$0xff]
    %v1096 = vld [vmem:[#allocation13 + $0x3a8] sm:$0xff]
    %v1097 = vld [vmem:[#allocation13 + $0x3b0] sm:$0xff]
    %v1098 = vld [vmem:[#allocation13 + $0x3b8] sm:$0xff]
    %v1099 = vld [vmem:[#allocation13 + $0x3c0] sm:$0xff]
    %v1100 = vld [vmem:[#allocation13 + $0x3c8] sm:$0xff]
    %v1101 = vld [vmem:[#allocation13 + $0x3d0] sm:$0xff]
    %v1102 = vld [vmem:[#allocation13 + $0x3d8] sm:$0xff]
    %v1103 = vld [vmem:[#allocation13 + $0x3e0] sm:$0xff]
    %v1104 = vld [vmem:[#allocation13 + $0x3e8] sm:$0xff]
    %v1105 = vld [vmem:[#allocation13 + $0x3f0] sm:$0xff]
    %v1106 = vld [vmem:[#allocation13 + $0x3f8] sm:$0xff]
    %v1107 = vld [vmem:[#allocation13 + $0x400] sm:$0xff]
    %v1108 = vld [vmem:[#allocation13 + $0x408] sm:$0xff]
    %v1109 = vld [vmem:[#allocation13 + $0x410] sm:$0xff]
    %v1110 = vld [vmem:[#allocation13 + $0x418] sm:$0xff]
    %v1111 = vld [vmem:[#allocation13 + $0x420] sm:$0xff]
    %v1112 = vld [vmem:[#allocation13 + $0x428] sm:$0xff]
    %v1113 = vld [vmem:[#allocation13 + $0x430] sm:$0xff]
    %v1114 = vld [vmem:[#allocation13 + $0x438] sm:$0xff]
    %v1115 = vld [vmem:[#allocation13 + $0x440] sm:$0xff]
    %v1116 = vld [vmem:[#allocation13 + $0x448] sm:$0xff]
    %v1117 = vld [vmem:[#allocation13 + $0x450] sm:$0xff]
    %v1118 = vld [vmem:[#allocation13 + $0x458] sm:$0xff]
    %v1119 = vld [vmem:[#allocation13 + $0x460] sm:$0xff]
    %v1120 = vld [vmem:[#allocation13 + $0x468] sm:$0xff]
    %v1121 = vld [vmem:[#allocation13 + $0x470] sm:$0xff]
    %v1122 = vld [vmem:[#allocation13 + $0x478] sm:$0xff]
    %v1123 = vld [vmem:[#allocation13 + $0x480] sm:$0xff]
    %v1124 = vld [vmem:[#allocation13 + $0x488] sm:$0xff]
    %v1125 = vld [vmem:[#allocation13 + $0x490] sm:$0xff]
    %v1126 = vld [vmem:[#allocation13 + $0x498] sm:$0xff]
    %v1127 = vld [vmem:[#allocation13 + $0x4a0] sm:$0xff]
    %v1128 = vld [vmem:[#allocation13 + $0x4a8] sm:$0xff]
    %v1129 = vld [vmem:[#allocation13 + $0x4b0] sm:$0xff]
    %v1130 = vld [vmem:[#allocation13 + $0x4b8] sm:$0xff]
    %v1131 = vld [vmem:[#allocation13 + $0x4c0] sm:$0xff]
    %v1132 = vld [vmem:[#allocation13 + $0x4c8] sm:$0xff]
    %v1133 = vld [vmem:[#allocation13 + $0x4d0] sm:$0xff]
    %v1134 = vld [vmem:[#allocation13 + $0x4d8] sm:$0xff]
    %v1135 = vld [vmem:[#allocation13 + $0x4e0] sm:$0xff]
    %v1136 = vld [vmem:[#allocation13 + $0x4e8] sm:$0xff]
    %v1137 = vld [vmem:[#allocation13 + $0x4f0] sm:$0xff]
    %v1138 = vld [vmem:[#allocation13 + $0x4f8] sm:$0xff]
    %v1139 = vld [vmem:[#allocation13 + $0x500] sm:$0xff]
    %v1140 = vld [vmem:[#allocation13 + $0x508] sm:$0xff]
    %v1141 = vld [vmem:[#allocation13 + $0x510] sm:$0xff]
    %v1142 = vld [vmem:[#allocation13 + $0x518] sm:$0xff]
    %v1143 = vld [vmem:[#allocation13 + $0x520] sm:$0xff]
    %v1144 = vld [vmem:[#allocation13 + $0x528] sm:$0xff]
    %v1145 = vld [vmem:[#allocation13 + $0x530] sm:$0xff]
    %v1146 = vld [vmem:[#allocation13 + $0x538] sm:$0xff]
    %v1147 = vld [vmem:[#allocation13 + $0x540] sm:$0xff]
    %v1148 = vld [vmem:[#allocation13 + $0x548] sm:$0xff]
    %v1149 = vld [vmem:[#allocation13 + $0x550] sm:$0xff]
    %v1150 = vld [vmem:[#allocation13 + $0x558] sm:$0xff]
    %v1151 = vld [vmem:[#allocation13 + $0x560] sm:$0xff]
    %v1152 = vld [vmem:[#allocation13 + $0x568] sm:$0xff]
    %v1153 = vld [vmem:[#allocation13 + $0x570] sm:$0xff]
    %v1154 = vld [vmem:[#allocation13 + $0x578] sm:$0xff]
    %v1155 = vld [vmem:[#allocation13 + $0x580] sm:$0xff]
    %v1156 = vld [vmem:[#allocation13 + $0x588] sm:$0xff]
    %v1157 = vld [vmem:[#allocation13 + $0x590] sm:$0xff]
    %v1158 = vld [vmem:[#allocation13 + $0x598] sm:$0xff]
    %v1159 = vld [vmem:[#allocation13 + $0x5a0] sm:$0xff]
    %v1160 = vld [vmem:[#allocation13 + $0x5a8] sm:$0xff]
    %v1161 = vld [vmem:[#allocation13 + $0x5b0] sm:$0xff]
    %v1162 = vld [vmem:[#allocation13 + $0x5b8] sm:$0xff]
    %v1163 = vld [vmem:[#allocation13 + $0x5c0] sm:$0xff]
    %v1164 = vld [vmem:[#allocation13 + $0x5c8] sm:$0xff]
    %v1165 = vld [vmem:[#allocation13 + $0x5d0] sm:$0xff]
    %v1166 = vld [vmem:[#allocation13 + $0x5d8] sm:$0xff]
    %v1167 = vld [vmem:[#allocation13 + $0x5e0] sm:$0xff]
    %v1168 = vld [vmem:[#allocation13 + $0x5e8] sm:$0xff]
    %v1169 = vld [vmem:[#allocation13 + $0x5f0] sm:$0xff]
    %v1170 = vld [vmem:[#allocation13 + $0x5f8] sm:$0xff]
    %v1171 = vld [vmem:[#allocation13 + $0x600] sm:$0xff]
    %v1172 = vld [vmem:[#allocation13 + $0x608] sm:$0xff]
    %v1173 = vld [vmem:[#allocation13 + $0x610] sm:$0xff]
    %v1174 = vld [vmem:[#allocation13 + $0x618] sm:$0xff]
    %v1175 = vld [vmem:[#allocation13 + $0x620] sm:$0xff]
    %v1176 = vld [vmem:[#allocation13 + $0x628] sm:$0xff]
    %v1177 = vld [vmem:[#allocation13 + $0x630] sm:$0xff]
    %v1178 = vld [vmem:[#allocation13 + $0x638] sm:$0xff]
    %v1179 = vld [vmem:[#allocation13 + $0x640] sm:$0xff]
    %v1180 = vld [vmem:[#allocation13 + $0x648] sm:$0xff]
    %v1181 = vld [vmem:[#allocation13 + $0x650] sm:$0xff]
    %v1182 = vld [vmem:[#allocation13 + $0x658] sm:$0xff]
    %v1183 = vld [vmem:[#allocation13 + $0x660] sm:$0xff]
    %v1184 = vld [vmem:[#allocation13 + $0x668] sm:$0xff]
    %v1185 = vld [vmem:[#allocation13 + $0x670] sm:$0xff]
    %v1186 = vld [vmem:[#allocation13 + $0x678] sm:$0xff]
    %v1187 = vld [vmem:[#allocation13 + $0x680] sm:$0xff]
    %v1188 = vld [vmem:[#allocation13 + $0x688] sm:$0xff]
    %v1189 = vld [vmem:[#allocation13 + $0x690] sm:$0xff]
    %v1190 = vld [vmem:[#allocation13 + $0x698] sm:$0xff]
    %v1191 = vld [vmem:[#allocation13 + $0x6a0] sm:$0xff]
    %v1192 = vld [vmem:[#allocation13 + $0x6a8] sm:$0xff]
    %v1193 = vld [vmem:[#allocation13 + $0x6b0] sm:$0xff]
    %v1194 = vld [vmem:[#allocation13 + $0x6b8] sm:$0xff]
    %v1195 = vld [vmem:[#allocation13 + $0x6c0] sm:$0xff]
    %v1196 = vld [vmem:[#allocation13 + $0x6c8] sm:$0xff]
    %v1197 = vld [vmem:[#allocation13 + $0x6d0] sm:$0xff]
    %v1198 = vld [vmem:[#allocation13 + $0x6d8] sm:$0xff]
    %v1199 = vld [vmem:[#allocation13 + $0x6e0] sm:$0xff]
    %v1200 = vld [vmem:[#allocation13 + $0x6e8] sm:$0xff]
    %v1201 = vld [vmem:[#allocation13 + $0x6f0] sm:$0xff]
    %v1202 = vld [vmem:[#allocation13 + $0x6f8] sm:$0xff]
    %v1203 = vld [vmem:[#allocation13 + $0x700] sm:$0xff]
    %v1204 = vld [vmem:[#allocation13 + $0x708] sm:$0xff]
    %v1205 = vld [vmem:[#allocation13 + $0x710] sm:$0xff]
    %v1206 = vld [vmem:[#allocation13 + $0x718] sm:$0xff]
    %v1207 = vld [vmem:[#allocation13 + $0x720] sm:$0xff]
    %v1208 = vld [vmem:[#allocation13 + $0x728] sm:$0xff]
    %v1209 = vld [vmem:[#allocation13 + $0x730] sm:$0xff]
    %v1210 = vld [vmem:[#allocation13 + $0x738] sm:$0xff]
    %v1211 = vld [vmem:[#allocation13 + $0x740] sm:$0xff]
    %v1212 = vld [vmem:[#allocation13 + $0x748] sm:$0xff]
    %v1213 = vld [vmem:[#allocation13 + $0x750] sm:$0xff]
    %v1214 = vld [vmem:[#allocation13 + $0x758] sm:$0xff]
    %v1215 = vld [vmem:[#allocation13 + $0x760] sm:$0xff]
    %v1216 = vld [vmem:[#allocation13 + $0x768] sm:$0xff]
    %v1217 = vld [vmem:[#allocation13 + $0x770] sm:$0xff]
    %v1218 = vld [vmem:[#allocation13 + $0x778] sm:$0xff]
    %v1219 = vld [vmem:[#allocation13 + $0x780] sm:$0xff]
    %v1220 = vld [vmem:[#allocation13 + $0x788] sm:$0xff]
    %v1221 = vld [vmem:[#allocation13 + $0x790] sm:$0xff]
    %v1222 = vld [vmem:[#allocation13 + $0x798] sm:$0xff]
    %v1223 = vld [vmem:[#allocation13 + $0x7a0] sm:$0xff]
    %v1224 = vld [vmem:[#allocation13 + $0x7a8] sm:$0xff]
    %v1225 = vld [vmem:[#allocation13 + $0x7b0] sm:$0xff]
    %v1226 = vld [vmem:[#allocation13 + $0x7b8] sm:$0xff]
    %v1227 = vld [vmem:[#allocation13 + $0x7c0] sm:$0xff]
    %v1228 = vld [vmem:[#allocation13 + $0x7c8] sm:$0xff]
    %v1229 = vld [vmem:[#allocation13 + $0x7d0] sm:$0xff]
    %v1230 = vld [vmem:[#allocation13 + $0x7d8] sm:$0xff]
    %v1231 = vld [vmem:[#allocation13 + $0x7e0] sm:$0xff]
    %v1232 = vld [vmem:[#allocation13 + $0x7e8] sm:$0xff]
    %v1233 = vld [vmem:[#allocation13 + $0x7f0] sm:$0xff]
    %v1234 = vld [vmem:[#allocation13 + $0x7f8] sm:$0xff]
    %v1491 = vunpack.c.l.b16 %v979
    %v1492 = vunpack.c.h.b16 %v979
    %v1493 = vunpack.c.l.b16 %v980
    %v1494 = vunpack.c.h.b16 %v980
    %v1495 = vunpack.c.l.b16 %v981
    %v1496 = vunpack.c.h.b16 %v981
    %v1497 = vunpack.c.l.b16 %v982
    %v1498 = vunpack.c.h.b16 %v982
    %v1499 = vunpack.c.l.b16 %v983
    %v1500 = vunpack.c.h.b16 %v983
    %v1501 = vunpack.c.l.b16 %v984
    %v1502 = vunpack.c.h.b16 %v984
    %v1503 = vunpack.c.l.b16 %v985
    %v1504 = vunpack.c.h.b16 %v985
    %v1505 = vunpack.c.l.b16 %v986
    %v1506 = vunpack.c.h.b16 %v986
    %v1507 = vunpack.c.l.b16 %v987
    %v1508 = vunpack.c.h.b16 %v987
    %v1509 = vunpack.c.l.b16 %v988
    %v1510 = vunpack.c.h.b16 %v988
    %v1511 = vunpack.c.l.b16 %v989
    %v1512 = vunpack.c.h.b16 %v989
    %v1513 = vunpack.c.l.b16 %v990
    %v1514 = vunpack.c.h.b16 %v990
    %v1515 = vunpack.c.l.b16 %v991
    %v1516 = vunpack.c.h.b16 %v991
    %v1517 = vunpack.c.l.b16 %v992
    %v1518 = vunpack.c.h.b16 %v992
    %v1519 = vunpack.c.l.b16 %v993
    %v1520 = vunpack.c.h.b16 %v993
    %v1521 = vunpack.c.l.b16 %v994
    %v1522 = vunpack.c.h.b16 %v994
    %v1523 = vunpack.c.l.b16 %v995
    %v1524 = vunpack.c.h.b16 %v995
    %v1525 = vunpack.c.l.b16 %v996
    %v1526 = vunpack.c.h.b16 %v996
    %v1527 = vunpack.c.l.b16 %v997
    %v1528 = vunpack.c.h.b16 %v997
    %v1529 = vunpack.c.l.b16 %v998
    %v1530 = vunpack.c.h.b16 %v998
    %v1531 = vunpack.c.l.b16 %v999
    %v1532 = vunpack.c.h.b16 %v999
    %v1533 = vunpack.c.l.b16 %v1000
    %v1534 = vunpack.c.h.b16 %v1000
    %v1535 = vunpack.c.l.b16 %v1001
    %v1536 = vunpack.c.h.b16 %v1001
    %v1537 = vunpack.c.l.b16 %v1002
    %v1538 = vunpack.c.h.b16 %v1002
    %v1539 = vunpack.c.l.b16 %v1003
    %v1540 = vunpack.c.h.b16 %v1003
    %v1541 = vunpack.c.l.b16 %v1004
    %v1542 = vunpack.c.h.b16 %v1004
    %v1543 = vunpack.c.l.b16 %v1005
    %v1544 = vunpack.c.h.b16 %v1005
    %v1545 = vunpack.c.l.b16 %v1006
    %v1546 = vunpack.c.h.b16 %v1006
    %v1547 = vunpack.c.l.b16 %v1007
    %v1548 = vunpack.c.h.b16 %v1007
    %v1549 = vunpack.c.l.b16 %v1008
    %v1550 = vunpack.c.h.b16 %v1008
    %v1551 = vunpack.c.l.b16 %v1009
    %v1552 = vunpack.c.h.b16 %v1009
    %v1553 = vunpack.c.l.b16 %v1010
    %v1554 = vunpack.c.h.b16 %v1010
    %v1555 = vunpack.c.l.b16 %v1011
    %v1556 = vunpack.c.h.b16 %v1011
    %v1557 = vunpack.c.l.b16 %v1012
    %v1558 = vunpack.c.h.b16 %v1012
    %v1559 = vunpack.c.l.b16 %v1013
    %v1560 = vunpack.c.h.b16 %v1013
    %v1561 = vunpack.c.l.b16 %v1014
    %v1562 = vunpack.c.h.b16 %v1014
    %v1563 = vunpack.c.l.b16 %v1015
    %v1564 = vunpack.c.h.b16 %v1015
    %v1565 = vunpack.c.l.b16 %v1016
    %v1566 = vunpack.c.h.b16 %v1016
    %v1567 = vunpack.c.l.b16 %v1017
    %v1568 = vunpack.c.h.b16 %v1017
    %v1569 = vunpack.c.l.b16 %v1018
    %v1570 = vunpack.c.h.b16 %v1018
    %v1571 = vunpack.c.l.b16 %v1019
    %v1572 = vunpack.c.h.b16 %v1019
    %v1573 = vunpack.c.l.b16 %v1020
    %v1574 = vunpack.c.h.b16 %v1020
    %v1575 = vunpack.c.l.b16 %v1021
    %v1576 = vunpack.c.h.b16 %v1021
    %v1577 = vunpack.c.l.b16 %v1022
    %v1578 = vunpack.c.h.b16 %v1022
    %v1579 = vunpack.c.l.b16 %v1023
    %v1580 = vunpack.c.h.b16 %v1023
    %v1581 = vunpack.c.l.b16 %v1024
    %v1582 = vunpack.c.h.b16 %v1024
    %v1583 = vunpack.c.l.b16 %v1025
    %v1584 = vunpack.c.h.b16 %v1025
    %v1585 = vunpack.c.l.b16 %v1026
    %v1586 = vunpack.c.h.b16 %v1026
    %v1587 = vunpack.c.l.b16 %v1027
    %v1588 = vunpack.c.h.b16 %v1027
    %v1589 = vunpack.c.l.b16 %v1028
    %v1590 = vunpack.c.h.b16 %v1028
    %v1591 = vunpack.c.l.b16 %v1029
    %v1592 = vunpack.c.h.b16 %v1029
    %v1593 = vunpack.c.l.b16 %v1030
    %v1594 = vunpack.c.h.b16 %v1030
    %v1595 = vunpack.c.l.b16 %v1031
    %v1596 = vunpack.c.h.b16 %v1031
    %v1597 = vunpack.c.l.b16 %v1032
    %v1598 = vunpack.c.h.b16 %v1032
    %v1599 = vunpack.c.l.b16 %v1033
    %v1600 = vunpack.c.h.b16 %v1033
    %v1601 = vunpack.c.l.b16 %v1034
    %v1602 = vunpack.c.h.b16 %v1034
    %v1603 = vunpack.c.l.b16 %v1035
    %v1604 = vunpack.c.h.b16 %v1035
    %v1605 = vunpack.c.l.b16 %v1036
    %v1606 = vunpack.c.h.b16 %v1036
    %v1607 = vunpack.c.l.b16 %v1037
    %v1608 = vunpack.c.h.b16 %v1037
    %v1609 = vunpack.c.l.b16 %v1038
    %v1610 = vunpack.c.h.b16 %v1038
    %v1611 = vunpack.c.l.b16 %v1039
    %v1612 = vunpack.c.h.b16 %v1039
    %v1613 = vunpack.c.l.b16 %v1040
    %v1614 = vunpack.c.h.b16 %v1040
    %v1615 = vunpack.c.l.b16 %v1041
    %v1616 = vunpack.c.h.b16 %v1041
    %v1617 = vunpack.c.l.b16 %v1042
    %v1618 = vunpack.c.h.b16 %v1042
    %v1619 = vunpack.c.l.b16 %v1043
    %v1620 = vunpack.c.h.b16 %v1043
    %v1621 = vunpack.c.l.b16 %v1044
    %v1622 = vunpack.c.h.b16 %v1044
    %v1623 = vunpack.c.l.b16 %v1045
    %v1624 = vunpack.c.h.b16 %v1045
    %v1625 = vunpack.c.l.b16 %v1046
    %v1626 = vunpack.c.h.b16 %v1046
    %v1627 = vunpack.c.l.b16 %v1047
    %v1628 = vunpack.c.h.b16 %v1047
    %v1629 = vunpack.c.l.b16 %v1048
    %v1630 = vunpack.c.h.b16 %v1048
    %v1631 = vunpack.c.l.b16 %v1049
    %v1632 = vunpack.c.h.b16 %v1049
    %v1633 = vunpack.c.l.b16 %v1050
    %v1634 = vunpack.c.h.b16 %v1050
    %v1635 = vunpack.c.l.b16 %v1051
    %v1636 = vunpack.c.h.b16 %v1051
    %v1637 = vunpack.c.l.b16 %v1052
    %v1638 = vunpack.c.h.b16 %v1052
    %v1639 = vunpack.c.l.b16 %v1053
    %v1640 = vunpack.c.h.b16 %v1053
    %v1641 = vunpack.c.l.b16 %v1054
    %v1642 = vunpack.c.h.b16 %v1054
    %v1643 = vunpack.c.l.b16 %v1055
    %v1644 = vunpack.c.h.b16 %v1055
    %v1645 = vunpack.c.l.b16 %v1056
    %v1646 = vunpack.c.h.b16 %v1056
    %v1647 = vunpack.c.l.b16 %v1057
    %v1648 = vunpack.c.h.b16 %v1057
    %v1649 = vunpack.c.l.b16 %v1058
    %v1650 = vunpack.c.h.b16 %v1058
    %v1651 = vunpack.c.l.b16 %v1059
    %v1652 = vunpack.c.h.b16 %v1059
    %v1653 = vunpack.c.l.b16 %v1060
    %v1654 = vunpack.c.h.b16 %v1060
    %v1655 = vunpack.c.l.b16 %v1061
    %v1656 = vunpack.c.h.b16 %v1061
    %v1657 = vunpack.c.l.b16 %v1062
    %v1658 = vunpack.c.h.b16 %v1062
    %v1659 = vunpack.c.l.b16 %v1063
    %v1660 = vunpack.c.h.b16 %v1063
    %v1661 = vunpack.c.l.b16 %v1064
    %v1662 = vunpack.c.h.b16 %v1064
    %v1663 = vunpack.c.l.b16 %v1065
    %v1664 = vunpack.c.h.b16 %v1065
    %v1665 = vunpack.c.l.b16 %v1066
    %v1666 = vunpack.c.h.b16 %v1066
    %v1667 = vunpack.c.l.b16 %v1067
    %v1668 = vunpack.c.h.b16 %v1067
    %v1669 = vunpack.c.l.b16 %v1068
    %v1670 = vunpack.c.h.b16 %v1068
    %v1671 = vunpack.c.l.b16 %v1069
    %v1672 = vunpack.c.h.b16 %v1069
    %v1673 = vunpack.c.l.b16 %v1070
    %v1674 = vunpack.c.h.b16 %v1070
    %v1675 = vunpack.c.l.b16 %v1071
    %v1676 = vunpack.c.h.b16 %v1071
    %v1677 = vunpack.c.l.b16 %v1072
    %v1678 = vunpack.c.h.b16 %v1072
    %v1679 = vunpack.c.l.b16 %v1073
    %v1680 = vunpack.c.h.b16 %v1073
    %v1681 = vunpack.c.l.b16 %v1074
    %v1682 = vunpack.c.h.b16 %v1074
    %v1683 = vunpack.c.l.b16 %v1075
    %v1684 = vunpack.c.h.b16 %v1075
    %v1685 = vunpack.c.l.b16 %v1076
    %v1686 = vunpack.c.h.b16 %v1076
    %v1687 = vunpack.c.l.b16 %v1077
    %v1688 = vunpack.c.h.b16 %v1077
    %v1689 = vunpack.c.l.b16 %v1078
    %v1690 = vunpack.c.h.b16 %v1078
    %v1691 = vunpack.c.l.b16 %v1079
    %v1692 = vunpack.c.h.b16 %v1079
    %v1693 = vunpack.c.l.b16 %v1080
    %v1694 = vunpack.c.h.b16 %v1080
    %v1695 = vunpack.c.l.b16 %v1081
    %v1696 = vunpack.c.h.b16 %v1081
    %v1697 = vunpack.c.l.b16 %v1082
    %v1698 = vunpack.c.h.b16 %v1082
    %v1699 = vunpack.c.l.b16 %v1083
    %v1700 = vunpack.c.h.b16 %v1083
    %v1701 = vunpack.c.l.b16 %v1084
    %v1702 = vunpack.c.h.b16 %v1084
    %v1703 = vunpack.c.l.b16 %v1085
    %v1704 = vunpack.c.h.b16 %v1085
    %v1705 = vunpack.c.l.b16 %v1086
    %v1706 = vunpack.c.h.b16 %v1086
    %v1707 = vunpack.c.l.b16 %v1087
    %v1708 = vunpack.c.h.b16 %v1087
    %v1709 = vunpack.c.l.b16 %v1088
    %v1710 = vunpack.c.h.b16 %v1088
    %v1711 = vunpack.c.l.b16 %v1089
    %v1712 = vunpack.c.h.b16 %v1089
    %v1713 = vunpack.c.l.b16 %v1090
    %v1714 = vunpack.c.h.b16 %v1090
    %v1715 = vunpack.c.l.b16 %v1091
    %v1716 = vunpack.c.h.b16 %v1091
    %v1717 = vunpack.c.l.b16 %v1092
    %v1718 = vunpack.c.h.b16 %v1092
    %v1719 = vunpack.c.l.b16 %v1093
    %v1720 = vunpack.c.h.b16 %v1093
    %v1721 = vunpack.c.l.b16 %v1094
    %v1722 = vunpack.c.h.b16 %v1094
    %v1723 = vunpack.c.l.b16 %v1095
    %v1724 = vunpack.c.h.b16 %v1095
    %v1725 = vunpack.c.l.b16 %v1096
    %v1726 = vunpack.c.h.b16 %v1096
    %v1727 = vunpack.c.l.b16 %v1097
    %v1728 = vunpack.c.h.b16 %v1097
    %v1729 = vunpack.c.l.b16 %v1098
    %v1730 = vunpack.c.h.b16 %v1098
    %v1731 = vunpack.c.l.b16 %v1099
    %v1732 = vunpack.c.h.b16 %v1099
    %v1733 = vunpack.c.l.b16 %v1100
    %v1734 = vunpack.c.h.b16 %v1100
    %v1735 = vunpack.c.l.b16 %v1101
    %v1736 = vunpack.c.h.b16 %v1101
    %v1737 = vunpack.c.l.b16 %v1102
    %v1738 = vunpack.c.h.b16 %v1102
    %v1739 = vunpack.c.l.b16 %v1103
    %v1740 = vunpack.c.h.b16 %v1103
    %v1741 = vunpack.c.l.b16 %v1104
    %v1742 = vunpack.c.h.b16 %v1104
    %v1743 = vunpack.c.l.b16 %v1105
    %v1744 = vunpack.c.h.b16 %v1105
    %v1745 = vunpack.c.l.b16 %v1106
    %v1746 = vunpack.c.h.b16 %v1106
    %v1747 = vunpack.c.l.b16 %v1107
    %v1748 = vunpack.c.h.b16 %v1107
    %v1749 = vunpack.c.l.b16 %v1108
    %v1750 = vunpack.c.h.b16 %v1108
    %v1751 = vunpack.c.l.b16 %v1109
    %v1752 = vunpack.c.h.b16 %v1109
    %v1753 = vunpack.c.l.b16 %v1110
    %v1754 = vunpack.c.h.b16 %v1110
    %v1755 = vunpack.c.l.b16 %v1111
    %v1756 = vunpack.c.h.b16 %v1111
    %v1757 = vunpack.c.l.b16 %v1112
    %v1758 = vunpack.c.h.b16 %v1112
    %v1759 = vunpack.c.l.b16 %v1113
    %v1760 = vunpack.c.h.b16 %v1113
    %v1761 = vunpack.c.l.b16 %v1114
    %v1762 = vunpack.c.h.b16 %v1114
    %v1763 = vunpack.c.l.b16 %v1115
    %v1764 = vunpack.c.h.b16 %v1115
    %v1765 = vunpack.c.l.b16 %v1116
    %v1766 = vunpack.c.h.b16 %v1116
    %v1767 = vunpack.c.l.b16 %v1117
    %v1768 = vunpack.c.h.b16 %v1117
    %v1769 = vunpack.c.l.b16 %v1118
    %v1770 = vunpack.c.h.b16 %v1118
    %v1771 = vunpack.c.l.b16 %v1119
    %v1772 = vunpack.c.h.b16 %v1119
    %v1773 = vunpack.c.l.b16 %v1120
    %v1774 = vunpack.c.h.b16 %v1120
    %v1775 = vunpack.c.l.b16 %v1121
    %v1776 = vunpack.c.h.b16 %v1121
    %v1777 = vunpack.c.l.b16 %v1122
    %v1778 = vunpack.c.h.b16 %v1122
    %v1779 = vunpack.c.l.b16 %v1123
    %v1780 = vunpack.c.h.b16 %v1123
    %v1781 = vunpack.c.l.b16 %v1124
    %v1782 = vunpack.c.h.b16 %v1124
    %v1783 = vunpack.c.l.b16 %v1125
    %v1784 = vunpack.c.h.b16 %v1125
    %v1785 = vunpack.c.l.b16 %v1126
    %v1786 = vunpack.c.h.b16 %v1126
    %v1787 = vunpack.c.l.b16 %v1127
    %v1788 = vunpack.c.h.b16 %v1127
    %v1789 = vunpack.c.l.b16 %v1128
    %v1790 = vunpack.c.h.b16 %v1128
    %v1791 = vunpack.c.l.b16 %v1129
    %v1792 = vunpack.c.h.b16 %v1129
    %v1793 = vunpack.c.l.b16 %v1130
    %v1794 = vunpack.c.h.b16 %v1130
    %v1795 = vunpack.c.l.b16 %v1131
    %v1796 = vunpack.c.h.b16 %v1131
    %v1797 = vunpack.c.l.b16 %v1132
    %v1798 = vunpack.c.h.b16 %v1132
    %v1799 = vunpack.c.l.b16 %v1133
    %v1800 = vunpack.c.h.b16 %v1133
    %v1801 = vunpack.c.l.b16 %v1134
    %v1802 = vunpack.c.h.b16 %v1134
    %v1803 = vunpack.c.l.b16 %v1135
    %v1804 = vunpack.c.h.b16 %v1135
    %v1805 = vunpack.c.l.b16 %v1136
    %v1806 = vunpack.c.h.b16 %v1136
    %v1807 = vunpack.c.l.b16 %v1137
    %v1808 = vunpack.c.h.b16 %v1137
    %v1809 = vunpack.c.l.b16 %v1138
    %v1810 = vunpack.c.h.b16 %v1138
    %v1811 = vunpack.c.l.b16 %v1139
    %v1812 = vunpack.c.h.b16 %v1139
    %v1813 = vunpack.c.l.b16 %v1140
    %v1814 = vunpack.c.h.b16 %v1140
    %v1815 = vunpack.c.l.b16 %v1141
    %v1816 = vunpack.c.h.b16 %v1141
    %v1817 = vunpack.c.l.b16 %v1142
    %v1818 = vunpack.c.h.b16 %v1142
    %v1819 = vunpack.c.l.b16 %v1143
    %v1820 = vunpack.c.h.b16 %v1143
    %v1821 = vunpack.c.l.b16 %v1144
    %v1822 = vunpack.c.h.b16 %v1144
    %v1823 = vunpack.c.l.b16 %v1145
    %v1824 = vunpack.c.h.b16 %v1145
    %v1825 = vunpack.c.l.b16 %v1146
    %v1826 = vunpack.c.h.b16 %v1146
    %v1827 = vunpack.c.l.b16 %v1147
    %v1828 = vunpack.c.h.b16 %v1147
    %v1829 = vunpack.c.l.b16 %v1148
    %v1830 = vunpack.c.h.b16 %v1148
    %v1831 = vunpack.c.l.b16 %v1149
    %v1832 = vunpack.c.h.b16 %v1149
    %v1833 = vunpack.c.l.b16 %v1150
    %v1834 = vunpack.c.h.b16 %v1150
    %v1835 = vunpack.c.l.b16 %v1151
    %v1836 = vunpack.c.h.b16 %v1151
    %v1837 = vunpack.c.l.b16 %v1152
    %v1838 = vunpack.c.h.b16 %v1152
    %v1839 = vunpack.c.l.b16 %v1153
    %v1840 = vunpack.c.h.b16 %v1153
    %v1841 = vunpack.c.l.b16 %v1154
    %v1842 = vunpack.c.h.b16 %v1154
    %v1843 = vunpack.c.l.b16 %v1155
    %v1844 = vunpack.c.h.b16 %v1155
    %v1845 = vunpack.c.l.b16 %v1156
    %v1846 = vunpack.c.h.b16 %v1156
    %v1847 = vunpack.c.l.b16 %v1157
    %v1848 = vunpack.c.h.b16 %v1157
    %v1849 = vunpack.c.l.b16 %v1158
    %v1850 = vunpack.c.h.b16 %v1158
    %v1851 = vunpack.c.l.b16 %v1159
    %v1852 = vunpack.c.h.b16 %v1159
    %v1853 = vunpack.c.l.b16 %v1160
    %v1854 = vunpack.c.h.b16 %v1160
    %v1855 = vunpack.c.l.b16 %v1161
    %v1856 = vunpack.c.h.b16 %v1161
    %v1857 = vunpack.c.l.b16 %v1162
    %v1858 = vunpack.c.h.b16 %v1162
    %v1859 = vunpack.c.l.b16 %v1163
    %v1860 = vunpack.c.h.b16 %v1163
    %v1861 = vunpack.c.l.b16 %v1164
    %v1862 = vunpack.c.h.b16 %v1164
    %v1863 = vunpack.c.l.b16 %v1165
    %v1864 = vunpack.c.h.b16 %v1165
    %v1865 = vunpack.c.l.b16 %v1166
    %v1866 = vunpack.c.h.b16 %v1166
    %v1867 = vunpack.c.l.b16 %v1167
    %v1868 = vunpack.c.h.b16 %v1167
    %v1869 = vunpack.c.l.b16 %v1168
    %v1870 = vunpack.c.h.b16 %v1168
    %v1871 = vunpack.c.l.b16 %v1169
    %v1872 = vunpack.c.h.b16 %v1169
    %v1873 = vunpack.c.l.b16 %v1170
    %v1874 = vunpack.c.h.b16 %v1170
    %v1875 = vunpack.c.l.b16 %v1171
    %v1876 = vunpack.c.h.b16 %v1171
    %v1877 = vunpack.c.l.b16 %v1172
    %v1878 = vunpack.c.h.b16 %v1172
    %v1879 = vunpack.c.l.b16 %v1173
    %v1880 = vunpack.c.h.b16 %v1173
    %v1881 = vunpack.c.l.b16 %v1174
    %v1882 = vunpack.c.h.b16 %v1174
    %v1883 = vunpack.c.l.b16 %v1175
    %v1884 = vunpack.c.h.b16 %v1175
    %v1885 = vunpack.c.l.b16 %v1176
    %v1886 = vunpack.c.h.b16 %v1176
    %v1887 = vunpack.c.l.b16 %v1177
    %v1888 = vunpack.c.h.b16 %v1177
    %v1889 = vunpack.c.l.b16 %v1178
    %v1890 = vunpack.c.h.b16 %v1178
    %v1891 = vunpack.c.l.b16 %v1179
    %v1892 = vunpack.c.h.b16 %v1179
    %v1893 = vunpack.c.l.b16 %v1180
    %v1894 = vunpack.c.h.b16 %v1180
    %v1895 = vunpack.c.l.b16 %v1181
    %v1896 = vunpack.c.h.b16 %v1181
    %v1897 = vunpack.c.l.b16 %v1182
    %v1898 = vunpack.c.h.b16 %v1182
    %v1899 = vunpack.c.l.b16 %v1183
    %v1900 = vunpack.c.h.b16 %v1183
    %v1901 = vunpack.c.l.b16 %v1184
    %v1902 = vunpack.c.h.b16 %v1184
    %v1903 = vunpack.c.l.b16 %v1185
    %v1904 = vunpack.c.h.b16 %v1185
    %v1905 = vunpack.c.l.b16 %v1186
    %v1906 = vunpack.c.h.b16 %v1186
    %v1907 = vunpack.c.l.b16 %v1187
    %v1908 = vunpack.c.h.b16 %v1187
    %v1909 = vunpack.c.l.b16 %v1188
    %v1910 = vunpack.c.h.b16 %v1188
    %v1911 = vunpack.c.l.b16 %v1189
    %v1912 = vunpack.c.h.b16 %v1189
    %v1913 = vunpack.c.l.b16 %v1190
    %v1914 = vunpack.c.h.b16 %v1190
    %v1915 = vunpack.c.l.b16 %v1191
    %v1916 = vunpack.c.h.b16 %v1191
    %v1917 = vunpack.c.l.b16 %v1192
    %v1918 = vunpack.c.h.b16 %v1192
    %v1919 = vunpack.c.l.b16 %v1193
    %v1920 = vunpack.c.h.b16 %v1193
    %v1921 = vunpack.c.l.b16 %v1194
    %v1922 = vunpack.c.h.b16 %v1194
    %v1923 = vunpack.c.l.b16 %v1195
    %v1924 = vunpack.c.h.b16 %v1195
    %v1925 = vunpack.c.l.b16 %v1196
    %v1926 = vunpack.c.h.b16 %v1196
    %v1927 = vunpack.c.l.b16 %v1197
    %v1928 = vunpack.c.h.b16 %v1197
    %v1929 = vunpack.c.l.b16 %v1198
    %v1930 = vunpack.c.h.b16 %v1198
    %v1931 = vunpack.c.l.b16 %v1199
    %v1932 = vunpack.c.h.b16 %v1199
    %v1933 = vunpack.c.l.b16 %v1200
    %v1934 = vunpack.c.h.b16 %v1200
    %v1935 = vunpack.c.l.b16 %v1201
    %v1936 = vunpack.c.h.b16 %v1201
    %v1937 = vunpack.c.l.b16 %v1202
    %v1938 = vunpack.c.h.b16 %v1202
    %v1939 = vunpack.c.l.b16 %v1203
    %v1940 = vunpack.c.h.b16 %v1203
    %v1941 = vunpack.c.l.b16 %v1204
    %v1942 = vunpack.c.h.b16 %v1204
    %v1943 = vunpack.c.l.b16 %v1205
    %v1944 = vunpack.c.h.b16 %v1205
    %v1945 = vunpack.c.l.b16 %v1206
    %v1946 = vunpack.c.h.b16 %v1206
    %v1947 = vunpack.c.l.b16 %v1207
    %v1948 = vunpack.c.h.b16 %v1207
    %v1949 = vunpack.c.l.b16 %v1208
    %v1950 = vunpack.c.h.b16 %v1208
    %v1951 = vunpack.c.l.b16 %v1209
    %v1952 = vunpack.c.h.b16 %v1209
    %v1953 = vunpack.c.l.b16 %v1210
    %v1954 = vunpack.c.h.b16 %v1210
    %v1955 = vunpack.c.l.b16 %v1211
    %v1956 = vunpack.c.h.b16 %v1211
    %v1957 = vunpack.c.l.b16 %v1212
    %v1958 = vunpack.c.h.b16 %v1212
    %v1959 = vunpack.c.l.b16 %v1213
    %v1960 = vunpack.c.h.b16 %v1213
    %v1961 = vunpack.c.l.b16 %v1214
    %v1962 = vunpack.c.h.b16 %v1214
    %v1963 = vunpack.c.l.b16 %v1215
    %v1964 = vunpack.c.h.b16 %v1215
    %v1965 = vunpack.c.l.b16 %v1216
    %v1966 = vunpack.c.h.b16 %v1216
    %v1967 = vunpack.c.l.b16 %v1217
    %v1968 = vunpack.c.h.b16 %v1217
    %v1969 = vunpack.c.l.b16 %v1218
    %v1970 = vunpack.c.h.b16 %v1218
    %v1971 = vunpack.c.l.b16 %v1219
    %v1972 = vunpack.c.h.b16 %v1219
    %v1973 = vunpack.c.l.b16 %v1220
    %v1974 = vunpack.c.h.b16 %v1220
    %v1975 = vunpack.c.l.b16 %v1221
    %v1976 = vunpack.c.h.b16 %v1221
    %v1977 = vunpack.c.l.b16 %v1222
    %v1978 = vunpack.c.h.b16 %v1222
    %v1979 = vunpack.c.l.b16 %v1223
    %v1980 = vunpack.c.h.b16 %v1223
    %v1981 = vunpack.c.l.b16 %v1224
    %v1982 = vunpack.c.h.b16 %v1224
    %v1983 = vunpack.c.l.b16 %v1225
    %v1984 = vunpack.c.h.b16 %v1225
    %v1985 = vunpack.c.l.b16 %v1226
    %v1986 = vunpack.c.h.b16 %v1226
    %v1987 = vunpack.c.l.b16 %v1227
    %v1988 = vunpack.c.h.b16 %v1227
    %v1989 = vunpack.c.l.b16 %v1228
    %v1990 = vunpack.c.h.b16 %v1228
    %v1991 = vunpack.c.l.b16 %v1229
    %v1992 = vunpack.c.h.b16 %v1229
    %v1993 = vunpack.c.l.b16 %v1230
    %v1994 = vunpack.c.h.b16 %v1230
    %v1995 = vunpack.c.l.b16 %v1231
    %v1996 = vunpack.c.h.b16 %v1231
    %v1997 = vunpack.c.l.b16 %v1232
    %v1998 = vunpack.c.h.b16 %v1232
    %v1999 = vunpack.c.l.b16 %v1233
    %v2000 = vunpack.c.h.b16 %v1233
    %v2001 = vunpack.c.l.b16 %v1234
    %v2002 = vunpack.c.h.b16 %v1234
    %v2003 = vpack.c.b16 %v1499, %v1491
    %v2004 = vpack.c.b16 %v1500, %v1492
    %v2005 = vpack.c.b16 %v1501, %v1493
    %v2006 = vpack.c.b16 %v1502, %v1494
    %v2007 = vpack.c.b16 %v1503, %v1495
    %v2008 = vpack.c.b16 %v1504, %v1496
    %v2009 = vpack.c.b16 %v1505, %v1497
    %v2010 = vpack.c.b16 %v1506, %v1498
    %v2011 = vpack.c.b16 %v1515, %v1507
    %v2012 = vpack.c.b16 %v1516, %v1508
    %v2013 = vpack.c.b16 %v1517, %v1509
    %v2014 = vpack.c.b16 %v1518, %v1510
    %v2015 = vpack.c.b16 %v1519, %v1511
    %v2016 = vpack.c.b16 %v1520, %v1512
    %v2017 = vpack.c.b16 %v1521, %v1513
    %v2018 = vpack.c.b16 %v1522, %v1514
    %v2019 = vpack.c.b16 %v1531, %v1523
    %v2020 = vpack.c.b16 %v1532, %v1524
    %v2021 = vpack.c.b16 %v1533, %v1525
    %v2022 = vpack.c.b16 %v1534, %v1526
    %v2023 = vpack.c.b16 %v1535, %v1527
    %v2024 = vpack.c.b16 %v1536, %v1528
    %v2025 = vpack.c.b16 %v1537, %v1529
    %v2026 = vpack.c.b16 %v1538, %v1530
    %v2027 = vpack.c.b16 %v1547, %v1539
    %v2028 = vpack.c.b16 %v1548, %v1540
    %v2029 = vpack.c.b16 %v1549, %v1541
    %v2030 = vpack.c.b16 %v1550, %v1542
    %v2031 = vpack.c.b16 %v1551, %v1543
    %v2032 = vpack.c.b16 %v1552, %v1544
    %v2033 = vpack.c.b16 %v1553, %v1545
    %v2034 = vpack.c.b16 %v1554, %v1546
    %v2035 = vpack.c.b16 %v1563, %v1555
    %v2036 = vpack.c.b16 %v1564, %v1556
    %v2037 = vpack.c.b16 %v1565, %v1557
    %v2038 = vpack.c.b16 %v1566, %v1558
    %v2039 = vpack.c.b16 %v1567, %v1559
    %v2040 = vpack.c.b16 %v1568, %v1560
    %v2041 = vpack.c.b16 %v1569, %v1561
    %v2042 = vpack.c.b16 %v1570, %v1562
    %v2043 = vpack.c.b16 %v1579, %v1571
    %v2044 = vpack.c.b16 %v1580, %v1572
    %v2045 = vpack.c.b16 %v1581, %v1573
    %v2046 = vpack.c.b16 %v1582, %v1574
    %v2047 = vpack.c.b16 %v1583, %v1575
    %v2048 = vpack.c.b16 %v1584, %v1576
    %v2049 = vpack.c.b16 %v1585, %v1577
    %v2050 = vpack.c.b16 %v1586, %v1578
    %v2051 = vpack.c.b16 %v1595, %v1587
    %v2052 = vpack.c.b16 %v1596, %v1588
    %v2053 = vpack.c.b16 %v1597, %v1589
    %v2054 = vpack.c.b16 %v1598, %v1590
    %v2055 = vpack.c.b16 %v1599, %v1591
    %v2056 = vpack.c.b16 %v1600, %v1592
    %v2057 = vpack.c.b16 %v1601, %v1593
    %v2058 = vpack.c.b16 %v1602, %v1594
    %v2059 = vpack.c.b16 %v1611, %v1603
    %v2060 = vpack.c.b16 %v1612, %v1604
    %v2061 = vpack.c.b16 %v1613, %v1605
    %v2062 = vpack.c.b16 %v1614, %v1606
    %v2063 = vpack.c.b16 %v1615, %v1607
    %v2064 = vpack.c.b16 %v1616, %v1608
    %v2065 = vpack.c.b16 %v1617, %v1609
    %v2066 = vpack.c.b16 %v1618, %v1610
    %v2067 = vpack.c.b16 %v1627, %v1619
    %v2068 = vpack.c.b16 %v1628, %v1620
    %v2069 = vpack.c.b16 %v1629, %v1621
    %v2070 = vpack.c.b16 %v1630, %v1622
    %v2071 = vpack.c.b16 %v1631, %v1623
    %v2072 = vpack.c.b16 %v1632, %v1624
    %v2073 = vpack.c.b16 %v1633, %v1625
    %v2074 = vpack.c.b16 %v1634, %v1626
    %v2075 = vpack.c.b16 %v1643, %v1635
    %v2076 = vpack.c.b16 %v1644, %v1636
    %v2077 = vpack.c.b16 %v1645, %v1637
    %v2078 = vpack.c.b16 %v1646, %v1638
    %v2079 = vpack.c.b16 %v1647, %v1639
    %v2080 = vpack.c.b16 %v1648, %v1640
    %v2081 = vpack.c.b16 %v1649, %v1641
    %v2082 = vpack.c.b16 %v1650, %v1642
    %v2083 = vpack.c.b16 %v1659, %v1651
    %v2084 = vpack.c.b16 %v1660, %v1652
    %v2085 = vpack.c.b16 %v1661, %v1653
    %v2086 = vpack.c.b16 %v1662, %v1654
    %v2087 = vpack.c.b16 %v1663, %v1655
    %v2088 = vpack.c.b16 %v1664, %v1656
    %v2089 = vpack.c.b16 %v1665, %v1657
    %v2090 = vpack.c.b16 %v1666, %v1658
    %v2091 = vpack.c.b16 %v1675, %v1667
    %v2092 = vpack.c.b16 %v1676, %v1668
    %v2093 = vpack.c.b16 %v1677, %v1669
    %v2094 = vpack.c.b16 %v1678, %v1670
    %v2095 = vpack.c.b16 %v1679, %v1671
    %v2096 = vpack.c.b16 %v1680, %v1672
    %v2097 = vpack.c.b16 %v1681, %v1673
    %v2098 = vpack.c.b16 %v1682, %v1674
    %v2099 = vpack.c.b16 %v1691, %v1683
    %v2100 = vpack.c.b16 %v1692, %v1684
    %v2101 = vpack.c.b16 %v1693, %v1685
    %v2102 = vpack.c.b16 %v1694, %v1686
    %v2103 = vpack.c.b16 %v1695, %v1687
    %v2104 = vpack.c.b16 %v1696, %v1688
    %v2105 = vpack.c.b16 %v1697, %v1689
    %v2106 = vpack.c.b16 %v1698, %v1690
    %v2107 = vpack.c.b16 %v1707, %v1699
    %v2108 = vpack.c.b16 %v1708, %v1700
    %v2109 = vpack.c.b16 %v1709, %v1701
    %v2110 = vpack.c.b16 %v1710, %v1702
    %v2111 = vpack.c.b16 %v1711, %v1703
    %v2112 = vpack.c.b16 %v1712, %v1704
    %v2113 = vpack.c.b16 %v1713, %v1705
    %v2114 = vpack.c.b16 %v1714, %v1706
    %v2115 = vpack.c.b16 %v1723, %v1715
    %v2116 = vpack.c.b16 %v1724, %v1716
    %v2117 = vpack.c.b16 %v1725, %v1717
    %v2118 = vpack.c.b16 %v1726, %v1718
    %v2119 = vpack.c.b16 %v1727, %v1719
    %v2120 = vpack.c.b16 %v1728, %v1720
    %v2121 = vpack.c.b16 %v1729, %v1721
    %v2122 = vpack.c.b16 %v1730, %v1722
    %v2123 = vpack.c.b16 %v1739, %v1731
    %v2124 = vpack.c.b16 %v1740, %v1732
    %v2125 = vpack.c.b16 %v1741, %v1733
    %v2126 = vpack.c.b16 %v1742, %v1734
    %v2127 = vpack.c.b16 %v1743, %v1735
    %v2128 = vpack.c.b16 %v1744, %v1736
    %v2129 = vpack.c.b16 %v1745, %v1737
    %v2130 = vpack.c.b16 %v1746, %v1738
    %v2131 = vpack.c.b16 %v1755, %v1747
    %v2132 = vpack.c.b16 %v1756, %v1748
    %v2133 = vpack.c.b16 %v1757, %v1749
    %v2134 = vpack.c.b16 %v1758, %v1750
    %v2135 = vpack.c.b16 %v1759, %v1751
    %v2136 = vpack.c.b16 %v1760, %v1752
    %v2137 = vpack.c.b16 %v1761, %v1753
    %v2138 = vpack.c.b16 %v1762, %v1754
    %v2139 = vpack.c.b16 %v1771, %v1763
    %v2140 = vpack.c.b16 %v1772, %v1764
    %v2141 = vpack.c.b16 %v1773, %v1765
    %v2142 = vpack.c.b16 %v1774, %v1766
    %v2143 = vpack.c.b16 %v1775, %v1767
    %v2144 = vpack.c.b16 %v1776, %v1768
    %v2145 = vpack.c.b16 %v1777, %v1769
    %v2146 = vpack.c.b16 %v1778, %v1770
    %v2147 = vpack.c.b16 %v1787, %v1779
    %v2148 = vpack.c.b16 %v1788, %v1780
    %v2149 = vpack.c.b16 %v1789, %v1781
    %v2150 = vpack.c.b16 %v1790, %v1782
    %v2151 = vpack.c.b16 %v1791, %v1783
    %v2152 = vpack.c.b16 %v1792, %v1784
    %v2153 = vpack.c.b16 %v1793, %v1785
    %v2154 = vpack.c.b16 %v1794, %v1786
    %v2155 = vpack.c.b16 %v1803, %v1795
    %v2156 = vpack.c.b16 %v1804, %v1796
    %v2157 = vpack.c.b16 %v1805, %v1797
    %v2158 = vpack.c.b16 %v1806, %v1798
    %v2159 = vpack.c.b16 %v1807, %v1799
    %v2160 = vpack.c.b16 %v1808, %v1800
    %v2161 = vpack.c.b16 %v1809, %v1801
    %v2162 = vpack.c.b16 %v1810, %v1802
    %v2163 = vpack.c.b16 %v1819, %v1811
    %v2164 = vpack.c.b16 %v1820, %v1812
    %v2165 = vpack.c.b16 %v1821, %v1813
    %v2166 = vpack.c.b16 %v1822, %v1814
    %v2167 = vpack.c.b16 %v1823, %v1815
    %v2168 = vpack.c.b16 %v1824, %v1816
    %v2169 = vpack.c.b16 %v1825, %v1817
    %v2170 = vpack.c.b16 %v1826, %v1818
    %v2171 = vpack.c.b16 %v1835, %v1827
    %v2172 = vpack.c.b16 %v1836, %v1828
    %v2173 = vpack.c.b16 %v1837, %v1829
    %v2174 = vpack.c.b16 %v1838, %v1830
    %v2175 = vpack.c.b16 %v1839, %v1831
    %v2176 = vpack.c.b16 %v1840, %v1832
    %v2177 = vpack.c.b16 %v1841, %v1833
    %v2178 = vpack.c.b16 %v1842, %v1834
    %v2179 = vpack.c.b16 %v1851, %v1843
    %v2180 = vpack.c.b16 %v1852, %v1844
    %v2181 = vpack.c.b16 %v1853, %v1845
    %v2182 = vpack.c.b16 %v1854, %v1846
    %v2183 = vpack.c.b16 %v1855, %v1847
    %v2184 = vpack.c.b16 %v1856, %v1848
    %v2185 = vpack.c.b16 %v1857, %v1849
    %v2186 = vpack.c.b16 %v1858, %v1850
    %v2187 = vpack.c.b16 %v1867, %v1859
    %v2188 = vpack.c.b16 %v1868, %v1860
    %v2189 = vpack.c.b16 %v1869, %v1861
    %v2190 = vpack.c.b16 %v1870, %v1862
    %v2191 = vpack.c.b16 %v1871, %v1863
    %v2192 = vpack.c.b16 %v1872, %v1864
    %v2193 = vpack.c.b16 %v1873, %v1865
    %v2194 = vpack.c.b16 %v1874, %v1866
    %v2195 = vpack.c.b16 %v1883, %v1875
    %v2196 = vpack.c.b16 %v1884, %v1876
    %v2197 = vpack.c.b16 %v1885, %v1877
    %v2198 = vpack.c.b16 %v1886, %v1878
    %v2199 = vpack.c.b16 %v1887, %v1879
    %v2200 = vpack.c.b16 %v1888, %v1880
    %v2201 = vpack.c.b16 %v1889, %v1881
    %v2202 = vpack.c.b16 %v1890, %v1882
    %v2203 = vpack.c.b16 %v1899, %v1891
    %v2204 = vpack.c.b16 %v1900, %v1892
    %v2205 = vpack.c.b16 %v1901, %v1893
    %v2206 = vpack.c.b16 %v1902, %v1894
    %v2207 = vpack.c.b16 %v1903, %v1895
    %v2208 = vpack.c.b16 %v1904, %v1896
    %v2209 = vpack.c.b16 %v1905, %v1897
    %v2210 = vpack.c.b16 %v1906, %v1898
    %v2211 = vpack.c.b16 %v1915, %v1907
    %v2212 = vpack.c.b16 %v1916, %v1908
    %v2213 = vpack.c.b16 %v1917, %v1909
    %v2214 = vpack.c.b16 %v1918, %v1910
    %v2215 = vpack.c.b16 %v1919, %v1911
    %v2216 = vpack.c.b16 %v1920, %v1912
    %v2217 = vpack.c.b16 %v1921, %v1913
    %v2218 = vpack.c.b16 %v1922, %v1914
    %v2219 = vpack.c.b16 %v1931, %v1923
    %v2220 = vpack.c.b16 %v1932, %v1924
    %v2221 = vpack.c.b16 %v1933, %v1925
    %v2222 = vpack.c.b16 %v1934, %v1926
    %v2223 = vpack.c.b16 %v1935, %v1927
    %v2224 = vpack.c.b16 %v1936, %v1928
    %v2225 = vpack.c.b16 %v1937, %v1929
    %v2226 = vpack.c.b16 %v1938, %v1930
    %v2227 = vpack.c.b16 %v1947, %v1939
    %v2228 = vpack.c.b16 %v1948, %v1940
    %v2229 = vpack.c.b16 %v1949, %v1941
    %v2230 = vpack.c.b16 %v1950, %v1942
    %v2231 = vpack.c.b16 %v1951, %v1943
    %v2232 = vpack.c.b16 %v1952, %v1944
    %v2233 = vpack.c.b16 %v1953, %v1945
    %v2234 = vpack.c.b16 %v1954, %v1946
    %v2235 = vpack.c.b16 %v1963, %v1955
    %v2236 = vpack.c.b16 %v1964, %v1956
    %v2237 = vpack.c.b16 %v1965, %v1957
    %v2238 = vpack.c.b16 %v1966, %v1958
    %v2239 = vpack.c.b16 %v1967, %v1959
    %v2240 = vpack.c.b16 %v1968, %v1960
    %v2241 = vpack.c.b16 %v1969, %v1961
    %v2242 = vpack.c.b16 %v1970, %v1962
    %v2243 = vpack.c.b16 %v1979, %v1971
    %v2244 = vpack.c.b16 %v1980, %v1972
    %v2245 = vpack.c.b16 %v1981, %v1973
    %v2246 = vpack.c.b16 %v1982, %v1974
    %v2247 = vpack.c.b16 %v1983, %v1975
    %v2248 = vpack.c.b16 %v1984, %v1976
    %v2249 = vpack.c.b16 %v1985, %v1977
    %v2250 = vpack.c.b16 %v1986, %v1978
    %v2251 = vpack.c.b16 %v1995, %v1987
    %v2252 = vpack.c.b16 %v1996, %v1988
    %v2253 = vpack.c.b16 %v1997, %v1989
    %v2254 = vpack.c.b16 %v1998, %v1990
    %v2255 = vpack.c.b16 %v1999, %v1991
    %v2256 = vpack.c.b16 %v2000, %v1992
    %v2257 = vpack.c.b16 %v2001, %v1993
    %v2258 = vpack.c.b16 %v2002, %v1994
    %2515 = vmatprep.subr.bf16.mxu0 %v2004
    %2516 = vmatpush1.bf16.msra.mxu0 %v2003
    %2517 = vmatprep.subr.bf16.mxu0 %v2012
    %2518 = vmatpush1.bf16.msra.mxu0 %v2011
    %2519 = vmatprep.subr.bf16.mxu0 %v2020
    %2520 = vmatpush1.bf16.msra.mxu0 %v2019
    %2521 = vmatprep.subr.bf16.mxu0 %v2028
    %2522 = vmatpush1.bf16.msra.mxu0 %v2027
    %2523 = vmatprep.subr.bf16.mxu0 %v2036
    %2524 = vmatpush1.bf16.msra.mxu0 %v2035
    %2525 = vmatprep.subr.bf16.mxu0 %v2044
    %2526 = vmatpush1.bf16.msra.mxu0 %v2043
    %2527 = vmatprep.subr.bf16.mxu0 %v2052
    %2528 = vmatpush1.bf16.msra.mxu0 %v2051
    %2529 = vmatprep.subr.bf16.mxu0 %v2060
    %2530 = vmatpush1.bf16.msra.mxu0 %v2059
    %2531 = vmatprep.subr.bf16.mxu0 %v2068
    %2532 = vmatpush1.bf16.msra.mxu0 %v2067
    %2533 = vmatprep.subr.bf16.mxu0 %v2076
    %2534 = vmatpush1.bf16.msra.mxu0 %v2075
    %2535 = vmatprep.subr.bf16.mxu0 %v2084
    %2536 = vmatpush1.bf16.msra.mxu0 %v2083
    %2537 = vmatprep.subr.bf16.mxu0 %v2092
    %2538 = vmatpush1.bf16.msra.mxu0 %v2091
    %2539 = vmatprep.subr.bf16.mxu0 %v2100
    %2540 = vmatpush1.bf16.msra.mxu0 %v2099
    %2541 = vmatprep.subr.bf16.mxu0 %v2108
    %2542 = vmatpush1.bf16.msra.mxu0 %v2107
    %2543 = vmatprep.subr.bf16.mxu0 %v2116
    %2544 = vmatpush1.bf16.msra.mxu0 %v2115
    %2545 = vmatprep.subr.bf16.mxu0 %v2124
    %2546 = vmatpush1.bf16.msra.mxu0 %v2123
    %2547 = vmatprep.mubr.bf16.mxu0 %v976
    %2548 = vmatmul.mubr.bf16.gmra.mrb[0].mxu0 %v975
    %v2549 = vpop.f32.mrb[0].mxu0
    %v2550 = vadd.f32 0.0, %v2549
    %v2551 = vpop.f32.mrb[0].mxu0
    %v2552 = vadd.f32 0.0, %v2551
    %v2553 = vpop.f32.mrb[0].mxu0
    %v2554 = vadd.f32 0.0, %v2553
    %v2555 = vpop.f32.mrb[0].mxu0
    %v2556 = vadd.f32 0.0, %v2555
    %2557 = vdwg.mxu0
    %2558 = vmatprep.subr.bf16.mxu0 %v2132
    %2559 = vmatpush1.bf16.msra.mxu0 %v2131
    %2560 = vmatprep.subr.bf16.mxu0 %v2140
    %2561 = vmatpush1.bf16.msra.mxu0 %v2139
    %2562 = vmatprep.subr.bf16.mxu0 %v2148
    %2563 = vmatpush1.bf16.msra.mxu0 %v2147
    %2564 = vmatprep.subr.bf16.mxu0 %v2156
    %2565 = vmatpush1.bf16.msra.mxu0 %v2155
    %2566 = vmatprep.subr.bf16.mxu0 %v2164
    %2567 = vmatpush1.bf16.msra.mxu0 %v2163
    %2568 = vmatprep.subr.bf16.mxu0 %v2172
    %2569 = vmatpush1.bf16.msra.mxu0 %v2171
    %2570 = vmatprep.subr.bf16.mxu0 %v2180
    %2571 = vmatpush1.bf16.msra.mxu0 %v2179
    %2572 = vmatprep.subr.bf16.mxu0 %v2188
    %2573 = vmatpush1.bf16.msra.mxu0 %v2187
    %2574 = vmatprep.subr.bf16.mxu0 %v2196
    %2575 = vmatpush1.bf16.msra.mxu0 %v2195
    %2576 = vmatprep.subr.bf16.mxu0 %v2204
    %2577 = vmatpush1.bf16.msra.mxu0 %v2203
    %2578 = vmatprep.subr.bf16.mxu0 %v2212
    %2579 = vmatpush1.bf16.msra.mxu0 %v2211
    %2580 = vmatprep.subr.bf16.mxu0 %v2220
    %2581 = vmatpush1.bf16.msra.mxu0 %v2219
    %2582 = vmatprep.subr.bf16.mxu0 %v2228
    %2583 = vmatpush1.bf16.msra.mxu0 %v2227
    %2584 = vmatprep.subr.bf16.mxu0 %v2236
    %2585 = vmatpush1.bf16.msra.mxu0 %v2235
    %2586 = vmatprep.subr.bf16.mxu0 %v2244
    %2587 = vmatpush1.bf16.msra.mxu0 %v2243
    %2588 = vmatprep.subr.bf16.mxu0 %v2252
    %2589 = vmatpush1.bf16.msra.mxu0 %v2251
    %2590 = vmatprep.mubr.bf16.mxu0 %v978
    %2591 = vmatmul.mubr.bf16.gmra.mrb[0].mxu0 %v977
    %v2592 = vpop.f32.mrb[0].mxu0
    %v2593 = vadd.f32 %v2550, %v2592
    %v2594 = vpop.f32.mrb[0].mxu0
    %v2595 = vadd.f32 %v2552, %v2594
    %v2596 = vpop.f32.mrb[0].mxu0
    %v2597 = vadd.f32 %v2554, %v2596
    %v2598 = vpop.f32.mrb[0].mxu0
    %v2599 = vadd.f32 %v2556, %v2598
    %2600 = vdwg.mxu0
    %2601 = vmatprep.subr.bf16.mxu0 %v2006
    %2602 = vmatpush1.bf16.msra.mxu0 %v2005
    %2603 = vmatprep.subr.bf16.mxu0 %v2014
    %2604 = vmatpush1.bf16.msra.mxu0 %v2013
    %2605 = vmatprep.subr.bf16.mxu0 %v2022
    %2606 = vmatpush1.bf16.msra.mxu0 %v2021
    %2607 = vmatprep.subr.bf16.mxu0 %v2030
    %2608 = vmatpush1.bf16.msra.mxu0 %v2029
    %2609 = vmatprep.subr.bf16.mxu0 %v2038
    %2610 = vmatpush1.bf16.msra.mxu0 %v2037
    %2611 = vmatprep.subr.bf16.mxu0 %v2046
    %2612 = vmatpush1.bf16.msra.mxu0 %v2045
    %2613 = vmatprep.subr.bf16.mxu0 %v2054
    %2614 = vmatpush1.bf16.msra.mxu0 %v2053
    %2615 = vmatprep.subr.bf16.mxu0 %v2062
    %2616 = vmatpush1.bf16.msra.mxu0 %v2061
    %2617 = vmatprep.subr.bf16.mxu0 %v2070
    %2618 = vmatpush1.bf16.msra.mxu0 %v2069
    %2619 = vmatprep.subr.bf16.mxu0 %v2078
    %2620 = vmatpush1.bf16.msra.mxu0 %v2077
    %2621 = vmatprep.subr.bf16.mxu0 %v2086
    %2622 = vmatpush1.bf16.msra.mxu0 %v2085
    %2623 = vmatprep.subr.bf16.mxu0 %v2094
    %2624 = vmatpush1.bf16.msra.mxu0 %v2093
    %2625 = vmatprep.subr.bf16.mxu0 %v2102
    %2626 = vmatpush1.bf16.msra.mxu0 %v2101
    %2627 = vmatprep.subr.bf16.mxu0 %v2110
    %2628 = vmatpush1.bf16.msra.mxu0 %v2109
    %2629 = vmatprep.subr.bf16.mxu0 %v2118
    %2630 = vmatpush1.bf16.msra.mxu0 %v2117
    %2631 = vmatprep.subr.bf16.mxu0 %v2126
    %2632 = vmatpush1.bf16.msra.mxu0 %v2125
    %2633 = vmatprep.mubr.bf16.mxu0 %v976
    %2634 = vmatmul.mubr.bf16.gmra.mrb[0].mxu0 %v975
    %v2635 = vpop.f32.mrb[0].mxu0
    %v2636 = vadd.f32 0.0, %v2635
    %v2637 = vpop.f32.mrb[0].mxu0
    %v2638 = vadd.f32 0.0, %v2637
    %v2639 = vpop.f32.mrb[0].mxu0
    %v2640 = vadd.f32 0.0, %v2639
    %v2641 = vpop.f32.mrb[0].mxu0
    %v2642 = vadd.f32 0.0, %v2641
    %2643 = vdwg.mxu0
    %2644 = vmatprep.subr.bf16.mxu0 %v2134
    %2645 = vmatpush1.bf16.msra.mxu0 %v2133
    %2646 = vmatprep.subr.bf16.mxu0 %v2142
    %2647 = vmatpush1.bf16.msra.mxu0 %v2141
    %2648 = vmatprep.subr.bf16.mxu0 %v2150
    %2649 = vmatpush1.bf16.msra.mxu0 %v2149
    %2650 = vmatprep.subr.bf16.mxu0 %v2158
    %2651 = vmatpush1.bf16.msra.mxu0 %v2157
    %2652 = vmatprep.subr.bf16.mxu0 %v2166
    %2653 = vmatpush1.bf16.msra.mxu0 %v2165
    %2654 = vmatprep.subr.bf16.mxu0 %v2174
    %2655 = vmatpush1.bf16.msra.mxu0 %v2173
    %2656 = vmatprep.subr.bf16.mxu0 %v2182
    %2657 = vmatpush1.bf16.msra.mxu0 %v2181
    %2658 = vmatprep.subr.bf16.mxu0 %v2190
    %2659 = vmatpush1.bf16.msra.mxu0 %v2189
    %2660 = vmatprep.subr.bf16.mxu0 %v2198
    %2661 = vmatpush1.bf16.msra.mxu0 %v2197
    %2662 = vmatprep.subr.bf16.mxu0 %v2206
    %2663 = vmatpush1.bf16.msra.mxu0 %v2205
    %2664 = vmatprep.subr.bf16.mxu0 %v2214
    %2665 = vmatpush1.bf16.msra.mxu0 %v2213
    %2666 = vmatprep.subr.bf16.mxu0 %v2222
    %2667 = vmatpush1.bf16.msra.mxu0 %v2221
    %2668 = vmatprep.subr.bf16.mxu0 %v2230
    %2669 = vmatpush1.bf16.msra.mxu0 %v2229
    %2670 = vmatprep.subr.bf16.mxu0 %v2238
    %2671 = vmatpush1.bf16.msra.mxu0 %v2237
    %2672 = vmatprep.subr.bf16.mxu0 %v2246
    %2673 = vmatpush1.bf16.msra.mxu0 %v2245
    %2674 = vmatprep.subr.bf16.mxu0 %v2254
    %2675 = vmatpush1.bf16.msra.mxu0 %v2253
    %2676 = vmatprep.mubr.bf16.mxu0 %v978
    %2677 = vmatmul.mubr.bf16.gmra.mrb[0].mxu0 %v977
    %v2678 = vpop.f32.mrb[0].mxu0
    %v2679 = vadd.f32 %v2636, %v2678
    %v2680 = vpop.f32.mrb[0].mxu0
    %v2681 = vadd.f32 %v2638, %v2680
    %v2682 = vpop.f32.mrb[0].mxu0
    %v2683 = vadd.f32 %v2640, %v2682
    %v2684 = vpop.f32.mrb[0].mxu0
    %v2685 = vadd.f32 %v2642, %v2684
    %2686 = vdwg.mxu0
    %2687 = vmatprep.subr.bf16.mxu0 %v2008
    %2688 = vmatpush1.bf16.msra.mxu0 %v2007
    %2689 = vmatprep.subr.bf16.mxu0 %v2016
    %2690 = vmatpush1.bf16.msra.mxu0 %v2015
    %2691 = vmatprep.subr.bf16.mxu0 %v2024
    %2692 = vmatpush1.bf16.msra.mxu0 %v2023
    %2693 = vmatprep.subr.bf16.mxu0 %v2032
    %2694 = vmatpush1.bf16.msra.mxu0 %v2031
    %2695 = vmatprep.subr.bf16.mxu0 %v2040
    %2696 = vmatpush1.bf16.msra.mxu0 %v2039
    %2697 = vmatprep.subr.bf16.mxu0 %v2048
    %2698 = vmatpush1.bf16.msra.mxu0 %v2047
    %2699 = vmatprep.subr.bf16.mxu0 %v2056
    %2700 = vmatpush1.bf16.msra.mxu0 %v2055
    %2701 = vmatprep.subr.bf16.mxu0 %v2064
    %2702 = vmatpush1.bf16.msra.mxu0 %v2063
    %2703 = vmatprep.subr.bf16.mxu0 %v2072
    %2704 = vmatpush1.bf16.msra.mxu0 %v2071
    %2705 = vmatprep.subr.bf16.mxu0 %v2080
    %2706 = vmatpush1.bf16.msra.mxu0 %v2079
    %2707 = vmatprep.subr.bf16.mxu0 %v2088
    %2708 = vmatpush1.bf16.msra.mxu0 %v2087
    %2709 = vmatprep.subr.bf16.mxu0 %v2096
    %2710 = vmatpush1.bf16.msra.mxu0 %v2095
    %2711 = vmatprep.subr.bf16.mxu0 %v2104
    %2712 = vmatpush1.bf16.msra.mxu0 %v2103
    %2713 = vmatprep.subr.bf16.mxu0 %v2112
    %2714 = vmatpush1.bf16.msra.mxu0 %v2111
    %2715 = vmatprep.subr.bf16.mxu0 %v2120
    %2716 = vmatpush1.bf16.msra.mxu0 %v2119
    %2717 = vmatprep.subr.bf16.mxu0 %v2128
    %2718 = vmatpush1.bf16.msra.mxu0 %v2127
    %2719 = vmatprep.mubr.bf16.mxu0 %v976
    %2720 = vmatmul.mubr.bf16.gmra.mrb[0].mxu0 %v975
    %v2721 = vpop.f32.mrb[0].mxu0
    %v2722 = vadd.f32 0.0, %v2721
    %v2723 = vpop.f32.mrb[0].mxu0
    %v2724 = vadd.f32 0.0, %v2723
    %v2725 = vpop.f32.mrb[0].mxu0
    %v2726 = vadd.f32 0.0, %v2725
    %v2727 = vpop.f32.mrb[0].mxu0
    %v2728 = vadd.f32 0.0, %v2727
    %2729 = vdwg.mxu0
    %2730 = vmatprep.subr.bf16.mxu0 %v2136
    %2731 = vmatpush1.bf16.msra.mxu0 %v2135
    %2732 = vmatprep.subr.bf16.mxu0 %v2144
    %2733 = vmatpush1.bf16.msra.mxu0 %v2143
    %2734 = vmatprep.subr.bf16.mxu0 %v2152
    %2735 = vmatpush1.bf16.msra.mxu0 %v2151
    %2736 = vmatprep.subr.bf16.mxu0 %v2160
    %2737 = vmatpush1.bf16.msra.mxu0 %v2159
    %2738 = vmatprep.subr.bf16.mxu0 %v2168
    %2739 = vmatpush1.bf16.msra.mxu0 %v2167
    %2740 = vmatprep.subr.bf16.mxu0 %v2176
    %2741 = vmatpush1.bf16.msra.mxu0 %v2175
    %2742 = vmatprep.subr.bf16.mxu0 %v2184
    %2743 = vmatpush1.bf16.msra.mxu0 %v2183
    %2744 = vmatprep.subr.bf16.mxu0 %v2192
    %2745 = vmatpush1.bf16.msra.mxu0 %v2191
    %2746 = vmatprep.subr.bf16.mxu0 %v2200
    %2747 = vmatpush1.bf16.msra.mxu0 %v2199
    %2748 = vmatprep.subr.bf16.mxu0 %v2208
    %2749 = vmatpush1.bf16.msra.mxu0 %v2207
    %2750 = vmatprep.subr.bf16.mxu0 %v2216
    %2751 = vmatpush1.bf16.msra.mxu0 %v2215
    %2752 = vmatprep.subr.bf16.mxu0 %v2224
    %2753 = vmatpush1.bf16.msra.mxu0 %v2223
    %2754 = vmatprep.subr.bf16.mxu0 %v2232
    %2755 = vmatpush1.bf16.msra.mxu0 %v2231
    %2756 = vmatprep.subr.bf16.mxu0 %v2240
    %2757 = vmatpush1.bf16.msra.mxu0 %v2239
    %2758 = vmatprep.subr.bf16.mxu0 %v2248
    %2759 = vmatpush1.bf16.msra.mxu0 %v2247
    %2760 = vmatprep.subr.bf16.mxu0 %v2256
    %2761 = vmatpush1.bf16.msra.mxu0 %v2255
    %2762 = vmatprep.mubr.bf16.mxu0 %v978
    %2763 = vmatmul.mubr.bf16.gmra.mrb[0].mxu0 %v977
    %v2764 = vpop.f32.mrb[0].mxu0
    %v2765 = vadd.f32 %v2722, %v2764
    %v2766 = vpop.f32.mrb[0].mxu0
    %v2767 = vadd.f32 %v2724, %v2766
    %v2768 = vpop.f32.mrb[0].mxu0
    %v2769 = vadd.f32 %v2726, %v2768
    %v2770 = vpop.f32.mrb[0].mxu0
    %v2771 = vadd.f32 %v2728, %v2770
    %2772 = vdwg.mxu0
    %2773 = vmatprep.subr.bf16.mxu0 %v2010
    %2774 = vmatpush1.bf16.msra.mxu0 %v2009
    %2775 = vmatprep.subr.bf16.mxu0 %v2018
    %2776 = vmatpush1.bf16.msra.mxu0 %v2017
    %2777 = vmatprep.subr.bf16.mxu0 %v2026
    %2778 = vmatpush1.bf16.msra.mxu0 %v2025
    %2779 = vmatprep.subr.bf16.mxu0 %v2034
    %2780 = vmatpush1.bf16.msra.mxu0 %v2033
    %2781 = vmatprep.subr.bf16.mxu0 %v2042
    %2782 = vmatpush1.bf16.msra.mxu0 %v2041
    %2783 = vmatprep.subr.bf16.mxu0 %v2050
    %2784 = vmatpush1.bf16.msra.mxu0 %v2049
    %2785 = vmatprep.subr.bf16.mxu0 %v2058
    %2786 = vmatpush1.bf16.msra.mxu0 %v2057
    %2787 = vmatprep.subr.bf16.mxu0 %v2066
    %2788 = vmatpush1.bf16.msra.mxu0 %v2065
    %2789 = vmatprep.subr.bf16.mxu0 %v2074
    %2790 = vmatpush1.bf16.msra.mxu0 %v2073
    %2791 = vmatprep.subr.bf16.mxu0 %v2082
    %2792 = vmatpush1.bf16.msra.mxu0 %v2081
    %2793 = vmatprep.subr.bf16.mxu0 %v2090
    %2794 = vmatpush1.bf16.msra.mxu0 %v2089
    %2795 = vmatprep.subr.bf16.mxu0 %v2098
    %2796 = vmatpush1.bf16.msra.mxu0 %v2097
    %2797 = vmatprep.subr.bf16.mxu0 %v2106
    %2798 = vmatpush1.bf16.msra.mxu0 %v2105
    %2799 = vmatprep.subr.bf16.mxu0 %v2114
    %2800 = vmatpush1.bf16.msra.mxu0 %v2113
    %2801 = vmatprep.subr.bf16.mxu0 %v2122
    %2802 = vmatpush1.bf16.msra.mxu0 %v2121
    %2803 = vmatprep.subr.bf16.mxu0 %v2130
    %2804 = vmatpush1.bf16.msra.mxu0 %v2129
    %2805 = vmatprep.mubr.bf16.mxu0 %v976
    %2806 = vmatmul.mubr.bf16.gmra.mrb[0].mxu0 %v975
    %v2807 = vpop.f32.mrb[0].mxu0
    %v2808 = vadd.f32 0.0, %v2807
    %v2809 = vpop.f32.mrb[0].mxu0
    %v2810 = vadd.f32 0.0, %v2809
    %v2811 = vpop.f32.mrb[0].mxu0
    %v2812 = vadd.f32 0.0, %v2811
    %v2813 = vpop.f32.mrb[0].mxu0
    %v2814 = vadd.f32 0.0, %v2813
    %2815 = vdwg.mxu0
    %2816 = vmatprep.subr.bf16.mxu0 %v2138
    %2817 = vmatpush1.bf16.msra.mxu0 %v2137
    %2818 = vmatprep.subr.bf16.mxu0 %v2146
    %2819 = vmatpush1.bf16.msra.mxu0 %v2145
    %2820 = vmatprep.subr.bf16.mxu0 %v2154
    %2821 = vmatpush1.bf16.msra.mxu0 %v2153
    %2822 = vmatprep.subr.bf16.mxu0 %v2162
    %2823 = vmatpush1.bf16.msra.mxu0 %v2161
    %2824 = vmatprep.subr.bf16.mxu0 %v2170
    %2825 = vmatpush1.bf16.msra.mxu0 %v2169
    %2826 = vmatprep.subr.bf16.mxu0 %v2178
    %2827 = vmatpush1.bf16.msra.mxu0 %v2177
    %2828 = vmatprep.subr.bf16.mxu0 %v2186
    %2829 = vmatpush1.bf16.msra.mxu0 %v2185
    %2830 = vmatprep.subr.bf16.mxu0 %v2194
    %2831 = vmatpush1.bf16.msra.mxu0 %v2193
    %2832 = vmatprep.subr.bf16.mxu0 %v2202
    %2833 = vmatpush1.bf16.msra.mxu0 %v2201
    %2834 = vmatprep.subr.bf16.mxu0 %v2210
    %2835 = vmatpush1.bf16.msra.mxu0 %v2209
    %2836 = vmatprep.subr.bf16.mxu0 %v2218
    %2837 = vmatpush1.bf16.msra.mxu0 %v2217
    %2838 = vmatprep.subr.bf16.mxu0 %v2226
    %2839 = vmatpush1.bf16.msra.mxu0 %v2225
    %2840 = vmatprep.subr.bf16.mxu0 %v2234
    %2841 = vmatpush1.bf16.msra.mxu0 %v2233
    %2842 = vmatprep.subr.bf16.mxu0 %v2242
    %2843 = vmatpush1.bf16.msra.mxu0 %v2241
    %2844 = vmatprep.subr.bf16.mxu0 %v2250
    %2845 = vmatpush1.bf16.msra.mxu0 %v2249
    %2846 = vmatprep.subr.bf16.mxu0 %v2258
    %2847 = vmatpush1.bf16.msra.mxu0 %v2257
    %2848 = vmatprep.mubr.bf16.mxu0 %v978
    %2849 = vmatmul.mubr.bf16.gmra.mrb[0].mxu0 %v977
    %v2850 = vpop.f32.mrb[0].mxu0
    %v2851 = vadd.f32 %v2808, %v2850
    %v2852 = vpop.f32.mrb[0].mxu0
    %v2853 = vadd.f32 %v2810, %v2852
    %v2854 = vpop.f32.mrb[0].mxu0
    %v2855 = vadd.f32 %v2812, %v2854
    %v2856 = vpop.f32.mrb[0].mxu0
    %v2857 = vadd.f32 %v2814, %v2856
    %2858 = vdwg.mxu0
    %v2859 = vld [vmem:[%s10] sm:$0xff]
    %v2861 = vlaneseq
    %v2862 = vshrl.u32 %v2861, 7
    %v2863 = vsub.s32 0, %v2862
    %v2864 = vrot.slane %v2859, %v2863
    %v2865 = vlaneseq
    %v2866 = vshrl.u32 %v2865, 7
    %v2867 = vsub.s32 1, %v2866
    %v2868 = vrot.slane %v2859, %v2867
    %v2869 = vlaneseq
    %v2870 = vshrl.u32 %v2869, 7
    %v2871 = vsub.s32 2, %v2870
    %v2872 = vrot.slane %v2859, %v2871
    %v2873 = vlaneseq
    %v2874 = vshrl.u32 %v2873, 7
    %v2875 = vsub.s32 3, %v2874
    %v2876 = vrot.slane %v2859, %v2875
    %v2877 = vlaneseq
    %v2878 = vshrl.u32 %v2877, 7
    %v2879 = vsub.s32 4, %v2878
    %v2880 = vrot.slane %v2859, %v2879
    %v2881 = vlaneseq
    %v2882 = vshrl.u32 %v2881, 7
    %v2883 = vsub.s32 5, %v2882
    %v2884 = vrot.slane %v2859, %v2883
    %v2885 = vlaneseq
    %v2886 = vshrl.u32 %v2885, 7
    %v2887 = vsub.s32 6, %v2886
    %v2888 = vrot.slane %v2859, %v2887
    %v2889 = vlaneseq
    %v2890 = vshrl.u32 %v2889, 7
    %v2891 = vsub.s32 7, %v2890
    %v2892 = vrot.slane %v2859, %v2891
    %v2901 = vmul.f32 %v2593, %v2864
    %v2902 = vmul.f32 %v2595, %v2868
    %v2903 = vmul.f32 %v2679, %v2872
    %v2904 = vmul.f32 %v2681, %v2876
    %v2905 = vmul.f32 %v2765, %v2880
    %v2906 = vmul.f32 %v2767, %v2884
    %v2907 = vmul.f32 %v2851, %v2888
    %v2908 = vmul.f32 %v2853, %v2892
    %v2909 = vmul.f32 %v2597, %v2864
    %v2910 = vmul.f32 %v2599, %v2868
    %v2911 = vmul.f32 %v2683, %v2872
    %v2912 = vmul.f32 %v2685, %v2876
    %v2913 = vmul.f32 %v2769, %v2880
    %v2914 = vmul.f32 %v2771, %v2884
    %v2915 = vmul.f32 %v2855, %v2888
    %v2916 = vmul.f32 %v2857, %v2892
    %v2917 = vld [vmem:[%s11] sm:$0xff]
    %v2919 = vlaneseq
    %v2920 = vshrl.u32 %v2919, 7
    %v2921 = vsub.s32 0, %v2920
    %v2922 = vrot.slane %v2917, %v2921
    %v2923 = vlaneseq
    %v2924 = vshrl.u32 %v2923, 7
    %v2925 = vsub.s32 1, %v2924
    %v2926 = vrot.slane %v2917, %v2925
    %v2927 = vlaneseq
    %v2928 = vshrl.u32 %v2927, 7
    %v2929 = vsub.s32 2, %v2928
    %v2930 = vrot.slane %v2917, %v2929
    %v2931 = vlaneseq
    %v2932 = vshrl.u32 %v2931, 7
    %v2933 = vsub.s32 3, %v2932
    %v2934 = vrot.slane %v2917, %v2933
    %v2935 = vlaneseq
    %v2936 = vshrl.u32 %v2935, 7
    %v2937 = vsub.s32 4, %v2936
    %v2938 = vrot.slane %v2917, %v2937
    %v2939 = vlaneseq
    %v2940 = vshrl.u32 %v2939, 7
    %v2941 = vsub.s32 5, %v2940
    %v2942 = vrot.slane %v2917, %v2941
    %v2943 = vlaneseq
    %v2944 = vshrl.u32 %v2943, 7
    %v2945 = vsub.s32 6, %v2944
    %v2946 = vrot.slane %v2917, %v2945
    %v2947 = vlaneseq
    %v2948 = vshrl.u32 %v2947, 7
    %v2949 = vsub.s32 7, %v2948
    %v2950 = vrot.slane %v2917, %v2949
    %v2959 = vadd.f32 %v2901, %v2922
    %v2960 = vadd.f32 %v2902, %v2926
    %v2961 = vadd.f32 %v2903, %v2930
    %v2962 = vadd.f32 %v2904, %v2934
    %v2963 = vadd.f32 %v2905, %v2938
    %v2964 = vadd.f32 %v2906, %v2942
    %v2965 = vadd.f32 %v2907, %v2946
    %v2966 = vadd.f32 %v2908, %v2950
    %v2967 = vadd.f32 %v2909, %v2922
    %v2968 = vadd.f32 %v2910, %v2926
    %v2969 = vadd.f32 %v2911, %v2930
    %v2970 = vadd.f32 %v2912, %v2934
    %v2971 = vadd.f32 %v2913, %v2938
    %v2972 = vadd.f32 %v2914, %v2942
    %v2973 = vadd.f32 %v2915, %v2946
    %v2974 = vadd.f32 %v2916, %v2950
    %vm2975 = vcmp.gt.f32.partialorder %v2959, 0.0
    %vm2976 = vcmp.gt.f32.partialorder %v2960, 0.0
    %vm2977 = vcmp.gt.f32.partialorder %v2961, 0.0
    %vm2978 = vcmp.gt.f32.partialorder %v2962, 0.0
    %vm2979 = vcmp.gt.f32.partialorder %v2963, 0.0
    %vm2980 = vcmp.gt.f32.partialorder %v2964, 0.0
    %vm2981 = vcmp.gt.f32.partialorder %v2965, 0.0
    %vm2982 = vcmp.gt.f32.partialorder %v2966, 0.0
    %vm2983 = vcmp.gt.f32.partialorder %v2967, 0.0
    %vm2984 = vcmp.gt.f32.partialorder %v2968, 0.0
    %vm2985 = vcmp.gt.f32.partialorder %v2969, 0.0
    %vm2986 = vcmp.gt.f32.partialorder %v2970, 0.0
    %vm2987 = vcmp.gt.f32.partialorder %v2971, 0.0
    %vm2988 = vcmp.gt.f32.partialorder %v2972, 0.0
    %vm2989 = vcmp.gt.f32.partialorder %v2973, 0.0
    %vm2990 = vcmp.gt.f32.partialorder %v2974, 0.0
    %v2991 = vmul.f32 %v2959, 0.2
    %v2992 = vmul.f32 %v2960, 0.2
    %v2993 = vmul.f32 %v2961, 0.2
    %v2994 = vmul.f32 %v2962, 0.2
    %v2995 = vmul.f32 %v2963, 0.2
    %v2996 = vmul.f32 %v2964, 0.2
    %v2997 = vmul.f32 %v2965, 0.2
    %v2998 = vmul.f32 %v2966, 0.2
    %v2999 = vmul.f32 %v2967, 0.2
    %v3000 = vmul.f32 %v2968, 0.2
    %v3001 = vmul.f32 %v2969, 0.2
    %v3002 = vmul.f32 %v2970, 0.2
    %v3003 = vmul.f32 %v2971, 0.2
    %v3004 = vmul.f32 %v2972, 0.2
    %v3005 = vmul.f32 %v2973, 0.2
    %v3006 = vmul.f32 %v2974, 0.2
    %v3007 = vsel %vm2975, %v2959, %v2991
    %v3008 = vsel %vm2976, %v2960, %v2992
    %v3009 = vsel %vm2977, %v2961, %v2993
    %v3010 = vsel %vm2978, %v2962, %v2994
    %v3011 = vsel %vm2979, %v2963, %v2995
    %v3012 = vsel %vm2980, %v2964, %v2996
    %v3013 = vsel %vm2981, %v2965, %v2997
    %v3014 = vsel %vm2982, %v2966, %v2998
    %v3015 = vsel %vm2983, %v2967, %v2999
    %v3016 = vsel %vm2984, %v2968, %v3000
    %v3017 = vsel %vm2985, %v2969, %v3001
    %v3018 = vsel %vm2986, %v2970, %v3002
    %v3019 = vsel %vm2987, %v2971, %v3003
    %v3020 = vsel %vm2988, %v2972, %v3004
    %v3021 = vsel %vm2989, %v2973, %v3005
    %v3022 = vsel %vm2990, %v2974, %v3006
    %v3023 = vpack.c.bf16 %v3015, %v3007
    %v3024 = vpack.c.bf16 %v3016, %v3008
    %v3025 = vpack.c.bf16 %v3017, %v3009
    %v3026 = vpack.c.bf16 %v3018, %v3010
    %v3027 = vpack.c.bf16 %v3019, %v3011
    %v3028 = vpack.c.bf16 %v3020, %v3012
    %v3029 = vpack.c.bf16 %v3021, %v3013
    %v3030 = vpack.c.bf16 %v3022, %v3014
    %v3031 = vld [vmem:[#allocation14] sm:$0xff]
    %v3032 = vld [vmem:[#allocation14 + $0x8] sm:$0xff]
    %v3033 = vld [vmem:[#allocation14 + $0x10] sm:$0xff]
    %v3034 = vld [vmem:[#allocation14 + $0x18] sm:$0xff]
    %v3035 = vld [vmem:[#allocation14 + $0x20] sm:$0xff]
    %v3036 = vld [vmem:[#allocation14 + $0x28] sm:$0xff]
    %v3037 = vld [vmem:[#allocation14 + $0x30] sm:$0xff]
    %v3038 = vld [vmem:[#allocation14 + $0x38] sm:$0xff]
    %v3039 = vld [vmem:[#allocation14 + $0x40] sm:$0xff]
    %v3040 = vld [vmem:[#allocation14 + $0x48] sm:$0xff]
    %v3041 = vld [vmem:[#allocation14 + $0x50] sm:$0xff]
    %v3042 = vld [vmem:[#allocation14 + $0x58] sm:$0xff]
    %v3043 = vld [vmem:[#allocation14 + $0x60] sm:$0xff]
    %v3044 = vld [vmem:[#allocation14 + $0x68] sm:$0xff]
    %v3045 = vld [vmem:[#allocation14 + $0x70] sm:$0xff]
    %v3046 = vld [vmem:[#allocation14 + $0x78] sm:$0xff]
    %v3047 = vld [vmem:[#allocation14 + $0x80] sm:$0xff]
    %v3048 = vld [vmem:[#allocation14 + $0x88] sm:$0xff]
    %v3049 = vld [vmem:[#allocation14 + $0x90] sm:$0xff]
    %v3050 = vld [vmem:[#allocation14 + $0x98] sm:$0xff]
    %v3051 = vld [vmem:[#allocation14 + $0xa0] sm:$0xff]
    %v3052 = vld [vmem:[#allocation14 + $0xa8] sm:$0xff]
    %v3053 = vld [vmem:[#allocation14 + $0xb0] sm:$0xff]
    %v3054 = vld [vmem:[#allocation14 + $0xb8] sm:$0xff]
    %v3055 = vld [vmem:[#allocation14 + $0xc0] sm:$0xff]
    %v3056 = vld [vmem:[#allocation14 + $0xc8] sm:$0xff]
    %v3057 = vld [vmem:[#allocation14 + $0xd0] sm:$0xff]
    %v3058 = vld [vmem:[#allocation14 + $0xd8] sm:$0xff]
    %v3059 = vld [vmem:[#allocation14 + $0xe0] sm:$0xff]
    %v3060 = vld [vmem:[#allocation14 + $0xe8] sm:$0xff]
    %v3061 = vld [vmem:[#allocation14 + $0xf0] sm:$0xff]
    %v3062 = vld [vmem:[#allocation14 + $0xf8] sm:$0xff]
    %v3063 = vld [vmem:[#allocation14 + $0x100] sm:$0xff]
    %v3064 = vld [vmem:[#allocation14 + $0x108] sm:$0xff]
    %v3065 = vld [vmem:[#allocation14 + $0x110] sm:$0xff]
    %v3066 = vld [vmem:[#allocation14 + $0x118] sm:$0xff]
    %v3067 = vld [vmem:[#allocation14 + $0x120] sm:$0xff]
    %v3068 = vld [vmem:[#allocation14 + $0x128] sm:$0xff]
    %v3069 = vld [vmem:[#allocation14 + $0x130] sm:$0xff]
    %v3070 = vld [vmem:[#allocation14 + $0x138] sm:$0xff]
    %v3071 = vld [vmem:[#allocation14 + $0x140] sm:$0xff]
    %v3072 = vld [vmem:[#allocation14 + $0x148] sm:$0xff]
    %v3073 = vld [vmem:[#allocation14 + $0x150] sm:$0xff]
    %v3074 = vld [vmem:[#allocation14 + $0x158] sm:$0xff]
    %v3075 = vld [vmem:[#allocation14 + $0x160] sm:$0xff]
    %v3076 = vld [vmem:[#allocation14 + $0x168] sm:$0xff]
    %v3077 = vld [vmem:[#allocation14 + $0x170] sm:$0xff]
    %v3078 = vld [vmem:[#allocation14 + $0x178] sm:$0xff]
    %v3079 = vld [vmem:[#allocation14 + $0x180] sm:$0xff]
    %v3080 = vld [vmem:[#allocation14 + $0x188] sm:$0xff]
    %v3081 = vld [vmem:[#allocation14 + $0x190] sm:$0xff]
    %v3082 = vld [vmem:[#allocation14 + $0x198] sm:$0xff]
    %v3083 = vld [vmem:[#allocation14 + $0x1a0] sm:$0xff]
    %v3084 = vld [vmem:[#allocation14 + $0x1a8] sm:$0xff]
    %v3085 = vld [vmem:[#allocation14 + $0x1b0] sm:$0xff]
    %v3086 = vld [vmem:[#allocation14 + $0x1b8] sm:$0xff]
    %v3087 = vld [vmem:[#allocation14 + $0x1c0] sm:$0xff]
    %v3088 = vld [vmem:[#allocation14 + $0x1c8] sm:$0xff]
    %v3089 = vld [vmem:[#allocation14 + $0x1d0] sm:$0xff]
    %v3090 = vld [vmem:[#allocation14 + $0x1d8] sm:$0xff]
    %v3091 = vld [vmem:[#allocation14 + $0x1e0] sm:$0xff]
    %v3092 = vld [vmem:[#allocation14 + $0x1e8] sm:$0xff]
    %v3093 = vld [vmem:[#allocation14 + $0x1f0] sm:$0xff]
    %v3094 = vld [vmem:[#allocation14 + $0x1f8] sm:$0xff]
    %v3095 = vld [vmem:[#allocation14 + $0x200] sm:$0xff]
    %v3096 = vld [vmem:[#allocation14 + $0x208] sm:$0xff]
    %v3097 = vld [vmem:[#allocation14 + $0x210] sm:$0xff]
    %v3098 = vld [vmem:[#allocation14 + $0x218] sm:$0xff]
    %v3099 = vld [vmem:[#allocation14 + $0x220] sm:$0xff]
    %v3100 = vld [vmem:[#allocation14 + $0x228] sm:$0xff]
    %v3101 = vld [vmem:[#allocation14 + $0x230] sm:$0xff]
    %v3102 = vld [vmem:[#allocation14 + $0x238] sm:$0xff]
    %v3103 = vld [vmem:[#allocation14 + $0x240] sm:$0xff]
    %v3104 = vld [vmem:[#allocation14 + $0x248] sm:$0xff]
    %v3105 = vld [vmem:[#allocation14 + $0x250] sm:$0xff]
    %v3106 = vld [vmem:[#allocation14 + $0x258] sm:$0xff]
    %v3107 = vld [vmem:[#allocation14 + $0x260] sm:$0xff]
    %v3108 = vld [vmem:[#allocation14 + $0x268] sm:$0xff]
    %v3109 = vld [vmem:[#allocation14 + $0x270] sm:$0xff]
    %v3110 = vld [vmem:[#allocation14 + $0x278] sm:$0xff]
    %v3111 = vld [vmem:[#allocation14 + $0x280] sm:$0xff]
    %v3112 = vld [vmem:[#allocation14 + $0x288] sm:$0xff]
    %v3113 = vld [vmem:[#allocation14 + $0x290] sm:$0xff]
    %v3114 = vld [vmem:[#allocation14 + $0x298] sm:$0xff]
    %v3115 = vld [vmem:[#allocation14 + $0x2a0] sm:$0xff]
    %v3116 = vld [vmem:[#allocation14 + $0x2a8] sm:$0xff]
    %v3117 = vld [vmem:[#allocation14 + $0x2b0] sm:$0xff]
    %v3118 = vld [vmem:[#allocation14 + $0x2b8] sm:$0xff]
    %v3119 = vld [vmem:[#allocation14 + $0x2c0] sm:$0xff]
    %v3120 = vld [vmem:[#allocation14 + $0x2c8] sm:$0xff]
    %v3121 = vld [vmem:[#allocation14 + $0x2d0] sm:$0xff]
    %v3122 = vld [vmem:[#allocation14 + $0x2d8] sm:$0xff]
    %v3123 = vld [vmem:[#allocation14 + $0x2e0] sm:$0xff]
    %v3124 = vld [vmem:[#allocation14 + $0x2e8] sm:$0xff]
    %v3125 = vld [vmem:[#allocation14 + $0x2f0] sm:$0xff]
    %v3126 = vld [vmem:[#allocation14 + $0x2f8] sm:$0xff]
    %v3127 = vld [vmem:[#allocation14 + $0x300] sm:$0xff]
    %v3128 = vld [vmem:[#allocation14 + $0x308] sm:$0xff]
    %v3129 = vld [vmem:[#allocation14 + $0x310] sm:$0xff]
    %v3130 = vld [vmem:[#allocation14 + $0x318] sm:$0xff]
    %v3131 = vld [vmem:[#allocation14 + $0x320] sm:$0xff]
    %v3132 = vld [vmem:[#allocation14 + $0x328] sm:$0xff]
    %v3133 = vld [vmem:[#allocation14 + $0x330] sm:$0xff]
    %v3134 = vld [vmem:[#allocation14 + $0x338] sm:$0xff]
    %v3135 = vld [vmem:[#allocation14 + $0x340] sm:$0xff]
    %v3136 = vld [vmem:[#allocation14 + $0x348] sm:$0xff]
    %v3137 = vld [vmem:[#allocation14 + $0x350] sm:$0xff]
    %v3138 = vld [vmem:[#allocation14 + $0x358] sm:$0xff]
    %v3139 = vld [vmem:[#allocation14 + $0x360] sm:$0xff]
    %v3140 = vld [vmem:[#allocation14 + $0x368] sm:$0xff]
    %v3141 = vld [vmem:[#allocation14 + $0x370] sm:$0xff]
    %v3142 = vld [vmem:[#allocation14 + $0x378] sm:$0xff]
    %v3143 = vld [vmem:[#allocation14 + $0x380] sm:$0xff]
    %v3144 = vld [vmem:[#allocation14 + $0x388] sm:$0xff]
    %v3145 = vld [vmem:[#allocation14 + $0x390] sm:$0xff]
    %v3146 = vld [vmem:[#allocation14 + $0x398] sm:$0xff]
    %v3147 = vld [vmem:[#allocation14 + $0x3a0] sm:$0xff]
    %v3148 = vld [vmem:[#allocation14 + $0x3a8] sm:$0xff]
    %v3149 = vld [vmem:[#allocation14 + $0x3b0] sm:$0xff]
    %v3150 = vld [vmem:[#allocation14 + $0x3b8] sm:$0xff]
    %v3151 = vld [vmem:[#allocation14 + $0x3c0] sm:$0xff]
    %v3152 = vld [vmem:[#allocation14 + $0x3c8] sm:$0xff]
    %v3153 = vld [vmem:[#allocation14 + $0x3d0] sm:$0xff]
    %v3154 = vld [vmem:[#allocation14 + $0x3d8] sm:$0xff]
    %v3155 = vld [vmem:[#allocation14 + $0x3e0] sm:$0xff]
    %v3156 = vld [vmem:[#allocation14 + $0x3e8] sm:$0xff]
    %v3157 = vld [vmem:[#allocation14 + $0x3f0] sm:$0xff]
    %v3158 = vld [vmem:[#allocation14 + $0x3f8] sm:$0xff]
    %v3159 = vld [vmem:[%s13] sm:$0x3]
    %v3161 = vlaneseq
    %v3162 = vshrl.u32 %v3161, 7
    %v3163 = vsub.s32 0, %v3162
    %v3164 = vrot.slane %v3159, %v3163
    %v3165 = vlaneseq
    %v3166 = vshrl.u32 %v3165, 7
    %v3167 = vsub.s32 1, %v3166
    %v3168 = vrot.slane %v3159, %v3167
    %v3299 = vunpack.c.l.b16 %v3031
    %v3300 = vunpack.c.h.b16 %v3031
    %v3301 = vunpack.c.l.b16 %v3032
    %v3302 = vunpack.c.h.b16 %v3032
    %v3303 = vunpack.c.l.b16 %v3033
    %v3304 = vunpack.c.h.b16 %v3033
    %v3305 = vunpack.c.l.b16 %v3034
    %v3306 = vunpack.c.h.b16 %v3034
    %v3307 = vunpack.c.l.b16 %v3035
    %v3308 = vunpack.c.h.b16 %v3035
    %v3309 = vunpack.c.l.b16 %v3036
    %v3310 = vunpack.c.h.b16 %v3036
    %v3311 = vunpack.c.l.b16 %v3037
    %v3312 = vunpack.c.h.b16 %v3037
    %v3313 = vunpack.c.l.b16 %v3038
    %v3314 = vunpack.c.h.b16 %v3038
    %v3315 = vunpack.c.l.b16 %v3039
    %v3316 = vunpack.c.h.b16 %v3039
    %v3317 = vunpack.c.l.b16 %v3040
    %v3318 = vunpack.c.h.b16 %v3040
    %v3319 = vunpack.c.l.b16 %v3041
    %v3320 = vunpack.c.h.b16 %v3041
    %v3321 = vunpack.c.l.b16 %v3042
    %v3322 = vunpack.c.h.b16 %v3042
    %v3323 = vunpack.c.l.b16 %v3043
    %v3324 = vunpack.c.h.b16 %v3043
    %v3325 = vunpack.c.l.b16 %v3044
    %v3326 = vunpack.c.h.b16 %v3044
    %v3327 = vunpack.c.l.b16 %v3045
    %v3328 = vunpack.c.h.b16 %v3045
    %v3329 = vunpack.c.l.b16 %v3046
    %v3330 = vunpack.c.h.b16 %v3046
    %v3331 = vunpack.c.l.b16 %v3047
    %v3332 = vunpack.c.h.b16 %v3047
    %v3333 = vunpack.c.l.b16 %v3048
    %v3334 = vunpack.c.h.b16 %v3048
    %v3335 = vunpack.c.l.b16 %v3049
    %v3336 = vunpack.c.h.b16 %v3049
    %v3337 = vunpack.c.l.b16 %v3050
    %v3338 = vunpack.c.h.b16 %v3050
    %v3339 = vunpack.c.l.b16 %v3051
    %v3340 = vunpack.c.h.b16 %v3051
    %v3341 = vunpack.c.l.b16 %v3052
    %v3342 = vunpack.c.h.b16 %v3052
    %v3343 = vunpack.c.l.b16 %v3053
    %v3344 = vunpack.c.h.b16 %v3053
    %v3345 = vunpack.c.l.b16 %v3054
    %v3346 = vunpack.c.h.b16 %v3054
    %v3347 = vunpack.c.l.b16 %v3055
    %v3348 = vunpack.c.h.b16 %v3055
    %v3349 = vunpack.c.l.b16 %v3056
    %v3350 = vunpack.c.h.b16 %v3056
    %v3351 = vunpack.c.l.b16 %v3057
    %v3352 = vunpack.c.h.b16 %v3057
    %v3353 = vunpack.c.l.b16 %v3058
    %v3354 = vunpack.c.h.b16 %v3058
    %v3355 = vunpack.c.l.b16 %v3059
    %v3356 = vunpack.c.h.b16 %v3059
    %v3357 = vunpack.c.l.b16 %v3060
    %v3358 = vunpack.c.h.b16 %v3060
    %v3359 = vunpack.c.l.b16 %v3061
    %v3360 = vunpack.c.h.b16 %v3061
    %v3361 = vunpack.c.l.b16 %v3062
    %v3362 = vunpack.c.h.b16 %v3062
    %v3363 = vunpack.c.l.b16 %v3063
    %v3364 = vunpack.c.h.b16 %v3063
    %v3365 = vunpack.c.l.b16 %v3064
    %v3366 = vunpack.c.h.b16 %v3064
    %v3367 = vunpack.c.l.b16 %v3065
    %v3368 = vunpack.c.h.b16 %v3065
    %v3369 = vunpack.c.l.b16 %v3066
    %v3370 = vunpack.c.h.b16 %v3066
    %v3371 = vunpack.c.l.b16 %v3067
    %v3372 = vunpack.c.h.b16 %v3067
    %v3373 = vunpack.c.l.b16 %v3068
    %v3374 = vunpack.c.h.b16 %v3068
    %v3375 = vunpack.c.l.b16 %v3069
    %v3376 = vunpack.c.h.b16 %v3069
    %v3377 = vunpack.c.l.b16 %v3070
    %v3378 = vunpack.c.h.b16 %v3070
    %v3379 = vunpack.c.l.b16 %v3071
    %v3380 = vunpack.c.h.b16 %v3071
    %v3381 = vunpack.c.l.b16 %v3072
    %v3382 = vunpack.c.h.b16 %v3072
    %v3383 = vunpack.c.l.b16 %v3073
    %v3384 = vunpack.c.h.b16 %v3073
    %v3385 = vunpack.c.l.b16 %v3074
    %v3386 = vunpack.c.h.b16 %v3074
    %v3387 = vunpack.c.l.b16 %v3075
    %v3388 = vunpack.c.h.b16 %v3075
    %v3389 = vunpack.c.l.b16 %v3076
    %v3390 = vunpack.c.h.b16 %v3076
    %v3391 = vunpack.c.l.b16 %v3077
    %v3392 = vunpack.c.h.b16 %v3077
    %v3393 = vunpack.c.l.b16 %v3078
    %v3394 = vunpack.c.h.b16 %v3078
    %v3395 = vunpack.c.l.b16 %v3079
    %v3396 = vunpack.c.h.b16 %v3079
    %v3397 = vunpack.c.l.b16 %v3080
    %v3398 = vunpack.c.h.b16 %v3080
    %v3399 = vunpack.c.l.b16 %v3081
    %v3400 = vunpack.c.h.b16 %v3081
    %v3401 = vunpack.c.l.b16 %v3082
    %v3402 = vunpack.c.h.b16 %v3082
    %v3403 = vunpack.c.l.b16 %v3083
    %v3404 = vunpack.c.h.b16 %v3083
    %v3405 = vunpack.c.l.b16 %v3084
    %v3406 = vunpack.c.h.b16 %v3084
    %v3407 = vunpack.c.l.b16 %v3085
    %v3408 = vunpack.c.h.b16 %v3085
    %v3409 = vunpack.c.l.b16 %v3086
    %v3410 = vunpack.c.h.b16 %v3086
    %v3411 = vunpack.c.l.b16 %v3087
    %v3412 = vunpack.c.h.b16 %v3087
    %v3413 = vunpack.c.l.b16 %v3088
    %v3414 = vunpack.c.h.b16 %v3088
    %v3415 = vunpack.c.l.b16 %v3089
    %v3416 = vunpack.c.h.b16 %v3089
    %v3417 = vunpack.c.l.b16 %v3090
    %v3418 = vunpack.c.h.b16 %v3090
    %v3419 = vunpack.c.l.b16 %v3091
    %v3420 = vunpack.c.h.b16 %v3091
    %v3421 = vunpack.c.l.b16 %v3092
    %v3422 = vunpack.c.h.b16 %v3092
    %v3423 = vunpack.c.l.b16 %v3093
    %v3424 = vunpack.c.h.b16 %v3093
    %v3425 = vunpack.c.l.b16 %v3094
    %v3426 = vunpack.c.h.b16 %v3094
    %v3427 = vunpack.c.l.b16 %v3095
    %v3428 = vunpack.c.h.b16 %v3095
    %v3429 = vunpack.c.l.b16 %v3096
    %v3430 = vunpack.c.h.b16 %v3096
    %v3431 = vunpack.c.l.b16 %v3097
    %v3432 = vunpack.c.h.b16 %v3097
    %v3433 = vunpack.c.l.b16 %v3098
    %v3434 = vunpack.c.h.b16 %v3098
    %v3435 = vunpack.c.l.b16 %v3099
    %v3436 = vunpack.c.h.b16 %v3099
    %v3437 = vunpack.c.l.b16 %v3100
    %v3438 = vunpack.c.h.b16 %v3100
    %v3439 = vunpack.c.l.b16 %v3101
    %v3440 = vunpack.c.h.b16 %v3101
    %v3441 = vunpack.c.l.b16 %v3102
    %v3442 = vunpack.c.h.b16 %v3102
    %v3443 = vunpack.c.l.b16 %v3103
    %v3444 = vunpack.c.h.b16 %v3103
    %v3445 = vunpack.c.l.b16 %v3104
    %v3446 = vunpack.c.h.b16 %v3104
    %v3447 = vunpack.c.l.b16 %v3105
    %v3448 = vunpack.c.h.b16 %v3105
    %v3449 = vunpack.c.l.b16 %v3106
    %v3450 = vunpack.c.h.b16 %v3106
    %v3451 = vunpack.c.l.b16 %v3107
    %v3452 = vunpack.c.h.b16 %v3107
    %v3453 = vunpack.c.l.b16 %v3108
    %v3454 = vunpack.c.h.b16 %v3108
    %v3455 = vunpack.c.l.b16 %v3109
    %v3456 = vunpack.c.h.b16 %v3109
    %v3457 = vunpack.c.l.b16 %v3110
    %v3458 = vunpack.c.h.b16 %v3110
    %v3459 = vunpack.c.l.b16 %v3111
    %v3460 = vunpack.c.h.b16 %v3111
    %v3461 = vunpack.c.l.b16 %v3112
    %v3462 = vunpack.c.h.b16 %v3112
    %v3463 = vunpack.c.l.b16 %v3113
    %v3464 = vunpack.c.h.b16 %v3113
    %v3465 = vunpack.c.l.b16 %v3114
    %v3466 = vunpack.c.h.b16 %v3114
    %v3467 = vunpack.c.l.b16 %v3115
    %v3468 = vunpack.c.h.b16 %v3115
    %v3469 = vunpack.c.l.b16 %v3116
    %v3470 = vunpack.c.h.b16 %v3116
    %v3471 = vunpack.c.l.b16 %v3117
    %v3472 = vunpack.c.h.b16 %v3117
    %v3473 = vunpack.c.l.b16 %v3118
    %v3474 = vunpack.c.h.b16 %v3118
    %v3475 = vunpack.c.l.b16 %v3119
    %v3476 = vunpack.c.h.b16 %v3119
    %v3477 = vunpack.c.l.b16 %v3120
    %v3478 = vunpack.c.h.b16 %v3120
    %v3479 = vunpack.c.l.b16 %v3121
    %v3480 = vunpack.c.h.b16 %v3121
    %v3481 = vunpack.c.l.b16 %v3122
    %v3482 = vunpack.c.h.b16 %v3122
    %v3483 = vunpack.c.l.b16 %v3123
    %v3484 = vunpack.c.h.b16 %v3123
    %v3485 = vunpack.c.l.b16 %v3124
    %v3486 = vunpack.c.h.b16 %v3124
    %v3487 = vunpack.c.l.b16 %v3125
    %v3488 = vunpack.c.h.b16 %v3125
    %v3489 = vunpack.c.l.b16 %v3126
    %v3490 = vunpack.c.h.b16 %v3126
    %v3491 = vunpack.c.l.b16 %v3127
    %v3492 = vunpack.c.h.b16 %v3127
    %v3493 = vunpack.c.l.b16 %v3128
    %v3494 = vunpack.c.h.b16 %v3128
    %v3495 = vunpack.c.l.b16 %v3129
    %v3496 = vunpack.c.h.b16 %v3129
    %v3497 = vunpack.c.l.b16 %v3130
    %v3498 = vunpack.c.h.b16 %v3130
    %v3499 = vunpack.c.l.b16 %v3131
    %v3500 = vunpack.c.h.b16 %v3131
    %v3501 = vunpack.c.l.b16 %v3132
    %v3502 = vunpack.c.h.b16 %v3132
    %v3503 = vunpack.c.l.b16 %v3133
    %v3504 = vunpack.c.h.b16 %v3133
    %v3505 = vunpack.c.l.b16 %v3134
    %v3506 = vunpack.c.h.b16 %v3134
    %v3507 = vunpack.c.l.b16 %v3135
    %v3508 = vunpack.c.h.b16 %v3135
    %v3509 = vunpack.c.l.b16 %v3136
    %v3510 = vunpack.c.h.b16 %v3136
    %v3511 = vunpack.c.l.b16 %v3137
    %v3512 = vunpack.c.h.b16 %v3137
    %v3513 = vunpack.c.l.b16 %v3138
    %v3514 = vunpack.c.h.b16 %v3138
    %v3515 = vunpack.c.l.b16 %v3139
    %v3516 = vunpack.c.h.b16 %v3139
    %v3517 = vunpack.c.l.b16 %v3140
    %v3518 = vunpack.c.h.b16 %v3140
    %v3519 = vunpack.c.l.b16 %v3141
    %v3520 = vunpack.c.h.b16 %v3141
    %v3521 = vunpack.c.l.b16 %v3142
    %v3522 = vunpack.c.h.b16 %v3142
    %v3523 = vunpack.c.l.b16 %v3143
    %v3524 = vunpack.c.h.b16 %v3143
    %v3525 = vunpack.c.l.b16 %v3144
    %v3526 = vunpack.c.h.b16 %v3144
    %v3527 = vunpack.c.l.b16 %v3145
    %v3528 = vunpack.c.h.b16 %v3145
    %v3529 = vunpack.c.l.b16 %v3146
    %v3530 = vunpack.c.h.b16 %v3146
    %v3531 = vunpack.c.l.b16 %v3147
    %v3532 = vunpack.c.h.b16 %v3147
    %v3533 = vunpack.c.l.b16 %v3148
    %v3534 = vunpack.c.h.b16 %v3148
    %v3535 = vunpack.c.l.b16 %v3149
    %v3536 = vunpack.c.h.b16 %v3149
    %v3537 = vunpack.c.l.b16 %v3150
    %v3538 = vunpack.c.h.b16 %v3150
    %v3539 = vunpack.c.l.b16 %v3151
    %v3540 = vunpack.c.h.b16 %v3151
    %v3541 = vunpack.c.l.b16 %v3152
    %v3542 = vunpack.c.h.b16 %v3152
    %v3543 = vunpack.c.l.b16 %v3153
    %v3544 = vunpack.c.h.b16 %v3153
    %v3545 = vunpack.c.l.b16 %v3154
    %v3546 = vunpack.c.h.b16 %v3154
    %v3547 = vunpack.c.l.b16 %v3155
    %v3548 = vunpack.c.h.b16 %v3155
    %v3549 = vunpack.c.l.b16 %v3156
    %v3550 = vunpack.c.h.b16 %v3156
    %v3551 = vunpack.c.l.b16 %v3157
    %v3552 = vunpack.c.h.b16 %v3157
    %v3553 = vunpack.c.l.b16 %v3158
    %v3554 = vunpack.c.h.b16 %v3158
    %v3555 = vpack.c.b16 %v3301, %v3299
    %v3556 = vpack.c.b16 %v3302, %v3300
    %v3557 = vpack.c.b16 %v3305, %v3303
    %v3558 = vpack.c.b16 %v3306, %v3304
    %v3559 = vpack.c.b16 %v3309, %v3307
    %v3560 = vpack.c.b16 %v3310, %v3308
    %v3561 = vpack.c.b16 %v3313, %v3311
    %v3562 = vpack.c.b16 %v3314, %v3312
    %v3563 = vpack.c.b16 %v3317, %v3315
    %v3564 = vpack.c.b16 %v3318, %v3316
    %v3565 = vpack.c.b16 %v3321, %v3319
    %v3566 = vpack.c.b16 %v3322, %v3320
    %v3567 = vpack.c.b16 %v3325, %v3323
    %v3568 = vpack.c.b16 %v3326, %v3324
    %v3569 = vpack.c.b16 %v3329, %v3327
    %v3570 = vpack.c.b16 %v3330, %v3328
    %v3571 = vpack.c.b16 %v3333, %v3331
    %v3572 = vpack.c.b16 %v3334, %v3332
    %v3573 = vpack.c.b16 %v3337, %v3335
    %v3574 = vpack.c.b16 %v3338, %v3336
    %v3575 = vpack.c.b16 %v3341, %v3339
    %v3576 = vpack.c.b16 %v3342, %v3340
    %v3577 = vpack.c.b16 %v3345, %v3343
    %v3578 = vpack.c.b16 %v3346, %v3344
    %v3579 = vpack.c.b16 %v3349, %v3347
    %v3580 = vpack.c.b16 %v3350, %v3348
    %v3581 = vpack.c.b16 %v3353, %v3351
    %v3582 = vpack.c.b16 %v3354, %v3352
    %v3583 = vpack.c.b16 %v3357, %v3355
    %v3584 = vpack.c.b16 %v3358, %v3356
    %v3585 = vpack.c.b16 %v3361, %v3359
    %v3586 = vpack.c.b16 %v3362, %v3360
    %v3587 = vpack.c.b16 %v3365, %v3363
    %v3588 = vpack.c.b16 %v3366, %v3364
    %v3589 = vpack.c.b16 %v3369, %v3367
    %v3590 = vpack.c.b16 %v3370, %v3368
    %v3591 = vpack.c.b16 %v3373, %v3371
    %v3592 = vpack.c.b16 %v3374, %v3372
    %v3593 = vpack.c.b16 %v3377, %v3375
    %v3594 = vpack.c.b16 %v3378, %v3376
    %v3595 = vpack.c.b16 %v3381, %v3379
    %v3596 = vpack.c.b16 %v3382, %v3380
    %v3597 = vpack.c.b16 %v3385, %v3383
    %v3598 = vpack.c.b16 %v3386, %v3384
    %v3599 = vpack.c.b16 %v3389, %v3387
    %v3600 = vpack.c.b16 %v3390, %v3388
    %v3601 = vpack.c.b16 %v3393, %v3391
    %v3602 = vpack.c.b16 %v3394, %v3392
    %v3603 = vpack.c.b16 %v3397, %v3395
    %v3604 = vpack.c.b16 %v3398, %v3396
    %v3605 = vpack.c.b16 %v3401, %v3399
    %v3606 = vpack.c.b16 %v3402, %v3400
    %v3607 = vpack.c.b16 %v3405, %v3403
    %v3608 = vpack.c.b16 %v3406, %v3404
    %v3609 = vpack.c.b16 %v3409, %v3407
    %v3610 = vpack.c.b16 %v3410, %v3408
    %v3611 = vpack.c.b16 %v3413, %v3411
    %v3612 = vpack.c.b16 %v3414, %v3412
    %v3613 = vpack.c.b16 %v3417, %v3415
    %v3614 = vpack.c.b16 %v3418, %v3416
    %v3615 = vpack.c.b16 %v3421, %v3419
    %v3616 = vpack.c.b16 %v3422, %v3420
    %v3617 = vpack.c.b16 %v3425, %v3423
    %v3618 = vpack.c.b16 %v3426, %v3424
    %v3619 = vpack.c.b16 %v3429, %v3427
    %v3620 = vpack.c.b16 %v3430, %v3428
    %v3621 = vpack.c.b16 %v3433, %v3431
    %v3622 = vpack.c.b16 %v3434, %v3432
    %v3623 = vpack.c.b16 %v3437, %v3435
    %v3624 = vpack.c.b16 %v3438, %v3436
    %v3625 = vpack.c.b16 %v3441, %v3439
    %v3626 = vpack.c.b16 %v3442, %v3440
    %v3627 = vpack.c.b16 %v3445, %v3443
    %v3628 = vpack.c.b16 %v3446, %v3444
    %v3629 = vpack.c.b16 %v3449, %v3447
    %v3630 = vpack.c.b16 %v3450, %v3448
    %v3631 = vpack.c.b16 %v3453, %v3451
    %v3632 = vpack.c.b16 %v3454, %v3452
    %v3633 = vpack.c.b16 %v3457, %v3455
    %v3634 = vpack.c.b16 %v3458, %v3456
    %v3635 = vpack.c.b16 %v3461, %v3459
    %v3636 = vpack.c.b16 %v3462, %v3460
    %v3637 = vpack.c.b16 %v3465, %v3463
    %v3638 = vpack.c.b16 %v3466, %v3464
    %v3639 = vpack.c.b16 %v3469, %v3467
    %v3640 = vpack.c.b16 %v3470, %v3468
    %v3641 = vpack.c.b16 %v3473, %v3471
    %v3642 = vpack.c.b16 %v3474, %v3472
    %v3643 = vpack.c.b16 %v3477, %v3475
    %v3644 = vpack.c.b16 %v3478, %v3476
    %v3645 = vpack.c.b16 %v3481, %v3479
    %v3646 = vpack.c.b16 %v3482, %v3480
    %v3647 = vpack.c.b16 %v3485, %v3483
    %v3648 = vpack.c.b16 %v3486, %v3484
    %v3649 = vpack.c.b16 %v3489, %v3487
    %v3650 = vpack.c.b16 %v3490, %v3488
    %v3651 = vpack.c.b16 %v3493, %v3491
    %v3652 = vpack.c.b16 %v3494, %v3492
    %v3653 = vpack.c.b16 %v3497, %v3495
    %v3654 = vpack.c.b16 %v3498, %v3496
    %v3655 = vpack.c.b16 %v3501, %v3499
    %v3656 = vpack.c.b16 %v3502, %v3500
    %v3657 = vpack.c.b16 %v3505, %v3503
    %v3658 = vpack.c.b16 %v3506, %v3504
    %v3659 = vpack.c.b16 %v3509, %v3507
    %v3660 = vpack.c.b16 %v3510, %v3508
    %v3661 = vpack.c.b16 %v3513, %v3511
    %v3662 = vpack.c.b16 %v3514, %v3512
    %v3663 = vpack.c.b16 %v3517, %v3515
    %v3664 = vpack.c.b16 %v3518, %v3516
    %v3665 = vpack.c.b16 %v3521, %v3519
    %v3666 = vpack.c.b16 %v3522, %v3520
    %v3667 = vpack.c.b16 %v3525, %v3523
    %v3668 = vpack.c.b16 %v3526, %v3524
    %v3669 = vpack.c.b16 %v3529, %v3527
    %v3670 = vpack.c.b16 %v3530, %v3528
    %v3671 = vpack.c.b16 %v3533, %v3531
    %v3672 = vpack.c.b16 %v3534, %v3532
    %v3673 = vpack.c.b16 %v3537, %v3535
    %v3674 = vpack.c.b16 %v3538, %v3536
    %v3675 = vpack.c.b16 %v3541, %v3539
    %v3676 = vpack.c.b16 %v3542, %v3540
    %v3677 = vpack.c.b16 %v3545, %v3543
    %v3678 = vpack.c.b16 %v3546, %v3544
    %v3679 = vpack.c.b16 %v3549, %v3547
    %v3680 = vpack.c.b16 %v3550, %v3548
    %v3681 = vpack.c.b16 %v3553, %v3551
    %v3682 = vpack.c.b16 %v3554, %v3552
    %3811 = vmatprep.subr.bf16.mxu0 %v3556
    %3812 = vmatpush1.bf16.msra.mxu0 %v3555
    %3813 = vmatprep.subr.bf16.mxu0 %v3558
    %3814 = vmatpush1.bf16.msra.mxu0 %v3557
    %3815 = vmatprep.subr.bf16.mxu0 %v3560
    %3816 = vmatpush1.bf16.msra.mxu0 %v3559
    %3817 = vmatprep.subr.bf16.mxu0 %v3562
    %3818 = vmatpush1.bf16.msra.mxu0 %v3561
    %3819 = vmatprep.subr.bf16.mxu0 %v3564
    %3820 = vmatpush1.bf16.msra.mxu0 %v3563
    %3821 = vmatprep.subr.bf16.mxu0 %v3566
    %3822 = vmatpush1.bf16.msra.mxu0 %v3565
    %3823 = vmatprep.subr.bf16.mxu0 %v3568
    %3824 = vmatpush1.bf16.msra.mxu0 %v3567
    %3825 = vmatprep.subr.bf16.mxu0 %v3570
    %3826 = vmatpush1.bf16.msra.mxu0 %v3569
    %3827 = vmatprep.subr.bf16.mxu0 %v3572
    %3828 = vmatpush1.bf16.msra.mxu0 %v3571
    %3829 = vmatprep.subr.bf16.mxu0 %v3574
    %3830 = vmatpush1.bf16.msra.mxu0 %v3573
    %3831 = vmatprep.subr.bf16.mxu0 %v3576
    %3832 = vmatpush1.bf16.msra.mxu0 %v3575
    %3833 = vmatprep.subr.bf16.mxu0 %v3578
    %3834 = vmatpush1.bf16.msra.mxu0 %v3577
    %3835 = vmatprep.subr.bf16.mxu0 %v3580
    %3836 = vmatpush1.bf16.msra.mxu0 %v3579
    %3837 = vmatprep.subr.bf16.mxu0 %v3582
    %3838 = vmatpush1.bf16.msra.mxu0 %v3581
    %3839 = vmatprep.subr.bf16.mxu0 %v3584
    %3840 = vmatpush1.bf16.msra.mxu0 %v3583
    %3841 = vmatprep.subr.bf16.mxu0 %v3586
    %3842 = vmatpush1.bf16.msra.mxu0 %v3585
    %3843 = vmatprep.mubr.bf16.mxu0 %v3024
    %3844 = vmatmul.mubr.bf16.gmra.mrb[0].mxu0 %v3023
    %v3845 = vpop.f32.mrb[0].mxu0
    %v3846 = vadd.f32 %v3164, %v3845
    %v3847 = vpop.f32.mrb[0].mxu0
    %v3848 = vadd.f32 %v3168, %v3847
    %v3849 = vpop.f32.mrb[0].mxu0
    %v3850 = vadd.f32 %v3164, %v3849
    %v3851 = vpop.f32.mrb[0].mxu0
    %v3852 = vadd.f32 %v3168, %v3851
    %3853 = vdwg.mxu0
    %3854 = vmatprep.subr.bf16.mxu0 %v3588
    %3855 = vmatpush1.bf16.msra.mxu0 %v3587
    %3856 = vmatprep.subr.bf16.mxu0 %v3590
    %3857 = vmatpush1.bf16.msra.mxu0 %v3589
    %3858 = vmatprep.subr.bf16.mxu0 %v3592
    %3859 = vmatpush1.bf16.msra.mxu0 %v3591
    %3860 = vmatprep.subr.bf16.mxu0 %v3594
    %3861 = vmatpush1.bf16.msra.mxu0 %v3593
    %3862 = vmatprep.subr.bf16.mxu0 %v3596
    %3863 = vmatpush1.bf16.msra.mxu0 %v3595
    %3864 = vmatprep.subr.bf16.mxu0 %v3598
    %3865 = vmatpush1.bf16.msra.mxu0 %v3597
    %3866 = vmatprep.subr.bf16.mxu0 %v3600
    %3867 = vmatpush1.bf16.msra.mxu0 %v3599
    %3868 = vmatprep.subr.bf16.mxu0 %v3602
    %3869 = vmatpush1.bf16.msra.mxu0 %v3601
    %3870 = vmatprep.subr.bf16.mxu0 %v3604
    %3871 = vmatpush1.bf16.msra.mxu0 %v3603
    %3872 = vmatprep.subr.bf16.mxu0 %v3606
    %3873 = vmatpush1.bf16.msra.mxu0 %v3605
    %3874 = vmatprep.subr.bf16.mxu0 %v3608
    %3875 = vmatpush1.bf16.msra.mxu0 %v3607
    %3876 = vmatprep.subr.bf16.mxu0 %v3610
    %3877 = vmatpush1.bf16.msra.mxu0 %v3609
    %3878 = vmatprep.subr.bf16.mxu0 %v3612
    %3879 = vmatpush1.bf16.msra.mxu0 %v3611
    %3880 = vmatprep.subr.bf16.mxu0 %v3614
    %3881 = vmatpush1.bf16.msra.mxu0 %v3613
    %3882 = vmatprep.subr.bf16.mxu0 %v3616
    %3883 = vmatpush1.bf16.msra.mxu0 %v3615
    %3884 = vmatprep.subr.bf16.mxu0 %v3618
    %3885 = vmatpush1.bf16.msra.mxu0 %v3617
    %3886 = vmatprep.mubr.bf16.mxu0 %v3026
    %3887 = vmatmul.mubr.bf16.gmra.mrb[0].mxu0 %v3025
    %v3888 = vpop.f32.mrb[0].mxu0
    %v3889 = vadd.f32 %v3846, %v3888
    %v3890 = vpop.f32.mrb[0].mxu0
    %v3891 = vadd.f32 %v3848, %v3890
    %v3892 = vpop.f32.mrb[0].mxu0
    %v3893 = vadd.f32 %v3850, %v3892
    %v3894 = vpop.f32.mrb[0].mxu0
    %v3895 = vadd.f32 %v3852, %v3894
    %3896 = vdwg.mxu0
    %3897 = vmatprep.subr.bf16.mxu0 %v3620
    %3898 = vmatpush1.bf16.msra.mxu0 %v3619
    %3899 = vmatprep.subr.bf16.mxu0 %v3622
    %3900 = vmatpush1.bf16.msra.mxu0 %v3621
    %3901 = vmatprep.subr.bf16.mxu0 %v3624
    %3902 = vmatpush1.bf16.msra.mxu0 %v3623
    %3903 = vmatprep.subr.bf16.mxu0 %v3626
    %3904 = vmatpush1.bf16.msra.mxu0 %v3625
    %3905 = vmatprep.subr.bf16.mxu0 %v3628
    %3906 = vmatpush1.bf16.msra.mxu0 %v3627
    %3907 = vmatprep.subr.bf16.mxu0 %v3630
    %3908 = vmatpush1.bf16.msra.mxu0 %v3629
    %3909 = vmatprep.subr.bf16.mxu0 %v3632
    %3910 = vmatpush1.bf16.msra.mxu0 %v3631
    %3911 = vmatprep.subr.bf16.mxu0 %v3634
    %3912 = vmatpush1.bf16.msra.mxu0 %v3633
    %3913 = vmatprep.subr.bf16.mxu0 %v3636
    %3914 = vmatpush1.bf16.msra.mxu0 %v3635
    %3915 = vmatprep.subr.bf16.mxu0 %v3638
    %3916 = vmatpush1.bf16.msra.mxu0 %v3637
    %3917 = vmatprep.subr.bf16.mxu0 %v3640
    %3918 = vmatpush1.bf16.msra.mxu0 %v3639
    %3919 = vmatprep.subr.bf16.mxu0 %v3642
    %3920 = vmatpush1.bf16.msra.mxu0 %v3641
    %3921 = vmatprep.subr.bf16.mxu0 %v3644
    %3922 = vmatpush1.bf16.msra.mxu0 %v3643
    %3923 = vmatprep.subr.bf16.mxu0 %v3646
    %3924 = vmatpush1.bf16.msra.mxu0 %v3645
    %3925 = vmatprep.subr.bf16.mxu0 %v3648
    %3926 = vmatpush1.bf16.msra.mxu0 %v3647
    %3927 = vmatprep.subr.bf16.mxu0 %v3650
    %3928 = vmatpush1.bf16.msra.mxu0 %v3649
    %3929 = vmatprep.mubr.bf16.mxu0 %v3028
    %3930 = vmatmul.mubr.bf16.gmra.mrb[0].mxu0 %v3027
    %v3931 = vpop.f32.mrb[0].mxu0
    %v3932 = vadd.f32 %v3889, %v3931
    %v3933 = vpop.f32.mrb[0].mxu0
    %v3934 = vadd.f32 %v3891, %v3933
    %v3935 = vpop.f32.mrb[0].mxu0
    %v3936 = vadd.f32 %v3893, %v3935
    %v3937 = vpop.f32.mrb[0].mxu0
    %v3938 = vadd.f32 %v3895, %v3937
    %3939 = vdwg.mxu0
    %3940 = vmatprep.subr.bf16.mxu0 %v3652
    %3941 = vmatpush1.bf16.msra.mxu0 %v3651
    %3942 = vmatprep.subr.bf16.mxu0 %v3654
    %3943 = vmatpush1.bf16.msra.mxu0 %v3653
    %3944 = vmatprep.subr.bf16.mxu0 %v3656
    %3945 = vmatpush1.bf16.msra.mxu0 %v3655
    %3946 = vmatprep.subr.bf16.mxu0 %v3658
    %3947 = vmatpush1.bf16.msra.mxu0 %v3657
    %3948 = vmatprep.subr.bf16.mxu0 %v3660
    %3949 = vmatpush1.bf16.msra.mxu0 %v3659
    %3950 = vmatprep.subr.bf16.mxu0 %v3662
    %3951 = vmatpush1.bf16.msra.mxu0 %v3661
    %3952 = vmatprep.subr.bf16.mxu0 %v3664
    %3953 = vmatpush1.bf16.msra.mxu0 %v3663
    %3954 = vmatprep.subr.bf16.mxu0 %v3666
    %3955 = vmatpush1.bf16.msra.mxu0 %v3665
    %3956 = vmatprep.subr.bf16.mxu0 %v3668
    %3957 = vmatpush1.bf16.msra.mxu0 %v3667
    %3958 = vmatprep.subr.bf16.mxu0 %v3670
    %3959 = vmatpush1.bf16.msra.mxu0 %v3669
    %3960 = vmatprep.subr.bf16.mxu0 %v3672
    %3961 = vmatpush1.bf16.msra.mxu0 %v3671
    %3962 = vmatprep.subr.bf16.mxu0 %v3674
    %3963 = vmatpush1.bf16.msra.mxu0 %v3673
    %3964 = vmatprep.subr.bf16.mxu0 %v3676
    %3965 = vmatpush1.bf16.msra.mxu0 %v3675
    %3966 = vmatprep.subr.bf16.mxu0 %v3678
    %3967 = vmatpush1.bf16.msra.mxu0 %v3677
    %3968 = vmatprep.subr.bf16.mxu0 %v3680
    %3969 = vmatpush1.bf16.msra.mxu0 %v3679
    %3970 = vmatprep.subr.bf16.mxu0 %v3682
    %3971 = vmatpush1.bf16.msra.mxu0 %v3681
    %3972 = vmatprep.mubr.bf16.mxu0 %v3030
    %3973 = vmatmul.mubr.bf16.gmra.mrb[0].mxu0 %v3029
    %v3974 = vpop.f32.mrb[0].mxu0
    %v3975 = vadd.f32 %v3932, %v3974
    %v3976 = vpop.f32.mrb[0].mxu0
    %v3977 = vadd.f32 %v3934, %v3976
    %v3978 = vpop.f32.mrb[0].mxu0
    %v3979 = vadd.f32 %v3936, %v3978
    %v3980 = vpop.f32.mrb[0].mxu0
    %v3981 = vadd.f32 %v3938, %v3980
    %3982 = vdwg.mxu0
    %v3983 = vtanh.pop %v3975
    %v3984 = vtanh.pop %v3977
    %v3985 = vtanh.pop %v3979
    %v3986 = vtanh.pop %v3981
    %3987 = vst [vmem:[#allocation16] sm:$0xff] %v3983
    %3988 = vst [vmem:[#allocation16 + $0x8] sm:$0xff] %v3984
    %3989 = vst [vmem:[#allocation16 + $0x10] sm:$0xff] %v3985
    %3990 = vst [vmem:[#allocation16 + $0x18] sm:$0xff] %v3986
    // Predicated region
    $region90: #{tpu_custom_call.1} parent=1 // pred_check
      _
    $region91: #{tpu_custom_call.1} parent=1 // pred_check_branch
      %3992 = sbr.rel (0) target = $region93
    $region92: #{tpu_custom_call.1} parent=1 // pred_region
      %s3994 = ssub.s32 512, 512
      %3995 = vsyncadd [#allocation4], %s3994
      %s3996 = sshll.u32 [#allocation16], 4
      %s3997 = int_to_ptr.vmem [resolvable:$true] %s3996
      %4002 = dma.vmem_to_hbm [thread:$0]  %s3997, 512, %s14, [#allocation4], 256, 256, 16
    $region93: #{tpu_custom_call.1} parent=1 // pred_fallthru
      _
    // Predicated region
    $region94: #{tpu_custom_call.1} parent=1 // pred_check
      _
    $region95: #{tpu_custom_call.1} parent=1 // pred_check_branch
      %4004 = sbr.rel (0) target = $region97
    $region96: #{tpu_custom_call.1} parent=1 // pred_region
      %4005 = dma.done [#allocation4], 512
    $region97: #{tpu_custom_call.1} parent=1 // pred_fallthru
      _
    %4006 = vsyncpa [#allocation3], 1
    %4007 = vsyncpa [#allocation6], 1
    %4008 = vsyncpa [#allocation9], 1
    %4009 = vsyncpa [#allocation12], 1
    %4010 = vsyncpa [#allocation15], 1
    %4011 = vsyncpa [#allocation4], 1

</llo_original>
